<compile_context>
chip_gen: v7x
topology: tpu7x:2x2x1
jax: 0.10.0
libtpu: 0.0.40
codegen_flags: <defaults>
</compile_context>

<pallas_src>
import numpy as np
import jax
import jax.numpy as jnp
from jax import lax
from jax.experimental import pallas as pl
from jax.experimental.pallas import tpu as pltpu

NEG_INF = -1e30  # padding value for unused logit columns


# ----------------------------------------------------------------------------
# Fused kernel (one batch tile per grid step)
#   x_ref  : (TB, 784) bf16    flattened 28x28 image (row-major)
#   wc_ref : (3, 196, 480) bf16 banded conv weights, one per width offset dw;
#                               output lane = dh*160 + co*8 + pw
#   bc_ref : (1, 160) f32      conv bias, repeated over pw (lane = co*8 + pw)
#   w1_ref : (8, 160, 128) bf16 fc1 weight, permuted per pool-row, out 64->128 pad
#   b1_ref : (1, 128) f32
#   w2_ref : (128, 128) bf16   fc2 weight, in 64->128 pad, out 10->128 pad (zeros)
#   b2_ref : (1, 128) f32      padded columns hold NEG_INF
#   out_ref: (TB, 128) f32     log-probabilities in columns [0, 10)
# ----------------------------------------------------------------------------
def fused_cnn_kernel(x_ref, wc_ref, bc_ref, w1_ref, b1_ref, w2_ref, b2_ref,
                     out_ref):
    tb = out_ref.shape[0]
    x = x_ref[...]                                             # (TB, 784) bf16

    # For pool row ph, the needed image rows 3ph..3ph+6 are the contiguous
    # flattened pixels [84*ph, 84*ph + 196).  Stack ph-major: row = ph*TB + b.
    xg = jnp.concatenate([x[:, 84 * ph:84 * ph + 196] for ph in range(8)],
                         axis=0)                               # (8*TB, 196) bf16

    # conv1 + 3x3/3 max-pool: one wide matmul per width offset dw, running max
    # over dw; height offsets dh are lane groups of 160 -> lane-group max.
    pooled = None
    for dw in range(3):
        c = jnp.dot(xg, wc_ref[dw],
                    preferred_element_type=jnp.float32)        # (8*TB, 480) f32
        r = jnp.maximum(jnp.maximum(c[:, 0:160], c[:, 160:320]), c[:, 320:480])
        pooled = r if pooled is None else jnp.maximum(pooled, r)
    pooled = jnp.maximum(pooled + bc_ref[...], 0.0)            # (8*TB, 160) f32

    # Single bf16 cast, then a free leading-dim split (ph-major).
    p_bf = pooled.astype(jnp.bfloat16).reshape(8, tb, 160)

    # fc1 as a sum of 8 per-pool-row matmuls (weights pre-permuted to this layout).
    h = jnp.dot(p_bf[0], w1_ref[0], preferred_element_type=jnp.float32)
    for ph in range(1, 8):
        h = h + jnp.dot(p_bf[ph], w1_ref[ph],
                        preferred_element_type=jnp.float32)
    h = jnp.maximum(h + b1_ref[...], 0.0)                      # (TB, 128) f32

    logits = jnp.dot(h.astype(jnp.bfloat16), w2_ref[...],
                     preferred_element_type=jnp.float32) + b2_ref[...]
    m = jnp.max(logits, axis=-1, keepdims=True)
    lse = m + jnp.log(jnp.sum(jnp.exp(logits - m), axis=-1, keepdims=True))
    out_ref[...] = logits - lse                                # (TB, 128) f32


# ----------------------------------------------------------------------------
# Parameter init (PyTorch-native shapes) and one-time host repacking.
# ----------------------------------------------------------------------------
def init_params(key):
    k1, k2, k3, k4, k5, k6 = jax.random.split(key, 6)
    conv_w = 0.1 * jax.random.normal(k1, (20, 1, 5, 5), jnp.float32)
    conv_b = 0.1 * jax.random.normal(k2, (20,), jnp.float32)
    fc1_w = 0.05 * jax.random.normal(k3, (64, 8 * 8 * 20), jnp.float32)
    fc1_b = 0.05 * jax.random.normal(k4, (64,), jnp.float32)
    fc2_w = 0.05 * jax.random.normal(k5, (10, 64), jnp.float32)
    fc2_b = 0.05 * jax.random.normal(k6, (10,), jnp.float32)
    return dict(conv_w=conv_w, conv_b=conv_b,
                fc1_w=fc1_w, fc1_b=fc1_b, fc2_w=fc2_w, fc2_b=fc2_b)


def prepare_params(params):
    """Repack PyTorch-layout weights into the fused-kernel layout (done once)."""
    w = np.asarray(params["conv_w"], np.float32)[:, 0]         # (20, 5, 5)
    conv_b = np.asarray(params["conv_b"], np.float32)          # (20,)
    fc1_w = np.asarray(params["fc1_w"], np.float32)            # (64, 1280): c*64+ph*8+pw
    fc1_b = np.asarray(params["fc1_b"], np.float32)
    fc2_w = np.asarray(params["fc2_w"], np.float32)            # (10, 64)
    fc2_b = np.asarray(params["fc2_b"], np.float32)

    # Banded conv weights, one matrix per pool-column offset dw:
    #   wc[dw, t*28 + j, dh*160 + co*8 + pw] = w[co, t - dh, j - (3*pw + dw)]
    # so (xg @ wc[dw])[row=(ph,b), dh*160+co*8+pw] = conv[b, co, 3ph+dh, 3pw+dw].
    wc = np.zeros((3, 7 * 28, 3 * 160), np.float32)
    co_idx = np.arange(20) * 8
    for dw in range(3):
        for dh in range(3):
            for kh in range(5):
                t = dh + kh
                for kw in range(5):
                    for pw in range(8):
                        j = 3 * pw + dw + kw
                        wc[dw, t * 28 + j, dh * 160 + co_idx + pw] = w[:, kh, kw]

    bc = np.repeat(conv_b, 8).reshape(1, 160)                  # lane = co*8 + pw

    # fc1: (o, c*64+ph*8+pw) -> (ph, c*8+pw, o), output dim padded 64 -> 128.
    tmp = fc1_w.reshape(64, 20, 8, 8).transpose(2, 1, 3, 0)    # (ph, c, pw, o)
    w1 = np.zeros((8, 160, 128), np.float32)
    w1[:, :, :64] = tmp.reshape(8, 160, 64)
    b1 = np.zeros((1, 128), np.float32)
    b1[0, :64] = fc1_b

    # fc2: pad input 64->128 (extra h features are exactly zero) and output 10->128.
    w2 = np.zeros((128, 128), np.float32)
    w2[:64, :10] = fc2_w.T
    b2 = np.full((1, 128), NEG_INF, np.float32)
    b2[0, :10] = fc2_b

    return dict(
        wc=jnp.asarray(wc, jnp.bfloat16),
        bc=jnp.asarray(bc, jnp.float32),
        w1=jnp.asarray(w1, jnp.bfloat16),
        b1=jnp.asarray(b1, jnp.float32),
        w2=jnp.asarray(w2, jnp.bfloat16),
        b2=jnp.asarray(b2, jnp.float32),
    )


# ----------------------------------------------------------------------------
# Forward pass wrapper
# ----------------------------------------------------------------------------
def cnn_forward(x_nchw, kp):
    B = x_nchw.shape[0]
    assert x_nchw.shape[1:] == (1, 28, 28)

    # Batch tiling: tiles of up to 256 rows, and always >= 2 grid steps so both
    # TensorCores of a v7x megacore get work.
    b8 = 8 * pl.cdiv(B, 8)
    n_tiles = max(2, pl.cdiv(b8, 256))
    tile_b = min(256, 8 * pl.cdiv(b8, 8 * n_tiles))
    b_pad = tile_b * n_tiles

    x = x_nchw.reshape(B, 784).astype(jnp.bfloat16)            # flat image, no gather
    if b_pad != B:
        x = jnp.pad(x, ((0, b_pad - B), (0, 0)))

    flops = b_pad * (3 * 2 * 8 * 196 * 480 + 2 * 1280 * 128 + 2 * 128 * 128)
    bytes_accessed = (b_pad * 784 * 2
                      + kp["wc"].size * 2 + kp["w1"].size * 2 + kp["w2"].size * 2
                      + (kp["bc"].size + kp["b1"].size + kp["b2"].size) * 4
                      + b_pad * 128 * 4)
    cost = pl.CostEstimate(flops=flops, transcendentals=b_pad * 129,
                           bytes_accessed=bytes_accessed)

    out = pl.pallas_call(
        fused_cnn_kernel,
        out_shape=jax.ShapeDtypeStruct((b_pad, 128), jnp.float32),
        grid=(n_tiles,),
        in_specs=[
            pl.BlockSpec((tile_b, 784), lambda i: (i, 0)),
            pl.BlockSpec((3, 196, 480), lambda i: (0, 0, 0)),
            pl.BlockSpec((1, 160), lambda i: (0, 0)),
            pl.BlockSpec((8, 160, 128), lambda i: (0, 0, 0)),
            pl.BlockSpec((1, 128), lambda i: (0, 0)),
            pl.BlockSpec((128, 128), lambda i: (0, 0)),
            pl.BlockSpec((1, 128), lambda i: (0, 0)),
        ],
        out_specs=pl.BlockSpec((tile_b, 128), lambda i: (i, 0)),
        compiler_params=pltpu.CompilerParams(
            dimension_semantics=("parallel",),
            vmem_limit_bytes=48 * 1024 * 1024,
        ),
        cost_estimate=cost,
    )(x, kp["wc"], kp["bc"], kp["w1"], kp["b1"], kp["w2"], kp["b2"])

    return out[:B, :10]


# ----------------------------------------------------------------------------
# Pure-JAX f32 reference (PyTorch semantics) for validation.
# ----------------------------------------------------------------------------
def cnn_reference(x_nchw, params):
    conv = lax.conv_general_dilated(
        x_nchw, params["conv_w"], window_strides=(1, 1), padding="VALID",
        dimension_numbers=("NCHW", "OIHW", "NCHW"))
    conv = conv + params["conv_b"][None, :, None, None]
    a = jnp.maximum(conv, 0.0)                                 # (B, 20, 24, 24)
    B = a.shape[0]
    a = a.reshape(B, 20, 8, 3, 8, 3).max(axis=(3, 5))          # (B, 20, 8, 8)
    feat = a.reshape(B, 20 * 8 * 8)
    h = jnp.maximum(feat @ params["fc1_w"].T + params["fc1_b"], 0.0)
    logits = h @ params["fc2_w"].T + params["fc2_b"]
    return jax.nn.log_softmax(logits, axis=-1)


if __name__ == "__main__":
    key = jax.random.PRNGKey(0)
    k_in, k_par = jax.random.split(key)
    x = jax.random.normal(k_in, (2, 1, 28, 28), jnp.float32)
    params = init_params(k_par)
    kernel_params = prepare_params(params)

    logp = jax.block_until_ready(jax.jit(cnn_forward)(x, kernel_params))

    assert logp.shape == (2, 10), logp.shape
    row_sums = jnp.exp(logp).sum(axis=-1)
    assert jnp.allclose(row_sums, 1.0, atol=1e-4), row_sums

    ref = cnn_reference(x, params)
    err = float(jnp.max(jnp.abs(logp - ref)))
    assert err < 0.1, f"max |pallas - reference| = {err}"
    print("KERNEL_OK")
</pallas_src>

<mosaic_0001>
module attributes {stable_mosaic.version = 11 : i64} {
  func.func @fused_cnn_kernel(%arg0: i32, %arg1: memref<8x784xbf16, #tpu.memory_space<vmem>>, %arg2: memref<3x196x480xbf16, #tpu.memory_space<vmem>>, %arg3: memref<1x160xf32, #tpu.memory_space<vmem>>, %arg4: memref<8x160x128xbf16, #tpu.memory_space<vmem>>, %arg5: memref<1x128xf32, #tpu.memory_space<vmem>>, %arg6: memref<128x128xbf16, #tpu.memory_space<vmem>>, %arg7: memref<1x128xf32, #tpu.memory_space<vmem>>, %arg8: memref<8x128xf32, #tpu.memory_space<vmem>>) attributes {dimension_semantics = [#tpu.dimension_semantics<parallel>], iteration_bounds = array<i64: 2>, scalar_prefetch = 0 : i64, scratch_operands = 0 : i64, tpu.core_type = #tpu.core_type<tc>, window_params = [{transform_indices = @transform_0, window_bounds = array<i64: 8, 784>}, {pipeline_mode = #tpu.pipeline_mode<synchronous>, transform_indices = @transform_1, window_bounds = array<i64: 3, 196, 480>}, {pipeline_mode = #tpu.pipeline_mode<synchronous>, transform_indices = @transform_2, window_bounds = array<i64: 1, 160>}, {pipeline_mode = #tpu.pipeline_mode<synchronous>, transform_indices = @transform_3, window_bounds = array<i64: 8, 160, 128>}, {pipeline_mode = #tpu.pipeline_mode<synchronous>, transform_indices = @transform_4, window_bounds = array<i64: 1, 128>}, {pipeline_mode = #tpu.pipeline_mode<synchronous>, transform_indices = @transform_5, window_bounds = array<i64: 128, 128>}, {pipeline_mode = #tpu.pipeline_mode<synchronous>, transform_indices = @transform_6, window_bounds = array<i64: 1, 128>}, {transform_indices = @transform_7, window_bounds = array<i64: 8, 128>}]} {
    %c0 = arith.constant 0 : index
    %c0_0 = arith.constant 0 : index
    %0 = vector.load %arg1[%c0, %c0_0] : memref<8x784xbf16, #tpu.memory_space<vmem>>, vector<8x784xbf16>
    %1 = vector.extract_strided_slice %0 {offsets = [0, 0], sizes = [8, 196], strides = [1, 1]} : vector<8x784xbf16> to vector<8x196xbf16>
    %2 = vector.extract_strided_slice %0 {offsets = [0, 84], sizes = [8, 196], strides = [1, 1]} : vector<8x784xbf16> to vector<8x196xbf16>
    %3 = vector.extract_strided_slice %0 {offsets = [0, 168], sizes = [8, 196], strides = [1, 1]} : vector<8x784xbf16> to vector<8x196xbf16>
    %4 = vector.extract_strided_slice %0 {offsets = [0, 252], sizes = [8, 196], strides = [1, 1]} : vector<8x784xbf16> to vector<8x196xbf16>
    %5 = vector.extract_strided_slice %0 {offsets = [0, 336], sizes = [8, 196], strides = [1, 1]} : vector<8x784xbf16> to vector<8x196xbf16>
    %6 = vector.extract_strided_slice %0 {offsets = [0, 420], sizes = [8, 196], strides = [1, 1]} : vector<8x784xbf16> to vector<8x196xbf16>
    %7 = vector.extract_strided_slice %0 {offsets = [0, 504], sizes = [8, 196], strides = [1, 1]} : vector<8x784xbf16> to vector<8x196xbf16>
    %8 = vector.extract_strided_slice %0 {offsets = [0, 588], sizes = [8, 196], strides = [1, 1]} : vector<8x784xbf16> to vector<8x196xbf16>
    %9 = tpu.concatenate %1, %2, %3, %4, %5, %6, %7, %8 in 0 : vector<8x196xbf16>, vector<8x196xbf16>, vector<8x196xbf16>, vector<8x196xbf16>, vector<8x196xbf16>, vector<8x196xbf16>, vector<8x196xbf16>, vector<8x196xbf16> -> vector<64x196xbf16>
    %c0_1 = arith.constant 0 : index
    %c0_2 = arith.constant 0 : index
    %c0_3 = arith.constant 0 : index
    %10 = vector.load %arg2[%c0_1, %c0_2, %c0_3] : memref<3x196x480xbf16, #tpu.memory_space<vmem>>, vector<1x196x480xbf16>
    %11 = vector.shape_cast %10 : vector<1x196x480xbf16> to vector<196x480xbf16>
    %cst = arith.constant dense<0.000000e+00> : vector<64x480xf32>
    %12 = tpu.matmul %9, %11, %cst {dimension_numbers = #tpu.dot_dimension_numbers<[1], [0], [0], [1], [0, 0, 1, 1], [], []>} : vector<64x196xbf16>, vector<196x480xbf16>, vector<64x480xf32> -> vector<64x480xf32>
    %13 = vector.extract_strided_slice %12 {offsets = [0, 0], sizes = [64, 160], strides = [1, 1]} : vector<64x480xf32> to vector<64x160xf32>
    %14 = vector.extract_strided_slice %12 {offsets = [0, 160], sizes = [64, 160], strides = [1, 1]} : vector<64x480xf32> to vector<64x160xf32>
    %15 = arith.maximumf %13, %14 : vector<64x160xf32>
    %16 = vector.extract_strided_slice %12 {offsets = [0, 320], sizes = [64, 160], strides = [1, 1]} : vector<64x480xf32> to vector<64x160xf32>
    %17 = arith.maximumf %15, %16 : vector<64x160xf32>
    %c1 = arith.constant 1 : index
    %c0_4 = arith.constant 0 : index
    %c0_5 = arith.constant 0 : index
    %18 = vector.load %arg2[%c1, %c0_4, %c0_5] : memref<3x196x480xbf16, #tpu.memory_space<vmem>>, vector<1x196x480xbf16>
    %19 = vector.shape_cast %18 : vector<1x196x480xbf16> to vector<196x480xbf16>
    %cst_6 = arith.constant dense<0.000000e+00> : vector<64x480xf32>
    %20 = tpu.matmul %9, %19, %cst_6 {dimension_numbers = #tpu.dot_dimension_numbers<[1], [0], [0], [1], [0, 0, 1, 1], [], []>} : vector<64x196xbf16>, vector<196x480xbf16>, vector<64x480xf32> -> vector<64x480xf32>
    %21 = vector.extract_strided_slice %20 {offsets = [0, 0], sizes = [64, 160], strides = [1, 1]} : vector<64x480xf32> to vector<64x160xf32>
    %22 = vector.extract_strided_slice %20 {offsets = [0, 160], sizes = [64, 160], strides = [1, 1]} : vector<64x480xf32> to vector<64x160xf32>
    %23 = arith.maximumf %21, %22 : vector<64x160xf32>
    %24 = vector.extract_strided_slice %20 {offsets = [0, 320], sizes = [64, 160], strides = [1, 1]} : vector<64x480xf32> to vector<64x160xf32>
    %25 = arith.maximumf %23, %24 : vector<64x160xf32>
    %26 = arith.maximumf %17, %25 : vector<64x160xf32>
    %c2 = arith.constant 2 : index
    %c0_7 = arith.constant 0 : index
    %c0_8 = arith.constant 0 : index
    %27 = vector.load %arg2[%c2, %c0_7, %c0_8] : memref<3x196x480xbf16, #tpu.memory_space<vmem>>, vector<1x196x480xbf16>
    %28 = vector.shape_cast %27 : vector<1x196x480xbf16> to vector<196x480xbf16>
    %cst_9 = arith.constant dense<0.000000e+00> : vector<64x480xf32>
    %29 = tpu.matmul %9, %28, %cst_9 {dimension_numbers = #tpu.dot_dimension_numbers<[1], [0], [0], [1], [0, 0, 1, 1], [], []>} : vector<64x196xbf16>, vector<196x480xbf16>, vector<64x480xf32> -> vector<64x480xf32>
    %30 = vector.extract_strided_slice %29 {offsets = [0, 0], sizes = [64, 160], strides = [1, 1]} : vector<64x480xf32> to vector<64x160xf32>
    %31 = vector.extract_strided_slice %29 {offsets = [0, 160], sizes = [64, 160], strides = [1, 1]} : vector<64x480xf32> to vector<64x160xf32>
    %32 = arith.maximumf %30, %31 : vector<64x160xf32>
    %33 = vector.extract_strided_slice %29 {offsets = [0, 320], sizes = [64, 160], strides = [1, 1]} : vector<64x480xf32> to vector<64x160xf32>
    %34 = arith.maximumf %32, %33 : vector<64x160xf32>
    %35 = arith.maximumf %26, %34 : vector<64x160xf32>
    %c0_10 = arith.constant 0 : index
    %c0_11 = arith.constant 0 : index
    %36 = vector.load %arg3[%c0_10, %c0_11] : memref<1x160xf32, #tpu.memory_space<vmem>>, vector<1x160xf32>
    %37 = vector.broadcast %36 : vector<1x160xf32> to vector<64x160xf32>
    %38 = arith.addf %35, %37 : vector<64x160xf32>
    %cst_12 = arith.constant 0.000000e+00 : f32
    %39 = vector.broadcast %cst_12 : f32 to vector<64x160xf32>
    %40 = arith.maximumf %38, %39 : vector<64x160xf32>
    %41 = arith.truncf %40 : vector<64x160xf32> to vector<64x160xbf16>
    %42 = vector.shape_cast %41 : vector<64x160xbf16> to vector<8x8x160xbf16>
    %43 = vector.extract_strided_slice %42 {offsets = [0, 0, 0], sizes = [1, 8, 160], strides = [1, 1, 1]} : vector<8x8x160xbf16> to vector<1x8x160xbf16>
    %44 = vector.shape_cast %43 : vector<1x8x160xbf16> to vector<8x160xbf16>
    %c0_13 = arith.constant 0 : index
    %c0_14 = arith.constant 0 : index
    %c0_15 = arith.constant 0 : index
    %45 = vector.load %arg4[%c0_13, %c0_14, %c0_15] : memref<8x160x128xbf16, #tpu.memory_space<vmem>>, vector<1x160x128xbf16>
    %46 = vector.shape_cast %45 : vector<1x160x128xbf16> to vector<160x128xbf16>
    %cst_16 = arith.constant dense<0.000000e+00> : vector<8x128xf32>
    %47 = tpu.matmul %44, %46, %cst_16 {dimension_numbers = #tpu.dot_dimension_numbers<[1], [0], [0], [1], [0, 0, 1, 1], [], []>} : vector<8x160xbf16>, vector<160x128xbf16>, vector<8x128xf32> -> vector<8x128xf32>
    %48 = vector.extract_strided_slice %42 {offsets = [1, 0, 0], sizes = [1, 8, 160], strides = [1, 1, 1]} : vector<8x8x160xbf16> to vector<1x8x160xbf16>
    %49 = vector.shape_cast %48 : vector<1x8x160xbf16> to vector<8x160xbf16>
    %c1_17 = arith.constant 1 : index
    %c0_18 = arith.constant 0 : index
    %c0_19 = arith.constant 0 : index
    %50 = vector.load %arg4[%c1_17, %c0_18, %c0_19] : memref<8x160x128xbf16, #tpu.memory_space<vmem>>, vector<1x160x128xbf16>
    %51 = vector.shape_cast %50 : vector<1x160x128xbf16> to vector<160x128xbf16>
    %cst_20 = arith.constant dense<0.000000e+00> : vector<8x128xf32>
    %52 = tpu.matmul %49, %51, %cst_20 {dimension_numbers = #tpu.dot_dimension_numbers<[1], [0], [0], [1], [0, 0, 1, 1], [], []>} : vector<8x160xbf16>, vector<160x128xbf16>, vector<8x128xf32> -> vector<8x128xf32>
    %53 = arith.addf %47, %52 : vector<8x128xf32>
    %54 = vector.extract_strided_slice %42 {offsets = [2, 0, 0], sizes = [1, 8, 160], strides = [1, 1, 1]} : vector<8x8x160xbf16> to vector<1x8x160xbf16>
    %55 = vector.shape_cast %54 : vector<1x8x160xbf16> to vector<8x160xbf16>
    %c2_21 = arith.constant 2 : index
    %c0_22 = arith.constant 0 : index
    %c0_23 = arith.constant 0 : index
    %56 = vector.load %arg4[%c2_21, %c0_22, %c0_23] : memref<8x160x128xbf16, #tpu.memory_space<vmem>>, vector<1x160x128xbf16>
    %57 = vector.shape_cast %56 : vector<1x160x128xbf16> to vector<160x128xbf16>
    %cst_24 = arith.constant dense<0.000000e+00> : vector<8x128xf32>
    %58 = tpu.matmul %55, %57, %cst_24 {dimension_numbers = #tpu.dot_dimension_numbers<[1], [0], [0], [1], [0, 0, 1, 1], [], []>} : vector<8x160xbf16>, vector<160x128xbf16>, vector<8x128xf32> -> vector<8x128xf32>
    %59 = arith.addf %53, %58 : vector<8x128xf32>
    %60 = vector.extract_strided_slice %42 {offsets = [3, 0, 0], sizes = [1, 8, 160], strides = [1, 1, 1]} : vector<8x8x160xbf16> to vector<1x8x160xbf16>
    %61 = vector.shape_cast %60 : vector<1x8x160xbf16> to vector<8x160xbf16>
    %c3 = arith.constant 3 : index
    %c0_25 = arith.constant 0 : index
    %c0_26 = arith.constant 0 : index
    %62 = vector.load %arg4[%c3, %c0_25, %c0_26] : memref<8x160x128xbf16, #tpu.memory_space<vmem>>, vector<1x160x128xbf16>
    %63 = vector.shape_cast %62 : vector<1x160x128xbf16> to vector<160x128xbf16>
    %cst_27 = arith.constant dense<0.000000e+00> : vector<8x128xf32>
    %64 = tpu.matmul %61, %63, %cst_27 {dimension_numbers = #tpu.dot_dimension_numbers<[1], [0], [0], [1], [0, 0, 1, 1], [], []>} : vector<8x160xbf16>, vector<160x128xbf16>, vector<8x128xf32> -> vector<8x128xf32>
    %65 = arith.addf %59, %64 : vector<8x128xf32>
    %66 = vector.extract_strided_slice %42 {offsets = [4, 0, 0], sizes = [1, 8, 160], strides = [1, 1, 1]} : vector<8x8x160xbf16> to vector<1x8x160xbf16>
    %67 = vector.shape_cast %66 : vector<1x8x160xbf16> to vector<8x160xbf16>
    %c4 = arith.constant 4 : index
    %c0_28 = arith.constant 0 : index
    %c0_29 = arith.constant 0 : index
    %68 = vector.load %arg4[%c4, %c0_28, %c0_29] : memref<8x160x128xbf16, #tpu.memory_space<vmem>>, vector<1x160x128xbf16>
    %69 = vector.shape_cast %68 : vector<1x160x128xbf16> to vector<160x128xbf16>
    %cst_30 = arith.constant dense<0.000000e+00> : vector<8x128xf32>
    %70 = tpu.matmul %67, %69, %cst_30 {dimension_numbers = #tpu.dot_dimension_numbers<[1], [0], [0], [1], [0, 0, 1, 1], [], []>} : vector<8x160xbf16>, vector<160x128xbf16>, vector<8x128xf32> -> vector<8x128xf32>
    %71 = arith.addf %65, %70 : vector<8x128xf32>
    %72 = vector.extract_strided_slice %42 {offsets = [5, 0, 0], sizes = [1, 8, 160], strides = [1, 1, 1]} : vector<8x8x160xbf16> to vector<1x8x160xbf16>
    %73 = vector.shape_cast %72 : vector<1x8x160xbf16> to vector<8x160xbf16>
    %c5 = arith.constant 5 : index
    %c0_31 = arith.constant 0 : index
    %c0_32 = arith.constant 0 : index
    %74 = vector.load %arg4[%c5, %c0_31, %c0_32] : memref<8x160x128xbf16, #tpu.memory_space<vmem>>, vector<1x160x128xbf16>
    %75 = vector.shape_cast %74 : vector<1x160x128xbf16> to vector<160x128xbf16>
    %cst_33 = arith.constant dense<0.000000e+00> : vector<8x128xf32>
    %76 = tpu.matmul %73, %75, %cst_33 {dimension_numbers = #tpu.dot_dimension_numbers<[1], [0], [0], [1], [0, 0, 1, 1], [], []>} : vector<8x160xbf16>, vector<160x128xbf16>, vector<8x128xf32> -> vector<8x128xf32>
    %77 = arith.addf %71, %76 : vector<8x128xf32>
    %78 = vector.extract_strided_slice %42 {offsets = [6, 0, 0], sizes = [1, 8, 160], strides = [1, 1, 1]} : vector<8x8x160xbf16> to vector<1x8x160xbf16>
    %79 = vector.shape_cast %78 : vector<1x8x160xbf16> to vector<8x160xbf16>
    %c6 = arith.constant 6 : index
    %c0_34 = arith.constant 0 : index
    %c0_35 = arith.constant 0 : index
    %80 = vector.load %arg4[%c6, %c0_34, %c0_35] : memref<8x160x128xbf16, #tpu.memory_space<vmem>>, vector<1x160x128xbf16>
    %81 = vector.shape_cast %80 : vector<1x160x128xbf16> to vector<160x128xbf16>
    %cst_36 = arith.constant dense<0.000000e+00> : vector<8x128xf32>
    %82 = tpu.matmul %79, %81, %cst_36 {dimension_numbers = #tpu.dot_dimension_numbers<[1], [0], [0], [1], [0, 0, 1, 1], [], []>} : vector<8x160xbf16>, vector<160x128xbf16>, vector<8x128xf32> -> vector<8x128xf32>
    %83 = arith.addf %77, %82 : vector<8x128xf32>
    %84 = vector.extract_strided_slice %42 {offsets = [7, 0, 0], sizes = [1, 8, 160], strides = [1, 1, 1]} : vector<8x8x160xbf16> to vector<1x8x160xbf16>
    %85 = vector.shape_cast %84 : vector<1x8x160xbf16> to vector<8x160xbf16>
    %c7 = arith.constant 7 : index
    %c0_37 = arith.constant 0 : index
    %c0_38 = arith.constant 0 : index
    %86 = vector.load %arg4[%c7, %c0_37, %c0_38] : memref<8x160x128xbf16, #tpu.memory_space<vmem>>, vector<1x160x128xbf16>
    %87 = vector.shape_cast %86 : vector<1x160x128xbf16> to vector<160x128xbf16>
    %cst_39 = arith.constant dense<0.000000e+00> : vector<8x128xf32>
    %88 = tpu.matmul %85, %87, %cst_39 {dimension_numbers = #tpu.dot_dimension_numbers<[1], [0], [0], [1], [0, 0, 1, 1], [], []>} : vector<8x160xbf16>, vector<160x128xbf16>, vector<8x128xf32> -> vector<8x128xf32>
    %89 = arith.addf %83, %88 : vector<8x128xf32>
    %c0_40 = arith.constant 0 : index
    %c0_41 = arith.constant 0 : index
    %90 = vector.load %arg5[%c0_40, %c0_41] : memref<1x128xf32, #tpu.memory_space<vmem>>, vector<1x128xf32>
    %91 = vector.broadcast %90 : vector<1x128xf32> to vector<8x128xf32>
    %92 = arith.addf %89, %91 : vector<8x128xf32>
    %cst_42 = arith.constant 0.000000e+00 : f32
    %93 = vector.broadcast %cst_42 : f32 to vector<8x128xf32>
    %94 = arith.maximumf %92, %93 : vector<8x128xf32>
    %95 = arith.truncf %94 : vector<8x128xf32> to vector<8x128xbf16>
    %c0_43 = arith.constant 0 : index
    %c0_44 = arith.constant 0 : index
    %96 = vector.load %arg6[%c0_43, %c0_44] : memref<128x128xbf16, #tpu.memory_space<vmem>>, vector<128x128xbf16>
    %cst_45 = arith.constant dense<0.000000e+00> : vector<8x128xf32>
    %97 = tpu.matmul %95, %96, %cst_45 {dimension_numbers = #tpu.dot_dimension_numbers<[1], [0], [0], [1], [0, 0, 1, 1], [], []>} : vector<8x128xbf16>, vector<128x128xbf16>, vector<8x128xf32> -> vector<8x128xf32>
    %c0_46 = arith.constant 0 : index
    %c0_47 = arith.constant 0 : index
    %98 = vector.load %arg7[%c0_46, %c0_47] : memref<1x128xf32, #tpu.memory_space<vmem>>, vector<1x128xf32>
    %99 = vector.broadcast %98 : vector<1x128xf32> to vector<8x128xf32>
    %100 = arith.addf %97, %99 : vector<8x128xf32>
    %cst_48 = arith.constant dense<0xFF800000> : vector<8xf32>
    %101 = vector.multi_reduction <maximumf>, %100, %cst_48 [1] : vector<8x128xf32> to vector<8xf32>
    %102 = vector.shape_cast %101 : vector<8xf32> to vector<8x1xf32>
    %103 = vector.broadcast %102 : vector<8x1xf32> to vector<8x128xf32>
    %104 = arith.subf %100, %103 : vector<8x128xf32>
    %105 = math.exp %104 : vector<8x128xf32>
    %cst_49 = arith.constant dense<0.000000e+00> : vector<8xf32>
    %106 = vector.multi_reduction <add>, %105, %cst_49 [1] : vector<8x128xf32> to vector<8xf32>
    %107 = vector.shape_cast %106 : vector<8xf32> to vector<8x1xf32>
    %108 = math.log %107 : vector<8x1xf32>
    %109 = arith.addf %102, %108 : vector<8x1xf32>
    %110 = vector.broadcast %109 : vector<8x1xf32> to vector<8x128xf32>
    %111 = arith.subf %100, %110 : vector<8x128xf32>
    %c0_50 = arith.constant 0 : index
    %c0_51 = arith.constant 0 : index
    %112 = vector.load %arg8[%c0_50, %c0_51] : memref<8x128xf32, #tpu.memory_space<vmem>>, vector<8x128xf32>
    tpu.vector_store %arg8[%c0_50, %c0_51], %111 {strides = array<i32>} : memref<8x128xf32, #tpu.memory_space<vmem>>, vector<8x128xf32>,
    return
  }
  func.func @transform_0(%arg0: i32) -> (i32, i32) {
    %c0_i32 = arith.constant 0 : i32
    %c0_i32_0 = arith.constant 0 : i32
    return %arg0, %c0_i32 : i32, i32
  }
  func.func @transform_1(%arg0: i32) -> (i32, i32, i32) {
    %c0_i32 = arith.constant 0 : i32
    %c0_i32_0 = arith.constant 0 : i32
    %c0_i32_1 = arith.constant 0 : i32
    %c0_i32_2 = arith.constant 0 : i32
    return %c0_i32, %c0_i32_0, %c0_i32_1 : i32, i32, i32
  }
  func.func @transform_2(%arg0: i32) -> (i32, i32) {
    %c0_i32 = arith.constant 0 : i32
    %c0_i32_0 = arith.constant 0 : i32
    %c0_i32_1 = arith.constant 0 : i32
    return %c0_i32, %c0_i32_0 : i32, i32
  }
  func.func @transform_3(%arg0: i32) -> (i32, i32, i32) {
    %c0_i32 = arith.constant 0 : i32
    %c0_i32_0 = arith.constant 0 : i32
    %c0_i32_1 = arith.constant 0 : i32
    %c0_i32_2 = arith.constant 0 : i32
    return %c0_i32, %c0_i32_0, %c0_i32_1 : i32, i32, i32
  }
  func.func @transform_4(%arg0: i32) -> (i32, i32) {
    %c0_i32 = arith.constant 0 : i32
    %c0_i32_0 = arith.constant 0 : i32
    %c0_i32_1 = arith.constant 0 : i32
    return %c0_i32, %c0_i32_0 : i32, i32
  }
  func.func @transform_5(%arg0: i32) -> (i32, i32) {
    %c0_i32 = arith.constant 0 : i32
    %c0_i32_0 = arith.constant 0 : i32
    %c0_i32_1 = arith.constant 0 : i32
    return %c0_i32, %c0_i32_0 : i32, i32
  }
  func.func @transform_6(%arg0: i32) -> (i32, i32) {
    %c0_i32 = arith.constant 0 : i32
    %c0_i32_0 = arith.constant 0 : i32
    %c0_i32_1 = arith.constant 0 : i32
    return %c0_i32, %c0_i32_0 : i32, i32
  }
  func.func @transform_7(%arg0: i32) -> (i32, i32) {
    %c0_i32 = arith.constant 0 : i32
    %c0_i32_0 = arith.constant 0 : i32
    return %arg0, %c0_i32 : i32, i32
  }
}

</mosaic_0001>

<llo_original>
// kernel: cnn_forward.1
$region0: #{cnn_forward.1}
  #allocation0 [shape = 'u32[]', space=smem, size = 0x4, offset = 0x4, fixed_abs, tag = 'smem constant byte address 0x4 - core index']
  #allocation1 [shape = 'u32[144,128]{1,0:T(1,128)}', space=vmem, size = 0x12000, scoped, tag = 'internal scratch']
  %s0 = inlined_call_operand.vmem [shape: bf16[16,784], index: 0, kind: input, shape index: {}]
  %s1 = inlined_call_operand.hbm [shape: bf16[3,196,480], index: 1, kind: input, shape index: {}]
  %s2 = inlined_call_operand.vmem [shape: f32[1,160], index: 2, kind: input, shape index: {}]
  %s3 = inlined_call_operand.hbm [shape: bf16[8,160,128], index: 3, kind: input, shape index: {}]
  %s4 = inlined_call_operand.vmem [shape: f32[1,128], index: 4, kind: input, shape index: {}]
  %s5 = inlined_call_operand.vmem [shape: bf16[128,128], index: 5, kind: input, shape index: {}]
  %s6 = inlined_call_operand.vmem [shape: f32[1,128], index: 6, kind: input, shape index: {}]
  %s7 = inlined_call_operand.vmem [shape: f32[16,128], index: 7, kind: output, shape index: {}]
  %s8 = sld [smem:[#allocation0]]
  $region69: #{cnn_forward.1} parent=0
    _
  %s10 = ssub.s32 1, %s8
  %s11 = scalar_select 0, %s10, %s8
  $region1: #{cnn_forward.1} parent=0
    #allocation2 [shape = 'u8[614400]{0}', space=vmem, size = 0x96000, scoped, tag = 'input window, operand 1, single buffered']
    #allocation3 [shape = 's32[2]{0}', space=sflag, size = 0x8, scoped, tag = 'scoped memory for cnn_forward.1']
    #allocation4 [shape = 'u8[327680]{0}', space=vmem, size = 0x50000, scoped, tag = 'input window, operand 3, single buffered']
    #allocation5 [shape = 's32[1]{0}', space=sflag, size = 0x4, scoped, tag = 'scoped memory for cnn_forward.1']
    %12 = vsyncpa [#allocation3], 0
    %13 = vsyncpa [#allocation5], 0
    loop: start=0, step=1, limit=4
    $region2: #{cnn_forward.1} parent=1 // loop_pre_header
      _
    $region3: #{cnn_forward.1} parent=1 // loop_header
      %s15 = sphi 0, %s19
      %p16 = scmp.ge.s32.totalorder %s15, 4
      %s25 = sphi 0, %s27
      %s28 = sphi 0, %s25
      %s29 = sphi 0, %s28
      %s45 = sphi 0, %s29
      %s49 = sphi 0, %s49
      %s51 = sphi 0, %s49
      %s52 = sphi 0, %s51
      %s66 = sphi 0, %s52
      %s70 = sphi 0, %s70
      %s72 = sphi 0, %s70
      %s73 = sphi 0, %s72
      %s87 = sphi 0, %s73
      %s91 = sphi 0, %s91
      %s93 = sphi 0, %s91
      %s94 = sphi 0, %s93
      %s108 = sphi 0, %s94
      %s112 = sphi 0, %s112
      %s114 = sphi 0, %s112
      %s115 = sphi 0, %s114
      %s129 = sphi 0, %s115
      %s133 = sphi 0, %s133
      %s135 = sphi 0, %s133
      %s136 = sphi 0, %s135
      %s150 = sphi 0, %s136
      %s154 = sphi 0, %s154
      %s156 = sphi 0, %s154
      %s157 = sphi 0, %s156
      %s171 = sphi 0, %s157
      %s177 = sphi 0, %s179
      %s180 = sphi 0, %s177
      %s181 = sphi 0, %s180
      %s197 = sphi 0, %s181
    $region4: #{cnn_forward.1} parent=1 // loop_header_branch
      %18 = sbr.rel (%p16) target = $region8
    $region5: #{cnn_forward.1} parent=1 // loop_body
      %s20 = ssub.s32 %s15, 1
      %s21 = ssub.s32 %s15, 2
      %s22 = sadd.s32 %s15, 1
      %s23 = ssub.s32 %s15, %s22
      %p24 = scmp.eq.s32.totalorder %s23, 0
      %s26 = sadd.s32 %s25, 1
      %s27 = scalar_select %p24, %s25, %s26
      %p30 = pneg %p24
      %p31 = scmp.eq.s32.totalorder %s15, 1
      %p32 = por %p30, %p31
      %p33 = scmp.ne.s32.totalorder %s25, %s28
      %p34 = scmp.eq.s32.totalorder %s15, 0
      %p35 = por %p33, %p34
      %p36 = scmp.ne.s32.totalorder %s25, %s28
      %p37 = scmp.eq.s32.totalorder %s20, 1
      %p38 = por %p36, %p37
      %p39 = scmp.ne.s32.totalorder %s28, %s29
      %p40 = scmp.eq.s32.totalorder %s20, 0
      %p41 = por %p39, %p40
      %p42 = scmp.ne.s32.totalorder %s28, %s29
      %p43 = scmp.eq.s32.totalorder %s21, 1
      %p44 = por %p42, %p43
      %p46 = scmp.ne.s32.totalorder %s29, %s45
      %p47 = scmp.eq.s32.totalorder %s21, 0
      %p48 = por %p46, %p47
      %s50 = sadd.s32 %s49, 1
      %p53 = scmp.eq.s32.totalorder %s15, 1
      %p54 = scmp.ne.s32.totalorder %s49, %s51
      %p55 = scmp.eq.s32.totalorder %s15, 0
      %p56 = por %p54, %p55
      %p57 = scmp.ne.s32.totalorder %s49, %s51
      %p58 = scmp.eq.s32.totalorder %s20, 1
      %p59 = por %p57, %p58
      %p60 = scmp.ne.s32.totalorder %s51, %s52
      %p61 = scmp.eq.s32.totalorder %s20, 0
      %p62 = por %p60, %p61
      %p63 = scmp.ne.s32.totalorder %s51, %s52
      %p64 = scmp.eq.s32.totalorder %s21, 1
      %p65 = por %p63, %p64
      %p67 = scmp.ne.s32.totalorder %s52, %s66
      %p68 = scmp.eq.s32.totalorder %s21, 0
      %p69 = por %p67, %p68
      %s71 = sadd.s32 %s70, 1
      %p74 = scmp.eq.s32.totalorder %s15, 1
      %p75 = scmp.ne.s32.totalorder %s70, %s72
      %p76 = scmp.eq.s32.totalorder %s15, 0
      %p77 = por %p75, %p76
      %p78 = scmp.ne.s32.totalorder %s70, %s72
      %p79 = scmp.eq.s32.totalorder %s20, 1
      %p80 = por %p78, %p79
      %p81 = scmp.ne.s32.totalorder %s72, %s73
      %p82 = scmp.eq.s32.totalorder %s20, 0
      %p83 = por %p81, %p82
      %p84 = scmp.ne.s32.totalorder %s72, %s73
      %p85 = scmp.eq.s32.totalorder %s21, 1
      %p86 = por %p84, %p85
      %p88 = scmp.ne.s32.totalorder %s73, %s87
      %p89 = scmp.eq.s32.totalorder %s21, 0
      %p90 = por %p88, %p89
      %s92 = sadd.s32 %s91, 1
      %p95 = scmp.eq.s32.totalorder %s15, 1
      %p96 = scmp.ne.s32.totalorder %s91, %s93
      %p97 = scmp.eq.s32.totalorder %s15, 0
      %p98 = por %p96, %p97
      %p99 = scmp.ne.s32.totalorder %s91, %s93
      %p100 = scmp.eq.s32.totalorder %s20, 1
      %p101 = por %p99, %p100
      %p102 = scmp.ne.s32.totalorder %s93, %s94
      %p103 = scmp.eq.s32.totalorder %s20, 0
      %p104 = por %p102, %p103
      %p105 = scmp.ne.s32.totalorder %s93, %s94
      %p106 = scmp.eq.s32.totalorder %s21, 1
      %p107 = por %p105, %p106
      %p109 = scmp.ne.s32.totalorder %s94, %s108
      %p110 = scmp.eq.s32.totalorder %s21, 0
      %p111 = por %p109, %p110
      %s113 = sadd.s32 %s112, 1
      %p116 = scmp.eq.s32.totalorder %s15, 1
      %p117 = scmp.ne.s32.totalorder %s112, %s114
      %p118 = scmp.eq.s32.totalorder %s15, 0
      %p119 = por %p117, %p118
      %p120 = scmp.ne.s32.totalorder %s112, %s114
      %p121 = scmp.eq.s32.totalorder %s20, 1
      %p122 = por %p120, %p121
      %p123 = scmp.ne.s32.totalorder %s114, %s115
      %p124 = scmp.eq.s32.totalorder %s20, 0
      %p125 = por %p123, %p124
      %p126 = scmp.ne.s32.totalorder %s114, %s115
      %p127 = scmp.eq.s32.totalorder %s21, 1
      %p128 = por %p126, %p127
      %p130 = scmp.ne.s32.totalorder %s115, %s129
      %p131 = scmp.eq.s32.totalorder %s21, 0
      %p132 = por %p130, %p131
      %s134 = sadd.s32 %s133, 1
      %p137 = scmp.eq.s32.totalorder %s15, 1
      %p138 = scmp.ne.s32.totalorder %s133, %s135
      %p139 = scmp.eq.s32.totalorder %s15, 0
      %p140 = por %p138, %p139
      %p141 = scmp.ne.s32.totalorder %s133, %s135
      %p142 = scmp.eq.s32.totalorder %s20, 1
      %p143 = por %p141, %p142
      %p144 = scmp.ne.s32.totalorder %s135, %s136
      %p145 = scmp.eq.s32.totalorder %s20, 0
      %p146 = por %p144, %p145
      %p147 = scmp.ne.s32.totalorder %s135, %s136
      %p148 = scmp.eq.s32.totalorder %s21, 1
      %p149 = por %p147, %p148
      %p151 = scmp.ne.s32.totalorder %s136, %s150
      %p152 = scmp.eq.s32.totalorder %s21, 0
      %p153 = por %p151, %p152
      %s155 = sadd.s32 %s154, 1
      %p158 = scmp.eq.s32.totalorder %s15, 1
      %p159 = scmp.ne.s32.totalorder %s154, %s156
      %p160 = scmp.eq.s32.totalorder %s15, 0
      %p161 = por %p159, %p160
      %p162 = scmp.ne.s32.totalorder %s154, %s156
      %p163 = scmp.eq.s32.totalorder %s20, 1
      %p164 = por %p162, %p163
      %p165 = scmp.ne.s32.totalorder %s156, %s157
      %p166 = scmp.eq.s32.totalorder %s20, 0
      %p167 = por %p165, %p166
      %p168 = scmp.ne.s32.totalorder %s156, %s157
      %p169 = scmp.eq.s32.totalorder %s21, 1
      %p170 = por %p168, %p169
      %p172 = scmp.ne.s32.totalorder %s157, %s171
      %p173 = scmp.eq.s32.totalorder %s21, 0
      %p174 = por %p172, %p173
      %s175 = ssub.s32 %s15, %s22
      %p176 = scmp.eq.s32.totalorder %s175, 0
      %s178 = sadd.s32 %s177, 1
      %s179 = scalar_select %p176, %s177, %s178
      %p182 = pneg %p176
      %p183 = scmp.eq.s32.totalorder %s15, 1
      %p184 = por %p182, %p183
      %p185 = scmp.ne.s32.totalorder %s177, %s180
      %p186 = scmp.eq.s32.totalorder %s15, 0
      %p187 = por %p185, %p186
      %p188 = scmp.ne.s32.totalorder %s177, %s180
      %p189 = scmp.eq.s32.totalorder %s20, 1
      %p190 = por %p188, %p189
      %p191 = scmp.ne.s32.totalorder %s180, %s181
      %p192 = scmp.eq.s32.totalorder %s20, 0
      %p193 = por %p191, %p192
      %p194 = scmp.ne.s32.totalorder %s180, %s181
      %p195 = scmp.eq.s32.totalorder %s21, 1
      %p196 = por %p194, %p195
      %p198 = scmp.ne.s32.totalorder %s181, %s197
      %p199 = scmp.eq.s32.totalorder %s21, 0
      %p200 = por %p198, %p199
      %p201 = scmp.le.s32.totalorder 1, %s15
      %p202 = scmp.lt.s32.totalorder %s15, 3
      %p203 = pnand %p201, %p202
      %p204 = pneg %p203
      // Predicated region
      $region9: #{cnn_forward.1} parent=5 // pred_check
        _
      $region10: #{cnn_forward.1} parent=5 // pred_check_branch
        %206 = sbr.rel (%p203) target = $region12
      $region11: #{cnn_forward.1} parent=5 // pred_region
        %s207 = ssub.s32 %s15, 1
        // Predicated region
        $region13: #{cnn_forward.1} parent=11 // pred_check
          %p208 = pneg %p62
        $region14: #{cnn_forward.1} parent=11 // pred_check_branch
          %210 = sbr.rel (%p208) target = $region16
        $region15: #{cnn_forward.1} parent=11 // pred_region
          %s212 = ssub.s32 19200, 19200
          %213 = vsyncadd [#allocation3], %s212
          %s214 = sshll.u32 [#allocation2], 4
          %s215 = int_to_ptr.vmem [resolvable:$true] %s214
          %220 = dma.hbm_to_vmem [thread:$0]  %s1, 19200, %s215, [#allocation3], 256, 256, 16
        $region16: #{cnn_forward.1} parent=11 // pred_fallthru
          _
        // Predicated region
        $region17: #{cnn_forward.1} parent=11 // pred_check
          %p221 = pneg %p83
        $region18: #{cnn_forward.1} parent=11 // pred_check_branch
          %223 = sbr.rel (%p221) target = $region20
        $region19: #{cnn_forward.1} parent=11 // pred_region
          _
        $region20: #{cnn_forward.1} parent=11 // pred_fallthru
          _
        // Predicated region
        $region21: #{cnn_forward.1} parent=11 // pred_check
          %p224 = pneg %p104
        $region22: #{cnn_forward.1} parent=11 // pred_check_branch
          %226 = sbr.rel (%p224) target = $region24
        $region23: #{cnn_forward.1} parent=11 // pred_region
          %s228 = ssub.s32 10240, 10240
          %229 = vsyncadd [#allocation5], %s228
          %s230 = sshll.u32 [#allocation4], 4
          %s231 = int_to_ptr.vmem [resolvable:$true] %s230
          %236 = dma.hbm_to_vmem [thread:$0]  %s3, 10240, %s231, [#allocation5], 64, 64, 4
        $region24: #{cnn_forward.1} parent=11 // pred_fallthru
          _
        // Predicated region
        $region25: #{cnn_forward.1} parent=11 // pred_check
          %p237 = pneg %p125
        $region26: #{cnn_forward.1} parent=11 // pred_check_branch
          %239 = sbr.rel (%p237) target = $region28
        $region27: #{cnn_forward.1} parent=11 // pred_region
          _
        $region28: #{cnn_forward.1} parent=11 // pred_fallthru
          _
        // Predicated region
        $region29: #{cnn_forward.1} parent=11 // pred_check
          %p240 = pneg %p146
        $region30: #{cnn_forward.1} parent=11 // pred_check_branch
          %242 = sbr.rel (%p240) target = $region32
        $region31: #{cnn_forward.1} parent=11 // pred_region
          _
        $region32: #{cnn_forward.1} parent=11 // pred_fallthru
          _
        // Predicated region
        $region33: #{cnn_forward.1} parent=11 // pred_check
          %p243 = pneg %p167
        $region34: #{cnn_forward.1} parent=11 // pred_check_branch
          %245 = sbr.rel (%p243) target = $region36
        $region35: #{cnn_forward.1} parent=11 // pred_region
          _
        $region36: #{cnn_forward.1} parent=11 // pred_fallthru
          _
      $region12: #{cnn_forward.1} parent=5 // pred_fallthru
        _
      %p246 = scmp.lt.s32.totalorder %s15, 2
      // Predicated region
      $region37: #{cnn_forward.1} parent=5 // pred_check
        %p247 = pneg %p246
      $region38: #{cnn_forward.1} parent=5 // pred_check_branch
        %249 = sbr.rel (%p247) target = $region40
      $region39: #{cnn_forward.1} parent=5 // pred_region
        // Predicated region
        $region41: #{cnn_forward.1} parent=39 // pred_check
          %p250 = pneg %p35
        $region42: #{cnn_forward.1} parent=39 // pred_check_branch
          %252 = sbr.rel (%p250) target = $region44
        $region43: #{cnn_forward.1} parent=39 // pred_region
          %p253 = scmp.lt.s32.totalorder %s15, 1
          %s254 = scalar_select %p253, %s15, 1
          %s255 = smul.addr %s254, 7
          %s256 = smul.addr %s255, 4
          %s257 = scalar_lea.vmem %s0, %s256
        $region44: #{cnn_forward.1} parent=39 // pred_fallthru
          _
      $region40: #{cnn_forward.1} parent=5 // pred_fallthru
        _
      %p258 = scmp.le.s32.totalorder 1, %s15
      %p259 = scmp.lt.s32.totalorder %s15, 3
      %p260 = pnand %p258, %p259
      %p261 = pneg %p260
      // Predicated region
      $region45: #{cnn_forward.1} parent=5 // pred_check
        _
      $region46: #{cnn_forward.1} parent=5 // pred_check_branch
        %263 = sbr.rel (%p260) target = $region48
      $region47: #{cnn_forward.1} parent=5 // pred_region
        %s264 = ssub.s32 %s15, 1
        // Predicated region
        $region49: #{cnn_forward.1} parent=47 // pred_check
          %p265 = pneg %p62
        $region50: #{cnn_forward.1} parent=47 // pred_check_branch
          %267 = sbr.rel (%p265) target = $region52
        $region51: #{cnn_forward.1} parent=47 // pred_region
          %268 = dma.done [#allocation3], 19200
        $region52: #{cnn_forward.1} parent=47 // pred_fallthru
          _
        // Predicated region
        $region53: #{cnn_forward.1} parent=47 // pred_check
          %p269 = pneg %p104
        $region54: #{cnn_forward.1} parent=47 // pred_check_branch
          %271 = sbr.rel (%p269) target = $region56
        $region55: #{cnn_forward.1} parent=47 // pred_region
          %272 = dma.done [#allocation5], 10240
        $region56: #{cnn_forward.1} parent=47 // pred_fallthru
          _
        %p273 = scmp.lt.s32.totalorder %s20, 1
        %s274 = scalar_select %p273, %s20, 1
        %s275 = smul.addr %s274, 7
        %s276 = smul.addr %s275, 4
        %s277 = scalar_lea.vmem %s0, %s276
        %p278 = pneg %p41
        %p279 = pneg %p38
        %p280 = pneg %p62
        %p281 = pneg %p59
        %p282 = pneg %p83
        %p283 = pneg %p80
        %p284 = pneg %p104
        %p285 = pneg %p101
        %p286 = pneg %p125
        %p287 = pneg %p122
        %p288 = pneg %p146
        %p289 = pneg %p143
        %p290 = pneg %p167
        %p291 = pneg %p164
        %p292 = pneg %p193
        %p293 = pneg %p190
        %p294 = scmp.lt.s32.totalorder %s20, 1
        %s295 = scalar_select %p294, %s20, 1
        %s296 = smul.addr %s295, 8
        %s297 = scalar_lea.vmem %s7, %s296
        %p298 = scmp.lt.s32.totalorder %s20, 1
        %s299 = scalar_select %p298, %s20, 1
        %s300 = smul.addr %s299, 7
        %s301 = smul.addr %s300, 4
        %s302 = scalar_lea.vmem %s0, %s301
        %p303 = scmp.lt.s32.totalorder %s20, 1
        %s304 = scalar_select %p303, %s20, 1
        %s305 = smul.addr %s304, 8
        %s306 = scalar_lea.vmem %s7, %s305
        %v308 = vld [vmem:[%s302] sm:$0xff]
        %v309 = vld [vmem:[%s302 + $0x8] sm:$0xff]
        %v310 = vld [vmem:[%s302 + $0x10] sm:$0xff]
        %v311 = vld [vmem:[%s302 + $0x18] sm:$0xf]
        %v313 = vunpack.c.l.b16 %v308
        %v314 = vunpack.c.h.b16 %v308
        %v315 = vpack.c.b16 %v313, %v313
        %v316 = vpack.c.b16 %v314, %v314
        %v318 = vunpack.c.l.b16 %v309
        %v319 = vpack.c.b16 %v318, %v318
        %320 = vrot.lane.b32.xlu0 %v315, 44
        %v321 = vpop.permute.xlu0 %320
        %322 = vrot.lane.b32.xlu0 %v316, 44
        %v323 = vpop.permute.xlu0 %322
        %324 = vrot.lane.b32.xlu0 %v319, 44
        %v325 = vpop.permute.xlu0 %324
        %vm326 = vcmask 359424
        %v327 = vsel %vm326, %v321, %v323
        %v328 = vsel %vm326, %v323, %v325
        %329 = vrot.lane.b32.xlu0 %v316, 88
        %v330 = vpop.permute.xlu0 %329
        %331 = vrot.lane.b32.xlu0 %v319, 88
        %v332 = vpop.permute.xlu0 %331
        %vm333 = vcmask 719872
        %v334 = vsel %vm333, %v330, %v332
        %v335 = vunpack.c.h.b16 %v309
        %v336 = vpack.c.b16 %v335, %v335
        %337 = vrot.lane.b32.xlu0 %v316, 4
        %v338 = vpop.permute.xlu0 %337
        %339 = vrot.lane.b32.xlu0 %v319, 4
        %v340 = vpop.permute.xlu0 %339
        %341 = vrot.lane.b32.xlu0 %v336, 4
        %v342 = vpop.permute.xlu0 %341
        %vm343 = vcmask 31744
        %v344 = vsel %vm343, %v338, %v340
        %v345 = vsel %vm343, %v340, %v342
        %v347 = vunpack.c.l.b16 %v310
        %v348 = vpack.c.b16 %v347, %v347
        %349 = vrot.lane.b32.xlu0 %v319, 48
        %v350 = vpop.permute.xlu0 %349
        %351 = vrot.lane.b32.xlu0 %v336, 48
        %v352 = vpop.permute.xlu0 %351
        %353 = vrot.lane.b32.xlu0 %v348, 48
        %v354 = vpop.permute.xlu0 %353
        %vm355 = vcmask 392192
        %v356 = vsel %vm355, %v350, %v352
        %v357 = vsel %vm355, %v352, %v354
        %358 = vrot.lane.b32.xlu0 %v336, 92
        %v359 = vpop.permute.xlu0 %358
        %360 = vrot.lane.b32.xlu0 %v348, 92
        %v361 = vpop.permute.xlu0 %360
        %vm362 = vcmask 752640
        %v363 = vsel %vm362, %v359, %v361
        %v364 = vunpack.c.h.b16 %v310
        %v365 = vpack.c.b16 %v364, %v364
        %366 = vrot.lane.b32.xlu0 %v336, 8
        %v367 = vpop.permute.xlu0 %366
        %368 = vrot.lane.b32.xlu0 %v348, 8
        %v369 = vpop.permute.xlu0 %368
        %370 = vrot.lane.b32.xlu0 %v365, 8
        %v371 = vpop.permute.xlu0 %370
        %vm372 = vcmask 64512
        %v373 = vsel %vm372, %v367, %v369
        %v374 = vsel %vm372, %v369, %v371
        %v376 = vunpack.c.l.b16 %v311
        %v377 = vpack.c.b16 %v376, %v376
        %378 = vrot.lane.b32.xlu0 %v348, 52
        %v379 = vpop.permute.xlu0 %378
        %380 = vrot.lane.b32.xlu0 %v365, 52
        %v381 = vpop.permute.xlu0 %380
        %382 = vrot.lane.b32.xlu0 %v377, 52
        %v383 = vpop.permute.xlu0 %382
        %vm384 = vcmask 424960
        %v385 = vsel %vm384, %v379, %v381
        %v386 = vsel %vm384, %v381, %v383
        %vm387 = vcmask 1043456
        %v390 = vsel %vm387, %v315, %v327
        %v394 = vsel %vm387, %v316, %v328
        %v397 = vsel %vm387, %v334, %v344
        %v401 = vsel %vm387, %v332, %v345
        %v404 = vsel %vm387, %v356, %v363
        %v408 = vsel %vm387, %v357, %v361
        %v411 = vsel %vm387, %v373, %v385
        %v415 = vsel %vm387, %v374, %v386
        %v416 = vld [vmem:[#allocation2] sm:$0xff]
        %v417 = vld [vmem:[#allocation2 + $0x8] sm:$0xff]
        %v418 = vld [vmem:[#allocation2 + $0x10] sm:$0xff]
        %v419 = vld [vmem:[#allocation2 + $0x18] sm:$0xff]
        %v420 = vld [vmem:[#allocation2 + $0x20] sm:$0xff]
        %v421 = vld [vmem:[#allocation2 + $0x28] sm:$0xff]
        %v422 = vld [vmem:[#allocation2 + $0x30] sm:$0xff]
        %v423 = vld [vmem:[#allocation2 + $0x38] sm:$0xff]
        %v424 = vld [vmem:[#allocation2 + $0x40] sm:$0xff]
        %v425 = vld [vmem:[#allocation2 + $0x48] sm:$0xff]
        %v426 = vld [vmem:[#allocation2 + $0x50] sm:$0xff]
        %v427 = vld [vmem:[#allocation2 + $0x58] sm:$0xff]
        %v428 = vld [vmem:[#allocation2 + $0x60] sm:$0xff]
        %v429 = vld [vmem:[#allocation2 + $0x68] sm:$0xff]
        %v430 = vld [vmem:[#allocation2 + $0x70] sm:$0xff]
        %v431 = vld [vmem:[#allocation2 + $0x78] sm:$0xff]
        %v432 = vld [vmem:[#allocation2 + $0x80] sm:$0xff]
        %v433 = vld [vmem:[#allocation2 + $0x88] sm:$0xff]
        %v434 = vld [vmem:[#allocation2 + $0x90] sm:$0xff]
        %v435 = vld [vmem:[#allocation2 + $0x98] sm:$0xff]
        %v436 = vld [vmem:[#allocation2 + $0xa0] sm:$0xff]
        %v437 = vld [vmem:[#allocation2 + $0xa8] sm:$0xff]
        %v438 = vld [vmem:[#allocation2 + $0xb0] sm:$0xff]
        %v439 = vld [vmem:[#allocation2 + $0xb8] sm:$0xff]
        %v440 = vld [vmem:[#allocation2 + $0xc0] sm:$0xff]
        %v441 = vld [vmem:[#allocation2 + $0xc8] sm:$0xff]
        %v442 = vld [vmem:[#allocation2 + $0xd0] sm:$0xff]
        %v443 = vld [vmem:[#allocation2 + $0xd8] sm:$0xff]
        %v444 = vld [vmem:[#allocation2 + $0xe0] sm:$0xff]
        %v445 = vld [vmem:[#allocation2 + $0xe8] sm:$0xff]
        %v446 = vld [vmem:[#allocation2 + $0xf0] sm:$0xff]
        %v447 = vld [vmem:[#allocation2 + $0xf8] sm:$0xff]
        %v448 = vld [vmem:[#allocation2 + $0x100] sm:$0xff]
        %v449 = vld [vmem:[#allocation2 + $0x108] sm:$0xff]
        %v450 = vld [vmem:[#allocation2 + $0x110] sm:$0xff]
        %v451 = vld [vmem:[#allocation2 + $0x118] sm:$0xff]
        %v452 = vld [vmem:[#allocation2 + $0x120] sm:$0xff]
        %v453 = vld [vmem:[#allocation2 + $0x128] sm:$0xff]
        %v454 = vld [vmem:[#allocation2 + $0x130] sm:$0xff]
        %v455 = vld [vmem:[#allocation2 + $0x138] sm:$0xff]
        %v456 = vld [vmem:[#allocation2 + $0x140] sm:$0xff]
        %v457 = vld [vmem:[#allocation2 + $0x148] sm:$0xff]
        %v458 = vld [vmem:[#allocation2 + $0x150] sm:$0xff]
        %v459 = vld [vmem:[#allocation2 + $0x158] sm:$0xff]
        %v460 = vld [vmem:[#allocation2 + $0x160] sm:$0xff]
        %v461 = vld [vmem:[#allocation2 + $0x168] sm:$0xff]
        %v462 = vld [vmem:[#allocation2 + $0x170] sm:$0xff]
        %v463 = vld [vmem:[#allocation2 + $0x178] sm:$0xff]
        %v464 = vld [vmem:[#allocation2 + $0x180] sm:$0x33]
        %v465 = vld [vmem:[#allocation2 + $0x188] sm:$0x33]
        %v516 = vunpack.c.l.b16 %v416
        %v517 = vunpack.c.h.b16 %v416
        %v518 = vunpack.c.l.b16 %v417
        %v519 = vunpack.c.h.b16 %v417
        %v520 = vunpack.c.l.b16 %v418
        %v521 = vunpack.c.h.b16 %v418
        %v522 = vunpack.c.l.b16 %v419
        %v523 = vunpack.c.h.b16 %v419
        %v524 = vunpack.c.l.b16 %v420
        %v525 = vunpack.c.h.b16 %v420
        %v526 = vunpack.c.l.b16 %v421
        %v527 = vunpack.c.h.b16 %v421
        %v528 = vunpack.c.l.b16 %v422
        %v529 = vunpack.c.h.b16 %v422
        %v530 = vunpack.c.l.b16 %v423
        %v531 = vunpack.c.h.b16 %v423
        %v532 = vunpack.c.l.b16 %v424
        %v533 = vunpack.c.h.b16 %v424
        %v534 = vunpack.c.l.b16 %v425
        %v535 = vunpack.c.h.b16 %v425
        %v536 = vunpack.c.l.b16 %v426
        %v537 = vunpack.c.h.b16 %v426
        %v538 = vunpack.c.l.b16 %v427
        %v539 = vunpack.c.h.b16 %v427
        %v540 = vunpack.c.l.b16 %v428
        %v541 = vunpack.c.h.b16 %v428
        %v542 = vunpack.c.l.b16 %v429
        %v543 = vunpack.c.h.b16 %v429
        %v544 = vunpack.c.l.b16 %v430
        %v545 = vunpack.c.h.b16 %v430
        %v546 = vunpack.c.l.b16 %v431
        %v547 = vunpack.c.h.b16 %v431
        %v548 = vunpack.c.l.b16 %v432
        %v549 = vunpack.c.h.b16 %v432
        %v550 = vunpack.c.l.b16 %v433
        %v551 = vunpack.c.h.b16 %v433
        %v552 = vunpack.c.l.b16 %v434
        %v553 = vunpack.c.h.b16 %v434
        %v554 = vunpack.c.l.b16 %v435
        %v555 = vunpack.c.h.b16 %v435
        %v556 = vunpack.c.l.b16 %v436
        %v557 = vunpack.c.h.b16 %v436
        %v558 = vunpack.c.l.b16 %v437
        %v559 = vunpack.c.h.b16 %v437
        %v560 = vunpack.c.l.b16 %v438
        %v561 = vunpack.c.h.b16 %v438
        %v562 = vunpack.c.l.b16 %v439
        %v563 = vunpack.c.h.b16 %v439
        %v564 = vunpack.c.l.b16 %v440
        %v565 = vunpack.c.h.b16 %v440
        %v566 = vunpack.c.l.b16 %v441
        %v567 = vunpack.c.h.b16 %v441
        %v568 = vunpack.c.l.b16 %v442
        %v569 = vunpack.c.h.b16 %v442
        %v570 = vunpack.c.l.b16 %v443
        %v571 = vunpack.c.h.b16 %v443
        %v572 = vunpack.c.l.b16 %v444
        %v573 = vunpack.c.h.b16 %v444
        %v574 = vunpack.c.l.b16 %v445
        %v575 = vunpack.c.h.b16 %v445
        %v576 = vunpack.c.l.b16 %v446
        %v577 = vunpack.c.h.b16 %v446
        %v578 = vunpack.c.l.b16 %v447
        %v579 = vunpack.c.h.b16 %v447
        %v580 = vunpack.c.l.b16 %v448
        %v581 = vunpack.c.h.b16 %v448
        %v582 = vunpack.c.l.b16 %v449
        %v583 = vunpack.c.h.b16 %v449
        %v584 = vunpack.c.l.b16 %v450
        %v585 = vunpack.c.h.b16 %v450
        %v586 = vunpack.c.l.b16 %v451
        %v587 = vunpack.c.h.b16 %v451
        %v588 = vunpack.c.l.b16 %v452
        %v589 = vunpack.c.h.b16 %v452
        %v590 = vunpack.c.l.b16 %v453
        %v591 = vunpack.c.h.b16 %v453
        %v592 = vunpack.c.l.b16 %v454
        %v593 = vunpack.c.h.b16 %v454
        %v594 = vunpack.c.l.b16 %v455
        %v595 = vunpack.c.h.b16 %v455
        %v596 = vunpack.c.l.b16 %v456
        %v597 = vunpack.c.h.b16 %v456
        %v598 = vunpack.c.l.b16 %v457
        %v599 = vunpack.c.h.b16 %v457
        %v600 = vunpack.c.l.b16 %v458
        %v601 = vunpack.c.h.b16 %v458
        %v602 = vunpack.c.l.b16 %v459
        %v603 = vunpack.c.h.b16 %v459
        %v604 = vunpack.c.l.b16 %v460
        %v605 = vunpack.c.h.b16 %v460
        %v606 = vunpack.c.l.b16 %v461
        %v607 = vunpack.c.h.b16 %v461
        %v608 = vunpack.c.l.b16 %v462
        %v609 = vunpack.c.h.b16 %v462
        %v610 = vunpack.c.l.b16 %v463
        %v611 = vunpack.c.h.b16 %v463
        %v612 = vunpack.c.l.b16 %v464
        %v613 = vunpack.c.h.b16 %v464
        %v614 = vunpack.c.l.b16 %v465
        %v615 = vunpack.c.h.b16 %v465
        %v616 = vpack.c.b16 %v520, %v516
        %v617 = vpack.c.b16 %v521, %v517
        %v618 = vpack.c.b16 %v522, %v518
        %v619 = vpack.c.b16 %v523, %v519
        %v620 = vpack.c.b16 %v528, %v524
        %v621 = vpack.c.b16 %v529, %v525
        %v622 = vpack.c.b16 %v530, %v526
        %v623 = vpack.c.b16 %v531, %v527
        %v624 = vpack.c.b16 %v536, %v532
        %v625 = vpack.c.b16 %v537, %v533
        %v626 = vpack.c.b16 %v538, %v534
        %v627 = vpack.c.b16 %v539, %v535
        %v628 = vpack.c.b16 %v544, %v540
        %v629 = vpack.c.b16 %v545, %v541
        %v630 = vpack.c.b16 %v546, %v542
        %v631 = vpack.c.b16 %v547, %v543
        %v632 = vpack.c.b16 %v552, %v548
        %v633 = vpack.c.b16 %v553, %v549
        %v634 = vpack.c.b16 %v554, %v550
        %v635 = vpack.c.b16 %v555, %v551
        %v636 = vpack.c.b16 %v560, %v556
        %v637 = vpack.c.b16 %v561, %v557
        %v638 = vpack.c.b16 %v562, %v558
        %v639 = vpack.c.b16 %v563, %v559
        %v640 = vpack.c.b16 %v568, %v564
        %v641 = vpack.c.b16 %v569, %v565
        %v642 = vpack.c.b16 %v570, %v566
        %v643 = vpack.c.b16 %v571, %v567
        %v644 = vpack.c.b16 %v576, %v572
        %v645 = vpack.c.b16 %v577, %v573
        %v646 = vpack.c.b16 %v578, %v574
        %v647 = vpack.c.b16 %v579, %v575
        %v648 = vpack.c.b16 %v584, %v580
        %v649 = vpack.c.b16 %v585, %v581
        %v650 = vpack.c.b16 %v586, %v582
        %v651 = vpack.c.b16 %v587, %v583
        %v652 = vpack.c.b16 %v592, %v588
        %v653 = vpack.c.b16 %v593, %v589
        %v654 = vpack.c.b16 %v594, %v590
        %v655 = vpack.c.b16 %v595, %v591
        %v656 = vpack.c.b16 %v600, %v596
        %v657 = vpack.c.b16 %v601, %v597
        %v658 = vpack.c.b16 %v602, %v598
        %v659 = vpack.c.b16 %v603, %v599
        %v660 = vpack.c.b16 %v608, %v604
        %v661 = vpack.c.b16 %v609, %v605
        %v662 = vpack.c.b16 %v610, %v606
        %v663 = vpack.c.b16 %v611, %v607
        %v664 = vpack.c.b16 %v612, %v612
        %v665 = vpack.c.b16 %v613, %v613
        %v666 = vpack.c.b16 %v614, %v614
        %v667 = vpack.c.b16 %v615, %v615
        %vm716 = vcmask 556032
        %v717 = vsel %vm716, %v394, 0
        %v719 = vsel %vm716, %v401, 0
        %v721 = vsel %vm716, %v408, 0
        %v723 = vsel %vm716, %v415, 0
        %vm725 = vcmask 1041408
        %v727 = vsel %vm725, %v664, 0
        %v730 = vsel %vm725, %v665, 0
        %v733 = vsel %vm725, %v666, 0
        %v736 = vsel %vm725, %v667, 0
        %738 = vmatprep.subr.bf16.mxu0 %v617
        %739 = vmatpush1.bf16.msra.mxu0 %v616
        %740 = vmatprep.subr.bf16.mxu0 %v621
        %741 = vmatpush1.bf16.msra.mxu0 %v620
        %742 = vmatprep.subr.bf16.mxu0 %v625
        %743 = vmatpush1.bf16.msra.mxu0 %v624
        %744 = vmatprep.subr.bf16.mxu0 %v629
        %745 = vmatpush1.bf16.msra.mxu0 %v628
        %746 = vmatprep.subr.bf16.mxu0 %v633
        %747 = vmatpush1.bf16.msra.mxu0 %v632
        %748 = vmatprep.subr.bf16.mxu0 %v637
        %749 = vmatpush1.bf16.msra.mxu0 %v636
        %750 = vmatprep.subr.bf16.mxu0 %v641
        %751 = vmatpush1.bf16.msra.mxu0 %v640
        %752 = vmatprep.subr.bf16.mxu0 %v645
        %753 = vmatpush1.bf16.msra.mxu0 %v644
        %754 = vmatprep.subr.bf16.mxu0 %v649
        %755 = vmatpush1.bf16.msra.mxu0 %v648
        %756 = vmatprep.subr.bf16.mxu0 %v653
        %757 = vmatpush1.bf16.msra.mxu0 %v652
        %758 = vmatprep.subr.bf16.mxu0 %v657
        %759 = vmatpush1.bf16.msra.mxu0 %v656
        %760 = vmatprep.subr.bf16.mxu0 %v661
        %761 = vmatpush1.bf16.msra.mxu0 %v660
        %762 = vmatprep.subr.bf16.mxu0 %v730
        %763 = vmatpush1.bf16.msra.mxu0 %v727
        %764 = vmatprep.subr.bf16.mxu0 0
        %765 = vmatpush1.bf16.msra.mxu0 0
        %766 = vmatprep.subr.bf16.mxu0 0
        %767 = vmatpush1.bf16.msra.mxu0 0
        %768 = vmatprep.subr.bf16.mxu0 0
        %769 = vmatpush1.bf16.msra.mxu0 0
        %770 = vmatprep.mubr.bf16.mxu0 %v717
        %771 = vmatmul.mubr.bf16.gmra.mrb[0].mxu0 %v390
        %v772 = vpop.f32.mrb[0].mxu0
        %v773 = vadd.f32 0.0, %v772
        %v774 = vpop.f32.mrb[0].mxu0
        %v775 = vadd.f32 0.0, %v774
        %v776 = vpop.f32.mrb[0].mxu0
        %v777 = vadd.f32 0.0, %v776
        %v778 = vpop.f32.mrb[0].mxu0
        %v779 = vadd.f32 0.0, %v778
        %780 = vmatprep.mubr.bf16.mxu0 %v719
        %781 = vmatmul.mubr.bf16.gmra.mrb[0].mxu0 %v397
        %v782 = vpop.f32.mrb[0].mxu0
        %v783 = vadd.f32 0.0, %v782
        %v784 = vpop.f32.mrb[0].mxu0
        %v785 = vadd.f32 0.0, %v784
        %v786 = vpop.f32.mrb[0].mxu0
        %v787 = vadd.f32 0.0, %v786
        %v788 = vpop.f32.mrb[0].mxu0
        %v789 = vadd.f32 0.0, %v788
        %790 = vmatprep.mubr.bf16.mxu0 %v721
        %791 = vmatmul.mubr.bf16.gmra.mrb[0].mxu0 %v404
        %v792 = vpop.f32.mrb[0].mxu0
        %v793 = vadd.f32 0.0, %v792
        %v794 = vpop.f32.mrb[0].mxu0
        %v795 = vadd.f32 0.0, %v794
        %v796 = vpop.f32.mrb[0].mxu0
        %v797 = vadd.f32 0.0, %v796
        %v798 = vpop.f32.mrb[0].mxu0
        %v799 = vadd.f32 0.0, %v798
        %800 = vmatprep.mubr.bf16.mxu0 %v723
        %801 = vmatmul.mubr.bf16.gmra.mrb[0].mxu0 %v411
        %v802 = vpop.f32.mrb[0].mxu0
        %v803 = vadd.f32 0.0, %v802
        %v804 = vpop.f32.mrb[0].mxu0
        %v805 = vadd.f32 0.0, %v804
        %v806 = vpop.f32.mrb[0].mxu0
        %v807 = vadd.f32 0.0, %v806
        %v808 = vpop.f32.mrb[0].mxu0
        %v809 = vadd.f32 0.0, %v808
        %810 = vdwg.mxu0
        %811 = vmatprep.subr.bf16.mxu0 %v619
        %812 = vmatpush1.bf16.msra.mxu0 %v618
        %813 = vmatprep.subr.bf16.mxu0 %v623
        %814 = vmatpush1.bf16.msra.mxu0 %v622
        %815 = vmatprep.subr.bf16.mxu0 %v627
        %816 = vmatpush1.bf16.msra.mxu0 %v626
        %817 = vmatprep.subr.bf16.mxu0 %v631
        %818 = vmatpush1.bf16.msra.mxu0 %v630
        %819 = vmatprep.subr.bf16.mxu0 %v635
        %820 = vmatpush1.bf16.msra.mxu0 %v634
        %821 = vmatprep.subr.bf16.mxu0 %v639
        %822 = vmatpush1.bf16.msra.mxu0 %v638
        %823 = vmatprep.subr.bf16.mxu0 %v643
        %824 = vmatpush1.bf16.msra.mxu0 %v642
        %825 = vmatprep.subr.bf16.mxu0 %v647
        %826 = vmatpush1.bf16.msra.mxu0 %v646
        %827 = vmatprep.subr.bf16.mxu0 %v651
        %828 = vmatpush1.bf16.msra.mxu0 %v650
        %829 = vmatprep.subr.bf16.mxu0 %v655
        %830 = vmatpush1.bf16.msra.mxu0 %v654
        %831 = vmatprep.subr.bf16.mxu0 %v659
        %832 = vmatpush1.bf16.msra.mxu0 %v658
        %833 = vmatprep.subr.bf16.mxu0 %v663
        %834 = vmatpush1.bf16.msra.mxu0 %v662
        %835 = vmatprep.subr.bf16.mxu0 %v736
        %836 = vmatpush1.bf16.msra.mxu0 %v733
        %837 = vmatprep.subr.bf16.mxu0 0
        %838 = vmatpush1.bf16.msra.mxu0 0
        %839 = vmatprep.subr.bf16.mxu0 0
        %840 = vmatpush1.bf16.msra.mxu0 0
        %841 = vmatprep.subr.bf16.mxu0 0
        %842 = vmatpush1.bf16.msra.mxu0 0
        %843 = vmatprep.mubr.bf16.mxu0 %v717
        %844 = vmatmul.mubr.bf16.gmra.mrb[0].mxu0 %v390
        %v845 = vpop.f32.mrb[0].mxu0
        %v846 = vadd.f32 0.0, %v845
        %v847 = vpop.f32.mrb[0].mxu0
        %v848 = vadd.f32 0.0, %v847
        %v849 = vpop.f32.mrb[0].mxu0
        %v850 = vadd.f32 0.0, %v849
        %v851 = vpop.f32.mrb[0].mxu0
        %v852 = vadd.f32 0.0, %v851
        %853 = vmatprep.mubr.bf16.mxu0 %v719
        %854 = vmatmul.mubr.bf16.gmra.mrb[0].mxu0 %v397
        %v855 = vpop.f32.mrb[0].mxu0
        %v856 = vadd.f32 0.0, %v855
        %v857 = vpop.f32.mrb[0].mxu0
        %v858 = vadd.f32 0.0, %v857
        %v859 = vpop.f32.mrb[0].mxu0
        %v860 = vadd.f32 0.0, %v859
        %v861 = vpop.f32.mrb[0].mxu0
        %v862 = vadd.f32 0.0, %v861
        %863 = vmatprep.mubr.bf16.mxu0 %v721
        %864 = vmatmul.mubr.bf16.gmra.mrb[0].mxu0 %v404
        %v865 = vpop.f32.mrb[0].mxu0
        %v866 = vadd.f32 0.0, %v865
        %v867 = vpop.f32.mrb[0].mxu0
        %v868 = vadd.f32 0.0, %v867
        %v869 = vpop.f32.mrb[0].mxu0
        %v870 = vadd.f32 0.0, %v869
        %v871 = vpop.f32.mrb[0].mxu0
        %v872 = vadd.f32 0.0, %v871
        %873 = vmatprep.mubr.bf16.mxu0 %v723
        %874 = vmatmul.mubr.bf16.gmra.mrb[0].mxu0 %v411
        %v875 = vpop.f32.mrb[0].mxu0
        %v876 = vadd.f32 0.0, %v875
        %v877 = vpop.f32.mrb[0].mxu0
        %v878 = vadd.f32 0.0, %v877
        %v879 = vpop.f32.mrb[0].mxu0
        %v880 = vadd.f32 0.0, %v879
        %v881 = vpop.f32.mrb[0].mxu0
        %v882 = vadd.f32 0.0, %v881
        %883 = vdwg.mxu0
        %900 = vrot.lane.b32.xlu0 %v775, 96
        %v901 = vpop.permute.xlu0 %900
        %902 = vrot.lane.b32.xlu0 %v846, 96
        %v903 = vpop.permute.xlu0 %902
        %904 = vrot.lane.b32.xlu0 %v779, 96
        %v905 = vpop.permute.xlu0 %904
        %906 = vrot.lane.b32.xlu0 %v850, 96
        %v907 = vpop.permute.xlu0 %906
        %908 = vrot.lane.b32.xlu0 %v785, 96
        %v909 = vpop.permute.xlu0 %908
        %910 = vrot.lane.b32.xlu0 %v856, 96
        %v911 = vpop.permute.xlu0 %910
        %912 = vrot.lane.b32.xlu0 %v789, 96
        %v913 = vpop.permute.xlu0 %912
        %914 = vrot.lane.b32.xlu0 %v860, 96
        %v915 = vpop.permute.xlu0 %914
        %916 = vrot.lane.b32.xlu0 %v795, 96
        %v917 = vpop.permute.xlu0 %916
        %918 = vrot.lane.b32.xlu0 %v866, 96
        %v919 = vpop.permute.xlu0 %918
        %920 = vrot.lane.b32.xlu0 %v799, 96
        %v921 = vpop.permute.xlu0 %920
        %922 = vrot.lane.b32.xlu0 %v870, 96
        %v923 = vpop.permute.xlu0 %922
        %924 = vrot.lane.b32.xlu0 %v805, 96
        %v925 = vpop.permute.xlu0 %924
        %926 = vrot.lane.b32.xlu0 %v876, 96
        %v927 = vpop.permute.xlu0 %926
        %928 = vrot.lane.b32.xlu0 %v809, 96
        %v929 = vpop.permute.xlu0 %928
        %930 = vrot.lane.b32.xlu0 %v880, 96
        %v931 = vpop.permute.xlu0 %930
        %vm932 = vcmask 785408
        %v933 = vsel %vm932, %v901, %v903
        %v934 = vsel %vm932, %v905, %v907
        %v935 = vsel %vm932, %v909, %v911
        %v936 = vsel %vm932, %v913, %v915
        %v937 = vsel %vm932, %v917, %v919
        %v938 = vsel %vm932, %v921, %v923
        %v939 = vsel %vm932, %v925, %v927
        %v940 = vsel %vm932, %v929, %v931
        %v957 = vmax.f32 %v773, %v933
        %v958 = vmax.f32 %v775, %v903
        %v959 = vmax.f32 %v777, %v934
        %v960 = vmax.f32 %v779, %v907
        %v961 = vmax.f32 %v783, %v935
        %v962 = vmax.f32 %v785, %v911
        %v963 = vmax.f32 %v787, %v936
        %v964 = vmax.f32 %v789, %v915
        %v965 = vmax.f32 %v793, %v937
        %v966 = vmax.f32 %v795, %v919
        %v967 = vmax.f32 %v797, %v938
        %v968 = vmax.f32 %v799, %v923
        %v969 = vmax.f32 %v803, %v939
        %v970 = vmax.f32 %v805, %v927
        %v971 = vmax.f32 %v807, %v940
        %v972 = vmax.f32 %v809, %v931
        %981 = vrot.lane.b32.xlu0 %v846, 64
        %v982 = vpop.permute.xlu0 %981
        %983 = vrot.lane.b32.xlu0 %v848, 64
        %v984 = vpop.permute.xlu0 %983
        %985 = vrot.lane.b32.xlu0 %v850, 64
        %v986 = vpop.permute.xlu0 %985
        %987 = vrot.lane.b32.xlu0 %v852, 64
        %v988 = vpop.permute.xlu0 %987
        %989 = vrot.lane.b32.xlu0 %v856, 64
        %v990 = vpop.permute.xlu0 %989
        %991 = vrot.lane.b32.xlu0 %v858, 64
        %v992 = vpop.permute.xlu0 %991
        %993 = vrot.lane.b32.xlu0 %v860, 64
        %v994 = vpop.permute.xlu0 %993
        %995 = vrot.lane.b32.xlu0 %v862, 64
        %v996 = vpop.permute.xlu0 %995
        %997 = vrot.lane.b32.xlu0 %v866, 64
        %v998 = vpop.permute.xlu0 %997
        %999 = vrot.lane.b32.xlu0 %v868, 64
        %v1000 = vpop.permute.xlu0 %999
        %1001 = vrot.lane.b32.xlu0 %v870, 64
        %v1002 = vpop.permute.xlu0 %1001
        %1003 = vrot.lane.b32.xlu0 %v872, 64
        %v1004 = vpop.permute.xlu0 %1003
        %1005 = vrot.lane.b32.xlu0 %v876, 64
        %v1006 = vpop.permute.xlu0 %1005
        %1007 = vrot.lane.b32.xlu0 %v878, 64
        %v1008 = vpop.permute.xlu0 %1007
        %1009 = vrot.lane.b32.xlu0 %v880, 64
        %v1010 = vpop.permute.xlu0 %1009
        %1011 = vrot.lane.b32.xlu0 %v882, 64
        %v1012 = vpop.permute.xlu0 %1011
        %vm1013 = vcmask 523264
        %v1014 = vsel %vm1013, %v982, %v984
        %v1015 = vsel %vm1013, %v986, %v988
        %v1016 = vsel %vm1013, %v990, %v992
        %v1017 = vsel %vm1013, %v994, %v996
        %v1018 = vsel %vm1013, %v998, %v1000
        %v1019 = vsel %vm1013, %v1002, %v1004
        %v1020 = vsel %vm1013, %v1006, %v1008
        %v1021 = vsel %vm1013, %v1010, %v1012
        %v1038 = vmax.f32 %v957, %v1014
        %v1039 = vmax.f32 %v958, %v984
        %v1040 = vmax.f32 %v959, %v1015
        %v1041 = vmax.f32 %v960, %v988
        %v1042 = vmax.f32 %v961, %v1016
        %v1043 = vmax.f32 %v962, %v992
        %v1044 = vmax.f32 %v963, %v1017
        %v1045 = vmax.f32 %v964, %v996
        %v1046 = vmax.f32 %v965, %v1018
        %v1047 = vmax.f32 %v966, %v1000
        %v1048 = vmax.f32 %v967, %v1019
        %v1049 = vmax.f32 %v968, %v1004
        %v1050 = vmax.f32 %v969, %v1020
        %v1051 = vmax.f32 %v970, %v1008
        %v1052 = vmax.f32 %v971, %v1021
        %v1053 = vmax.f32 %v972, %v1012
        %s1054 = scalar_lea.vmem [#allocation2], 400
        %v1055 = vld [vmem:[%s1054] sm:$0xff]
        %v1056 = vld [vmem:[%s1054 + $0x8] sm:$0xff]
        %v1057 = vld [vmem:[%s1054 + $0x10] sm:$0xff]
        %v1058 = vld [vmem:[%s1054 + $0x18] sm:$0xff]
        %v1059 = vld [vmem:[%s1054 + $0x20] sm:$0xff]
        %v1060 = vld [vmem:[%s1054 + $0x28] sm:$0xff]
        %v1061 = vld [vmem:[%s1054 + $0x30] sm:$0xff]
        %v1062 = vld [vmem:[%s1054 + $0x38] sm:$0xff]
        %v1063 = vld [vmem:[%s1054 + $0x40] sm:$0xff]
        %v1064 = vld [vmem:[%s1054 + $0x48] sm:$0xff]
        %v1065 = vld [vmem:[%s1054 + $0x50] sm:$0xff]
        %v1066 = vld [vmem:[%s1054 + $0x58] sm:$0xff]
        %v1067 = vld [vmem:[%s1054 + $0x60] sm:$0xff]
        %v1068 = vld [vmem:[%s1054 + $0x68] sm:$0xff]
        %v1069 = vld [vmem:[%s1054 + $0x70] sm:$0xff]
        %v1070 = vld [vmem:[%s1054 + $0x78] sm:$0xff]
        %v1071 = vld [vmem:[%s1054 + $0x80] sm:$0xff]
        %v1072 = vld [vmem:[%s1054 + $0x88] sm:$0xff]
        %v1073 = vld [vmem:[%s1054 + $0x90] sm:$0xff]
        %v1074 = vld [vmem:[%s1054 + $0x98] sm:$0xff]
        %v1075 = vld [vmem:[%s1054 + $0xa0] sm:$0xff]
        %v1076 = vld [vmem:[%s1054 + $0xa8] sm:$0xff]
        %v1077 = vld [vmem:[%s1054 + $0xb0] sm:$0xff]
        %v1078 = vld [vmem:[%s1054 + $0xb8] sm:$0xff]
        %v1079 = vld [vmem:[%s1054 + $0xc0] sm:$0xff]
        %v1080 = vld [vmem:[%s1054 + $0xc8] sm:$0xff]
        %v1081 = vld [vmem:[%s1054 + $0xd0] sm:$0xff]
        %v1082 = vld [vmem:[%s1054 + $0xd8] sm:$0xff]
        %v1083 = vld [vmem:[%s1054 + $0xe0] sm:$0xff]
        %v1084 = vld [vmem:[%s1054 + $0xe8] sm:$0xff]
        %v1085 = vld [vmem:[%s1054 + $0xf0] sm:$0xff]
        %v1086 = vld [vmem:[%s1054 + $0xf8] sm:$0xff]
        %v1087 = vld [vmem:[%s1054 + $0x100] sm:$0xff]
        %v1088 = vld [vmem:[%s1054 + $0x108] sm:$0xff]
        %v1089 = vld [vmem:[%s1054 + $0x110] sm:$0xff]
        %v1090 = vld [vmem:[%s1054 + $0x118] sm:$0xff]
        %v1091 = vld [vmem:[%s1054 + $0x120] sm:$0xff]
        %v1092 = vld [vmem:[%s1054 + $0x128] sm:$0xff]
        %v1093 = vld [vmem:[%s1054 + $0x130] sm:$0xff]
        %v1094 = vld [vmem:[%s1054 + $0x138] sm:$0xff]
        %v1095 = vld [vmem:[%s1054 + $0x140] sm:$0xff]
        %v1096 = vld [vmem:[%s1054 + $0x148] sm:$0xff]
        %v1097 = vld [vmem:[%s1054 + $0x150] sm:$0xff]
        %v1098 = vld [vmem:[%s1054 + $0x158] sm:$0xff]
        %v1099 = vld [vmem:[%s1054 + $0x160] sm:$0xff]
        %v1100 = vld [vmem:[%s1054 + $0x168] sm:$0xff]
        %v1101 = vld [vmem:[%s1054 + $0x170] sm:$0xff]
        %v1102 = vld [vmem:[%s1054 + $0x178] sm:$0xff]
        %v1103 = vld [vmem:[%s1054 + $0x180] sm:$0x33]
        %v1104 = vld [vmem:[%s1054 + $0x188] sm:$0x33]
        %v1155 = vunpack.c.l.b16 %v1055
        %v1156 = vunpack.c.h.b16 %v1055
        %v1157 = vunpack.c.l.b16 %v1056
        %v1158 = vunpack.c.h.b16 %v1056
        %v1159 = vunpack.c.l.b16 %v1057
        %v1160 = vunpack.c.h.b16 %v1057
        %v1161 = vunpack.c.l.b16 %v1058
        %v1162 = vunpack.c.h.b16 %v1058
        %v1163 = vunpack.c.l.b16 %v1059
        %v1164 = vunpack.c.h.b16 %v1059
        %v1165 = vunpack.c.l.b16 %v1060
        %v1166 = vunpack.c.h.b16 %v1060
        %v1167 = vunpack.c.l.b16 %v1061
        %v1168 = vunpack.c.h.b16 %v1061
        %v1169 = vunpack.c.l.b16 %v1062
        %v1170 = vunpack.c.h.b16 %v1062
        %v1171 = vunpack.c.l.b16 %v1063
        %v1172 = vunpack.c.h.b16 %v1063
        %v1173 = vunpack.c.l.b16 %v1064
        %v1174 = vunpack.c.h.b16 %v1064
        %v1175 = vunpack.c.l.b16 %v1065
        %v1176 = vunpack.c.h.b16 %v1065
        %v1177 = vunpack.c.l.b16 %v1066
        %v1178 = vunpack.c.h.b16 %v1066
        %v1179 = vunpack.c.l.b16 %v1067
        %v1180 = vunpack.c.h.b16 %v1067
        %v1181 = vunpack.c.l.b16 %v1068
        %v1182 = vunpack.c.h.b16 %v1068
        %v1183 = vunpack.c.l.b16 %v1069
        %v1184 = vunpack.c.h.b16 %v1069
        %v1185 = vunpack.c.l.b16 %v1070
        %v1186 = vunpack.c.h.b16 %v1070
        %v1187 = vunpack.c.l.b16 %v1071
        %v1188 = vunpack.c.h.b16 %v1071
        %v1189 = vunpack.c.l.b16 %v1072
        %v1190 = vunpack.c.h.b16 %v1072
        %v1191 = vunpack.c.l.b16 %v1073
        %v1192 = vunpack.c.h.b16 %v1073
        %v1193 = vunpack.c.l.b16 %v1074
        %v1194 = vunpack.c.h.b16 %v1074
        %v1195 = vunpack.c.l.b16 %v1075
        %v1196 = vunpack.c.h.b16 %v1075
        %v1197 = vunpack.c.l.b16 %v1076
        %v1198 = vunpack.c.h.b16 %v1076
        %v1199 = vunpack.c.l.b16 %v1077
        %v1200 = vunpack.c.h.b16 %v1077
        %v1201 = vunpack.c.l.b16 %v1078
        %v1202 = vunpack.c.h.b16 %v1078
        %v1203 = vunpack.c.l.b16 %v1079
        %v1204 = vunpack.c.h.b16 %v1079
        %v1205 = vunpack.c.l.b16 %v1080
        %v1206 = vunpack.c.h.b16 %v1080
        %v1207 = vunpack.c.l.b16 %v1081
        %v1208 = vunpack.c.h.b16 %v1081
        %v1209 = vunpack.c.l.b16 %v1082
        %v1210 = vunpack.c.h.b16 %v1082
        %v1211 = vunpack.c.l.b16 %v1083
        %v1212 = vunpack.c.h.b16 %v1083
        %v1213 = vunpack.c.l.b16 %v1084
        %v1214 = vunpack.c.h.b16 %v1084
        %v1215 = vunpack.c.l.b16 %v1085
        %v1216 = vunpack.c.h.b16 %v1085
        %v1217 = vunpack.c.l.b16 %v1086
        %v1218 = vunpack.c.h.b16 %v1086
        %v1219 = vunpack.c.l.b16 %v1087
        %v1220 = vunpack.c.h.b16 %v1087
        %v1221 = vunpack.c.l.b16 %v1088
        %v1222 = vunpack.c.h.b16 %v1088
        %v1223 = vunpack.c.l.b16 %v1089
        %v1224 = vunpack.c.h.b16 %v1089
        %v1225 = vunpack.c.l.b16 %v1090
        %v1226 = vunpack.c.h.b16 %v1090
        %v1227 = vunpack.c.l.b16 %v1091
        %v1228 = vunpack.c.h.b16 %v1091
        %v1229 = vunpack.c.l.b16 %v1092
        %v1230 = vunpack.c.h.b16 %v1092
        %v1231 = vunpack.c.l.b16 %v1093
        %v1232 = vunpack.c.h.b16 %v1093
        %v1233 = vunpack.c.l.b16 %v1094
        %v1234 = vunpack.c.h.b16 %v1094
        %v1235 = vunpack.c.l.b16 %v1095
        %v1236 = vunpack.c.h.b16 %v1095
        %v1237 = vunpack.c.l.b16 %v1096
        %v1238 = vunpack.c.h.b16 %v1096
        %v1239 = vunpack.c.l.b16 %v1097
        %v1240 = vunpack.c.h.b16 %v1097
        %v1241 = vunpack.c.l.b16 %v1098
        %v1242 = vunpack.c.h.b16 %v1098
        %v1243 = vunpack.c.l.b16 %v1099
        %v1244 = vunpack.c.h.b16 %v1099
        %v1245 = vunpack.c.l.b16 %v1100
        %v1246 = vunpack.c.h.b16 %v1100
        %v1247 = vunpack.c.l.b16 %v1101
        %v1248 = vunpack.c.h.b16 %v1101
        %v1249 = vunpack.c.l.b16 %v1102
        %v1250 = vunpack.c.h.b16 %v1102
        %v1251 = vunpack.c.l.b16 %v1103
        %v1252 = vunpack.c.h.b16 %v1103
        %v1253 = vunpack.c.l.b16 %v1104
        %v1254 = vunpack.c.h.b16 %v1104
        %v1255 = vpack.c.b16 %v1159, %v1155
        %v1256 = vpack.c.b16 %v1160, %v1156
        %v1257 = vpack.c.b16 %v1161, %v1157
        %v1258 = vpack.c.b16 %v1162, %v1158
        %v1259 = vpack.c.b16 %v1167, %v1163
        %v1260 = vpack.c.b16 %v1168, %v1164
        %v1261 = vpack.c.b16 %v1169, %v1165
        %v1262 = vpack.c.b16 %v1170, %v1166
        %v1263 = vpack.c.b16 %v1175, %v1171
        %v1264 = vpack.c.b16 %v1176, %v1172
        %v1265 = vpack.c.b16 %v1177, %v1173
        %v1266 = vpack.c.b16 %v1178, %v1174
        %v1267 = vpack.c.b16 %v1183, %v1179
        %v1268 = vpack.c.b16 %v1184, %v1180
        %v1269 = vpack.c.b16 %v1185, %v1181
        %v1270 = vpack.c.b16 %v1186, %v1182
        %v1271 = vpack.c.b16 %v1191, %v1187
        %v1272 = vpack.c.b16 %v1192, %v1188
        %v1273 = vpack.c.b16 %v1193, %v1189
        %v1274 = vpack.c.b16 %v1194, %v1190
        %v1275 = vpack.c.b16 %v1199, %v1195
        %v1276 = vpack.c.b16 %v1200, %v1196
        %v1277 = vpack.c.b16 %v1201, %v1197
        %v1278 = vpack.c.b16 %v1202, %v1198
        %v1279 = vpack.c.b16 %v1207, %v1203
        %v1280 = vpack.c.b16 %v1208, %v1204
        %v1281 = vpack.c.b16 %v1209, %v1205
        %v1282 = vpack.c.b16 %v1210, %v1206
        %v1283 = vpack.c.b16 %v1215, %v1211
        %v1284 = vpack.c.b16 %v1216, %v1212
        %v1285 = vpack.c.b16 %v1217, %v1213
        %v1286 = vpack.c.b16 %v1218, %v1214
        %v1287 = vpack.c.b16 %v1223, %v1219
        %v1288 = vpack.c.b16 %v1224, %v1220
        %v1289 = vpack.c.b16 %v1225, %v1221
        %v1290 = vpack.c.b16 %v1226, %v1222
        %v1291 = vpack.c.b16 %v1231, %v1227
        %v1292 = vpack.c.b16 %v1232, %v1228
        %v1293 = vpack.c.b16 %v1233, %v1229
        %v1294 = vpack.c.b16 %v1234, %v1230
        %v1295 = vpack.c.b16 %v1239, %v1235
        %v1296 = vpack.c.b16 %v1240, %v1236
        %v1297 = vpack.c.b16 %v1241, %v1237
        %v1298 = vpack.c.b16 %v1242, %v1238
        %v1299 = vpack.c.b16 %v1247, %v1243
        %v1300 = vpack.c.b16 %v1248, %v1244
        %v1301 = vpack.c.b16 %v1249, %v1245
        %v1302 = vpack.c.b16 %v1250, %v1246
        %v1303 = vpack.c.b16 %v1251, %v1251
        %v1304 = vpack.c.b16 %v1252, %v1252
        %v1305 = vpack.c.b16 %v1253, %v1253
        %v1306 = vpack.c.b16 %v1254, %v1254
        %v1356 = vsel %vm725, %v1303, 0
        %v1359 = vsel %vm725, %v1304, 0
        %v1362 = vsel %vm725, %v1305, 0
        %v1365 = vsel %vm725, %v1306, 0
        %1367 = vmatprep.subr.bf16.mxu0 %v1256
        %1368 = vmatpush1.bf16.msra.mxu0 %v1255
        %1369 = vmatprep.subr.bf16.mxu0 %v1260
        %1370 = vmatpush1.bf16.msra.mxu0 %v1259
        %1371 = vmatprep.subr.bf16.mxu0 %v1264
        %1372 = vmatpush1.bf16.msra.mxu0 %v1263
        %1373 = vmatprep.subr.bf16.mxu0 %v1268
        %1374 = vmatpush1.bf16.msra.mxu0 %v1267
        %1375 = vmatprep.subr.bf16.mxu0 %v1272
        %1376 = vmatpush1.bf16.msra.mxu0 %v1271
        %1377 = vmatprep.subr.bf16.mxu0 %v1276
        %1378 = vmatpush1.bf16.msra.mxu0 %v1275
        %1379 = vmatprep.subr.bf16.mxu0 %v1280
        %1380 = vmatpush1.bf16.msra.mxu0 %v1279
        %1381 = vmatprep.subr.bf16.mxu0 %v1284
        %1382 = vmatpush1.bf16.msra.mxu0 %v1283
        %1383 = vmatprep.subr.bf16.mxu0 %v1288
        %1384 = vmatpush1.bf16.msra.mxu0 %v1287
        %1385 = vmatprep.subr.bf16.mxu0 %v1292
        %1386 = vmatpush1.bf16.msra.mxu0 %v1291
        %1387 = vmatprep.subr.bf16.mxu0 %v1296
        %1388 = vmatpush1.bf16.msra.mxu0 %v1295
        %1389 = vmatprep.subr.bf16.mxu0 %v1300
        %1390 = vmatpush1.bf16.msra.mxu0 %v1299
        %1391 = vmatprep.subr.bf16.mxu0 %v1359
        %1392 = vmatpush1.bf16.msra.mxu0 %v1356
        %1393 = vmatprep.subr.bf16.mxu0 0
        %1394 = vmatpush1.bf16.msra.mxu0 0
        %1395 = vmatprep.subr.bf16.mxu0 0
        %1396 = vmatpush1.bf16.msra.mxu0 0
        %1397 = vmatprep.subr.bf16.mxu0 0
        %1398 = vmatpush1.bf16.msra.mxu0 0
        %1399 = vmatprep.mubr.bf16.mxu0 %v717
        %1400 = vmatmul.mubr.bf16.gmra.mrb[0].mxu0 %v390
        %v1401 = vpop.f32.mrb[0].mxu0
        %v1402 = vadd.f32 0.0, %v1401
        %v1403 = vpop.f32.mrb[0].mxu0
        %v1404 = vadd.f32 0.0, %v1403
        %v1405 = vpop.f32.mrb[0].mxu0
        %v1406 = vadd.f32 0.0, %v1405
        %v1407 = vpop.f32.mrb[0].mxu0
        %v1408 = vadd.f32 0.0, %v1407
        %1409 = vmatprep.mubr.bf16.mxu0 %v719
        %1410 = vmatmul.mubr.bf16.gmra.mrb[0].mxu0 %v397
        %v1411 = vpop.f32.mrb[0].mxu0
        %v1412 = vadd.f32 0.0, %v1411
        %v1413 = vpop.f32.mrb[0].mxu0
        %v1414 = vadd.f32 0.0, %v1413
        %v1415 = vpop.f32.mrb[0].mxu0
        %v1416 = vadd.f32 0.0, %v1415
        %v1417 = vpop.f32.mrb[0].mxu0
        %v1418 = vadd.f32 0.0, %v1417
        %1419 = vmatprep.mubr.bf16.mxu0 %v721
        %1420 = vmatmul.mubr.bf16.gmra.mrb[0].mxu0 %v404
        %v1421 = vpop.f32.mrb[0].mxu0
        %v1422 = vadd.f32 0.0, %v1421
        %v1423 = vpop.f32.mrb[0].mxu0
        %v1424 = vadd.f32 0.0, %v1423
        %v1425 = vpop.f32.mrb[0].mxu0
        %v1426 = vadd.f32 0.0, %v1425
        %v1427 = vpop.f32.mrb[0].mxu0
        %v1428 = vadd.f32 0.0, %v1427
        %1429 = vmatprep.mubr.bf16.mxu0 %v723
        %1430 = vmatmul.mubr.bf16.gmra.mrb[0].mxu0 %v411
        %v1431 = vpop.f32.mrb[0].mxu0
        %v1432 = vadd.f32 0.0, %v1431
        %v1433 = vpop.f32.mrb[0].mxu0
        %v1434 = vadd.f32 0.0, %v1433
        %v1435 = vpop.f32.mrb[0].mxu0
        %v1436 = vadd.f32 0.0, %v1435
        %v1437 = vpop.f32.mrb[0].mxu0
        %v1438 = vadd.f32 0.0, %v1437
        %1439 = vdwg.mxu0
        %1440 = vmatprep.subr.bf16.mxu0 %v1258
        %1441 = vmatpush1.bf16.msra.mxu0 %v1257
        %1442 = vmatprep.subr.bf16.mxu0 %v1262
        %1443 = vmatpush1.bf16.msra.mxu0 %v1261
        %1444 = vmatprep.subr.bf16.mxu0 %v1266
        %1445 = vmatpush1.bf16.msra.mxu0 %v1265
        %1446 = vmatprep.subr.bf16.mxu0 %v1270
        %1447 = vmatpush1.bf16.msra.mxu0 %v1269
        %1448 = vmatprep.subr.bf16.mxu0 %v1274
        %1449 = vmatpush1.bf16.msra.mxu0 %v1273
        %1450 = vmatprep.subr.bf16.mxu0 %v1278
        %1451 = vmatpush1.bf16.msra.mxu0 %v1277
        %1452 = vmatprep.subr.bf16.mxu0 %v1282
        %1453 = vmatpush1.bf16.msra.mxu0 %v1281
        %1454 = vmatprep.subr.bf16.mxu0 %v1286
        %1455 = vmatpush1.bf16.msra.mxu0 %v1285
        %1456 = vmatprep.subr.bf16.mxu0 %v1290
        %1457 = vmatpush1.bf16.msra.mxu0 %v1289
        %1458 = vmatprep.subr.bf16.mxu0 %v1294
        %1459 = vmatpush1.bf16.msra.mxu0 %v1293
        %1460 = vmatprep.subr.bf16.mxu0 %v1298
        %1461 = vmatpush1.bf16.msra.mxu0 %v1297
        %1462 = vmatprep.subr.bf16.mxu0 %v1302
        %1463 = vmatpush1.bf16.msra.mxu0 %v1301
        %1464 = vmatprep.subr.bf16.mxu0 %v1365
        %1465 = vmatpush1.bf16.msra.mxu0 %v1362
        %1466 = vmatprep.subr.bf16.mxu0 0
        %1467 = vmatpush1.bf16.msra.mxu0 0
        %1468 = vmatprep.subr.bf16.mxu0 0
        %1469 = vmatpush1.bf16.msra.mxu0 0
        %1470 = vmatprep.subr.bf16.mxu0 0
        %1471 = vmatpush1.bf16.msra.mxu0 0
        %1472 = vmatprep.mubr.bf16.mxu0 %v717
        %1473 = vmatmul.mubr.bf16.gmra.mrb[0].mxu0 %v390
        %v1474 = vpop.f32.mrb[0].mxu0
        %v1475 = vadd.f32 0.0, %v1474
        %v1476 = vpop.f32.mrb[0].mxu0
        %v1477 = vadd.f32 0.0, %v1476
        %v1478 = vpop.f32.mrb[0].mxu0
        %v1479 = vadd.f32 0.0, %v1478
        %v1480 = vpop.f32.mrb[0].mxu0
        %v1481 = vadd.f32 0.0, %v1480
        %1482 = vmatprep.mubr.bf16.mxu0 %v719
        %1483 = vmatmul.mubr.bf16.gmra.mrb[0].mxu0 %v397
        %v1484 = vpop.f32.mrb[0].mxu0
        %v1485 = vadd.f32 0.0, %v1484
        %v1486 = vpop.f32.mrb[0].mxu0
        %v1487 = vadd.f32 0.0, %v1486
        %v1488 = vpop.f32.mrb[0].mxu0
        %v1489 = vadd.f32 0.0, %v1488
        %v1490 = vpop.f32.mrb[0].mxu0
        %v1491 = vadd.f32 0.0, %v1490
        %1492 = vmatprep.mubr.bf16.mxu0 %v721
        %1493 = vmatmul.mubr.bf16.gmra.mrb[0].mxu0 %v404
        %v1494 = vpop.f32.mrb[0].mxu0
        %v1495 = vadd.f32 0.0, %v1494
        %v1496 = vpop.f32.mrb[0].mxu0
        %v1497 = vadd.f32 0.0, %v1496
        %v1498 = vpop.f32.mrb[0].mxu0
        %v1499 = vadd.f32 0.0, %v1498
        %v1500 = vpop.f32.mrb[0].mxu0
        %v1501 = vadd.f32 0.0, %v1500
        %1502 = vmatprep.mubr.bf16.mxu0 %v723
        %1503 = vmatmul.mubr.bf16.gmra.mrb[0].mxu0 %v411
        %v1504 = vpop.f32.mrb[0].mxu0
        %v1505 = vadd.f32 0.0, %v1504
        %v1506 = vpop.f32.mrb[0].mxu0
        %v1507 = vadd.f32 0.0, %v1506
        %v1508 = vpop.f32.mrb[0].mxu0
        %v1509 = vadd.f32 0.0, %v1508
        %v1510 = vpop.f32.mrb[0].mxu0
        %v1511 = vadd.f32 0.0, %v1510
        %1512 = vdwg.mxu0
        %1529 = vrot.lane.b32.xlu0 %v1404, 96
        %v1530 = vpop.permute.xlu0 %1529
        %1531 = vrot.lane.b32.xlu0 %v1475, 96
        %v1532 = vpop.permute.xlu0 %1531
        %1533 = vrot.lane.b32.xlu0 %v1408, 96
        %v1534 = vpop.permute.xlu0 %1533
        %1535 = vrot.lane.b32.xlu0 %v1479, 96
        %v1536 = vpop.permute.xlu0 %1535
        %1537 = vrot.lane.b32.xlu0 %v1414, 96
        %v1538 = vpop.permute.xlu0 %1537
        %1539 = vrot.lane.b32.xlu0 %v1485, 96
        %v1540 = vpop.permute.xlu0 %1539
        %1541 = vrot.lane.b32.xlu0 %v1418, 96
        %v1542 = vpop.permute.xlu0 %1541
        %1543 = vrot.lane.b32.xlu0 %v1489, 96
        %v1544 = vpop.permute.xlu0 %1543
        %1545 = vrot.lane.b32.xlu0 %v1424, 96
        %v1546 = vpop.permute.xlu0 %1545
        %1547 = vrot.lane.b32.xlu0 %v1495, 96
        %v1548 = vpop.permute.xlu0 %1547
        %1549 = vrot.lane.b32.xlu0 %v1428, 96
        %v1550 = vpop.permute.xlu0 %1549
        %1551 = vrot.lane.b32.xlu0 %v1499, 96
        %v1552 = vpop.permute.xlu0 %1551
        %1553 = vrot.lane.b32.xlu0 %v1434, 96
        %v1554 = vpop.permute.xlu0 %1553
        %1555 = vrot.lane.b32.xlu0 %v1505, 96
        %v1556 = vpop.permute.xlu0 %1555
        %1557 = vrot.lane.b32.xlu0 %v1438, 96
        %v1558 = vpop.permute.xlu0 %1557
        %1559 = vrot.lane.b32.xlu0 %v1509, 96
        %v1560 = vpop.permute.xlu0 %1559
        %v1561 = vsel %vm932, %v1530, %v1532
        %v1562 = vsel %vm932, %v1534, %v1536
        %v1563 = vsel %vm932, %v1538, %v1540
        %v1564 = vsel %vm932, %v1542, %v1544
        %v1565 = vsel %vm932, %v1546, %v1548
        %v1566 = vsel %vm932, %v1550, %v1552
        %v1567 = vsel %vm932, %v1554, %v1556
        %v1568 = vsel %vm932, %v1558, %v1560
        %v1585 = vmax.f32 %v1402, %v1561
        %v1586 = vmax.f32 %v1404, %v1532
        %v1587 = vmax.f32 %v1406, %v1562
        %v1588 = vmax.f32 %v1408, %v1536
        %v1589 = vmax.f32 %v1412, %v1563
        %v1590 = vmax.f32 %v1414, %v1540
        %v1591 = vmax.f32 %v1416, %v1564
        %v1592 = vmax.f32 %v1418, %v1544
        %v1593 = vmax.f32 %v1422, %v1565
        %v1594 = vmax.f32 %v1424, %v1548
        %v1595 = vmax.f32 %v1426, %v1566
        %v1596 = vmax.f32 %v1428, %v1552
        %v1597 = vmax.f32 %v1432, %v1567
        %v1598 = vmax.f32 %v1434, %v1556
        %v1599 = vmax.f32 %v1436, %v1568
        %v1600 = vmax.f32 %v1438, %v1560
        %1609 = vrot.lane.b32.xlu0 %v1475, 64
        %v1610 = vpop.permute.xlu0 %1609
        %1611 = vrot.lane.b32.xlu0 %v1477, 64
        %v1612 = vpop.permute.xlu0 %1611
        %1613 = vrot.lane.b32.xlu0 %v1479, 64
        %v1614 = vpop.permute.xlu0 %1613
        %1615 = vrot.lane.b32.xlu0 %v1481, 64
        %v1616 = vpop.permute.xlu0 %1615
        %1617 = vrot.lane.b32.xlu0 %v1485, 64
        %v1618 = vpop.permute.xlu0 %1617
        %1619 = vrot.lane.b32.xlu0 %v1487, 64
        %v1620 = vpop.permute.xlu0 %1619
        %1621 = vrot.lane.b32.xlu0 %v1489, 64
        %v1622 = vpop.permute.xlu0 %1621
        %1623 = vrot.lane.b32.xlu0 %v1491, 64
        %v1624 = vpop.permute.xlu0 %1623
        %1625 = vrot.lane.b32.xlu0 %v1495, 64
        %v1626 = vpop.permute.xlu0 %1625
        %1627 = vrot.lane.b32.xlu0 %v1497, 64
        %v1628 = vpop.permute.xlu0 %1627
        %1629 = vrot.lane.b32.xlu0 %v1499, 64
        %v1630 = vpop.permute.xlu0 %1629
        %1631 = vrot.lane.b32.xlu0 %v1501, 64
        %v1632 = vpop.permute.xlu0 %1631
        %1633 = vrot.lane.b32.xlu0 %v1505, 64
        %v1634 = vpop.permute.xlu0 %1633
        %1635 = vrot.lane.b32.xlu0 %v1507, 64
        %v1636 = vpop.permute.xlu0 %1635
        %1637 = vrot.lane.b32.xlu0 %v1509, 64
        %v1638 = vpop.permute.xlu0 %1637
        %1639 = vrot.lane.b32.xlu0 %v1511, 64
        %v1640 = vpop.permute.xlu0 %1639
        %v1641 = vsel %vm1013, %v1610, %v1612
        %v1642 = vsel %vm1013, %v1614, %v1616
        %v1643 = vsel %vm1013, %v1618, %v1620
        %v1644 = vsel %vm1013, %v1622, %v1624
        %v1645 = vsel %vm1013, %v1626, %v1628
        %v1646 = vsel %vm1013, %v1630, %v1632
        %v1647 = vsel %vm1013, %v1634, %v1636
        %v1648 = vsel %vm1013, %v1638, %v1640
        %v1665 = vmax.f32 %v1585, %v1641
        %v1666 = vmax.f32 %v1586, %v1612
        %v1667 = vmax.f32 %v1587, %v1642
        %v1668 = vmax.f32 %v1588, %v1616
        %v1669 = vmax.f32 %v1589, %v1643
        %v1670 = vmax.f32 %v1590, %v1620
        %v1671 = vmax.f32 %v1591, %v1644
        %v1672 = vmax.f32 %v1592, %v1624
        %v1673 = vmax.f32 %v1593, %v1645
        %v1674 = vmax.f32 %v1594, %v1628
        %v1675 = vmax.f32 %v1595, %v1646
        %v1676 = vmax.f32 %v1596, %v1632
        %v1677 = vmax.f32 %v1597, %v1647
        %v1678 = vmax.f32 %v1598, %v1636
        %v1679 = vmax.f32 %v1599, %v1648
        %v1680 = vmax.f32 %v1600, %v1640
        %v1681 = vmax.f32 %v1038, %v1665
        %v1682 = vmax.f32 %v1039, %v1666
        %v1683 = vmax.f32 %v1040, %v1667
        %v1684 = vmax.f32 %v1041, %v1668
        %v1685 = vmax.f32 %v1042, %v1669
        %v1686 = vmax.f32 %v1043, %v1670
        %v1687 = vmax.f32 %v1044, %v1671
        %v1688 = vmax.f32 %v1045, %v1672
        %v1689 = vmax.f32 %v1046, %v1673
        %v1690 = vmax.f32 %v1047, %v1674
        %v1691 = vmax.f32 %v1048, %v1675
        %v1692 = vmax.f32 %v1049, %v1676
        %v1693 = vmax.f32 %v1050, %v1677
        %v1694 = vmax.f32 %v1051, %v1678
        %v1695 = vmax.f32 %v1052, %v1679
        %v1696 = vmax.f32 %v1053, %v1680
        %s1697 = scalar_lea.vmem [#allocation2], 800
        %v1698 = vld [vmem:[%s1697] sm:$0xff]
        %v1699 = vld [vmem:[%s1697 + $0x8] sm:$0xff]
        %v1700 = vld [vmem:[%s1697 + $0x10] sm:$0xff]
        %v1701 = vld [vmem:[%s1697 + $0x18] sm:$0xff]
        %v1702 = vld [vmem:[%s1697 + $0x20] sm:$0xff]
        %v1703 = vld [vmem:[%s1697 + $0x28] sm:$0xff]
        %v1704 = vld [vmem:[%s1697 + $0x30] sm:$0xff]
        %v1705 = vld [vmem:[%s1697 + $0x38] sm:$0xff]
        %v1706 = vld [vmem:[%s1697 + $0x40] sm:$0xff]
        %v1707 = vld [vmem:[%s1697 + $0x48] sm:$0xff]
        %v1708 = vld [vmem:[%s1697 + $0x50] sm:$0xff]
        %v1709 = vld [vmem:[%s1697 + $0x58] sm:$0xff]
        %v1710 = vld [vmem:[%s1697 + $0x60] sm:$0xff]
        %v1711 = vld [vmem:[%s1697 + $0x68] sm:$0xff]
        %v1712 = vld [vmem:[%s1697 + $0x70] sm:$0xff]
        %v1713 = vld [vmem:[%s1697 + $0x78] sm:$0xff]
        %v1714 = vld [vmem:[%s1697 + $0x80] sm:$0xff]
        %v1715 = vld [vmem:[%s1697 + $0x88] sm:$0xff]
        %v1716 = vld [vmem:[%s1697 + $0x90] sm:$0xff]
        %v1717 = vld [vmem:[%s1697 + $0x98] sm:$0xff]
        %v1718 = vld [vmem:[%s1697 + $0xa0] sm:$0xff]
        %v1719 = vld [vmem:[%s1697 + $0xa8] sm:$0xff]
        %v1720 = vld [vmem:[%s1697 + $0xb0] sm:$0xff]
        %v1721 = vld [vmem:[%s1697 + $0xb8] sm:$0xff]
        %v1722 = vld [vmem:[%s1697 + $0xc0] sm:$0xff]
        %v1723 = vld [vmem:[%s1697 + $0xc8] sm:$0xff]
        %v1724 = vld [vmem:[%s1697 + $0xd0] sm:$0xff]
        %v1725 = vld [vmem:[%s1697 + $0xd8] sm:$0xff]
        %v1726 = vld [vmem:[%s1697 + $0xe0] sm:$0xff]
        %v1727 = vld [vmem:[%s1697 + $0xe8] sm:$0xff]
        %v1728 = vld [vmem:[%s1697 + $0xf0] sm:$0xff]
        %v1729 = vld [vmem:[%s1697 + $0xf8] sm:$0xff]
        %v1730 = vld [vmem:[%s1697 + $0x100] sm:$0xff]
        %v1731 = vld [vmem:[%s1697 + $0x108] sm:$0xff]
        %v1732 = vld [vmem:[%s1697 + $0x110] sm:$0xff]
        %v1733 = vld [vmem:[%s1697 + $0x118] sm:$0xff]
        %v1734 = vld [vmem:[%s1697 + $0x120] sm:$0xff]
        %v1735 = vld [vmem:[%s1697 + $0x128] sm:$0xff]
        %v1736 = vld [vmem:[%s1697 + $0x130] sm:$0xff]
        %v1737 = vld [vmem:[%s1697 + $0x138] sm:$0xff]
        %v1738 = vld [vmem:[%s1697 + $0x140] sm:$0xff]
        %v1739 = vld [vmem:[%s1697 + $0x148] sm:$0xff]
        %v1740 = vld [vmem:[%s1697 + $0x150] sm:$0xff]
        %v1741 = vld [vmem:[%s1697 + $0x158] sm:$0xff]
        %v1742 = vld [vmem:[%s1697 + $0x160] sm:$0xff]
        %v1743 = vld [vmem:[%s1697 + $0x168] sm:$0xff]
        %v1744 = vld [vmem:[%s1697 + $0x170] sm:$0xff]
        %v1745 = vld [vmem:[%s1697 + $0x178] sm:$0xff]
        %v1746 = vld [vmem:[%s1697 + $0x180] sm:$0x33]
        %v1747 = vld [vmem:[%s1697 + $0x188] sm:$0x33]
        %v1798 = vunpack.c.l.b16 %v1698
        %v1799 = vunpack.c.h.b16 %v1698
        %v1800 = vunpack.c.l.b16 %v1699
        %v1801 = vunpack.c.h.b16 %v1699
        %v1802 = vunpack.c.l.b16 %v1700
        %v1803 = vunpack.c.h.b16 %v1700
        %v1804 = vunpack.c.l.b16 %v1701
        %v1805 = vunpack.c.h.b16 %v1701
        %v1806 = vunpack.c.l.b16 %v1702
        %v1807 = vunpack.c.h.b16 %v1702
        %v1808 = vunpack.c.l.b16 %v1703
        %v1809 = vunpack.c.h.b16 %v1703
        %v1810 = vunpack.c.l.b16 %v1704
        %v1811 = vunpack.c.h.b16 %v1704
        %v1812 = vunpack.c.l.b16 %v1705
        %v1813 = vunpack.c.h.b16 %v1705
        %v1814 = vunpack.c.l.b16 %v1706
        %v1815 = vunpack.c.h.b16 %v1706
        %v1816 = vunpack.c.l.b16 %v1707
        %v1817 = vunpack.c.h.b16 %v1707
        %v1818 = vunpack.c.l.b16 %v1708
        %v1819 = vunpack.c.h.b16 %v1708
        %v1820 = vunpack.c.l.b16 %v1709
        %v1821 = vunpack.c.h.b16 %v1709
        %v1822 = vunpack.c.l.b16 %v1710
        %v1823 = vunpack.c.h.b16 %v1710
        %v1824 = vunpack.c.l.b16 %v1711
        %v1825 = vunpack.c.h.b16 %v1711
        %v1826 = vunpack.c.l.b16 %v1712
        %v1827 = vunpack.c.h.b16 %v1712
        %v1828 = vunpack.c.l.b16 %v1713
        %v1829 = vunpack.c.h.b16 %v1713
        %v1830 = vunpack.c.l.b16 %v1714
        %v1831 = vunpack.c.h.b16 %v1714
        %v1832 = vunpack.c.l.b16 %v1715
        %v1833 = vunpack.c.h.b16 %v1715
        %v1834 = vunpack.c.l.b16 %v1716
        %v1835 = vunpack.c.h.b16 %v1716
        %v1836 = vunpack.c.l.b16 %v1717
        %v1837 = vunpack.c.h.b16 %v1717
        %v1838 = vunpack.c.l.b16 %v1718
        %v1839 = vunpack.c.h.b16 %v1718
        %v1840 = vunpack.c.l.b16 %v1719
        %v1841 = vunpack.c.h.b16 %v1719
        %v1842 = vunpack.c.l.b16 %v1720
        %v1843 = vunpack.c.h.b16 %v1720
        %v1844 = vunpack.c.l.b16 %v1721
        %v1845 = vunpack.c.h.b16 %v1721
        %v1846 = vunpack.c.l.b16 %v1722
        %v1847 = vunpack.c.h.b16 %v1722
        %v1848 = vunpack.c.l.b16 %v1723
        %v1849 = vunpack.c.h.b16 %v1723
        %v1850 = vunpack.c.l.b16 %v1724
        %v1851 = vunpack.c.h.b16 %v1724
        %v1852 = vunpack.c.l.b16 %v1725
        %v1853 = vunpack.c.h.b16 %v1725
        %v1854 = vunpack.c.l.b16 %v1726
        %v1855 = vunpack.c.h.b16 %v1726
        %v1856 = vunpack.c.l.b16 %v1727
        %v1857 = vunpack.c.h.b16 %v1727
        %v1858 = vunpack.c.l.b16 %v1728
        %v1859 = vunpack.c.h.b16 %v1728
        %v1860 = vunpack.c.l.b16 %v1729
        %v1861 = vunpack.c.h.b16 %v1729
        %v1862 = vunpack.c.l.b16 %v1730
        %v1863 = vunpack.c.h.b16 %v1730
        %v1864 = vunpack.c.l.b16 %v1731
        %v1865 = vunpack.c.h.b16 %v1731
        %v1866 = vunpack.c.l.b16 %v1732
        %v1867 = vunpack.c.h.b16 %v1732
        %v1868 = vunpack.c.l.b16 %v1733
        %v1869 = vunpack.c.h.b16 %v1733
        %v1870 = vunpack.c.l.b16 %v1734
        %v1871 = vunpack.c.h.b16 %v1734
        %v1872 = vunpack.c.l.b16 %v1735
        %v1873 = vunpack.c.h.b16 %v1735
        %v1874 = vunpack.c.l.b16 %v1736
        %v1875 = vunpack.c.h.b16 %v1736
        %v1876 = vunpack.c.l.b16 %v1737
        %v1877 = vunpack.c.h.b16 %v1737
        %v1878 = vunpack.c.l.b16 %v1738
        %v1879 = vunpack.c.h.b16 %v1738
        %v1880 = vunpack.c.l.b16 %v1739
        %v1881 = vunpack.c.h.b16 %v1739
        %v1882 = vunpack.c.l.b16 %v1740
        %v1883 = vunpack.c.h.b16 %v1740
        %v1884 = vunpack.c.l.b16 %v1741
        %v1885 = vunpack.c.h.b16 %v1741
        %v1886 = vunpack.c.l.b16 %v1742
        %v1887 = vunpack.c.h.b16 %v1742
        %v1888 = vunpack.c.l.b16 %v1743
        %v1889 = vunpack.c.h.b16 %v1743
        %v1890 = vunpack.c.l.b16 %v1744
        %v1891 = vunpack.c.h.b16 %v1744
        %v1892 = vunpack.c.l.b16 %v1745
        %v1893 = vunpack.c.h.b16 %v1745
        %v1894 = vunpack.c.l.b16 %v1746
        %v1895 = vunpack.c.h.b16 %v1746
        %v1896 = vunpack.c.l.b16 %v1747
        %v1897 = vunpack.c.h.b16 %v1747
        %v1898 = vpack.c.b16 %v1802, %v1798
        %v1899 = vpack.c.b16 %v1803, %v1799
        %v1900 = vpack.c.b16 %v1804, %v1800
        %v1901 = vpack.c.b16 %v1805, %v1801
        %v1902 = vpack.c.b16 %v1810, %v1806
        %v1903 = vpack.c.b16 %v1811, %v1807
        %v1904 = vpack.c.b16 %v1812, %v1808
        %v1905 = vpack.c.b16 %v1813, %v1809
        %v1906 = vpack.c.b16 %v1818, %v1814
        %v1907 = vpack.c.b16 %v1819, %v1815
        %v1908 = vpack.c.b16 %v1820, %v1816
        %v1909 = vpack.c.b16 %v1821, %v1817
        %v1910 = vpack.c.b16 %v1826, %v1822
        %v1911 = vpack.c.b16 %v1827, %v1823
        %v1912 = vpack.c.b16 %v1828, %v1824
        %v1913 = vpack.c.b16 %v1829, %v1825
        %v1914 = vpack.c.b16 %v1834, %v1830
        %v1915 = vpack.c.b16 %v1835, %v1831
        %v1916 = vpack.c.b16 %v1836, %v1832
        %v1917 = vpack.c.b16 %v1837, %v1833
        %v1918 = vpack.c.b16 %v1842, %v1838
        %v1919 = vpack.c.b16 %v1843, %v1839
        %v1920 = vpack.c.b16 %v1844, %v1840
        %v1921 = vpack.c.b16 %v1845, %v1841
        %v1922 = vpack.c.b16 %v1850, %v1846
        %v1923 = vpack.c.b16 %v1851, %v1847
        %v1924 = vpack.c.b16 %v1852, %v1848
        %v1925 = vpack.c.b16 %v1853, %v1849
        %v1926 = vpack.c.b16 %v1858, %v1854
        %v1927 = vpack.c.b16 %v1859, %v1855
        %v1928 = vpack.c.b16 %v1860, %v1856
        %v1929 = vpack.c.b16 %v1861, %v1857
        %v1930 = vpack.c.b16 %v1866, %v1862
        %v1931 = vpack.c.b16 %v1867, %v1863
        %v1932 = vpack.c.b16 %v1868, %v1864
        %v1933 = vpack.c.b16 %v1869, %v1865
        %v1934 = vpack.c.b16 %v1874, %v1870
        %v1935 = vpack.c.b16 %v1875, %v1871
        %v1936 = vpack.c.b16 %v1876, %v1872
        %v1937 = vpack.c.b16 %v1877, %v1873
        %v1938 = vpack.c.b16 %v1882, %v1878
        %v1939 = vpack.c.b16 %v1883, %v1879
        %v1940 = vpack.c.b16 %v1884, %v1880
        %v1941 = vpack.c.b16 %v1885, %v1881
        %v1942 = vpack.c.b16 %v1890, %v1886
        %v1943 = vpack.c.b16 %v1891, %v1887
        %v1944 = vpack.c.b16 %v1892, %v1888
        %v1945 = vpack.c.b16 %v1893, %v1889
        %v1946 = vpack.c.b16 %v1894, %v1894
        %v1947 = vpack.c.b16 %v1895, %v1895
        %v1948 = vpack.c.b16 %v1896, %v1896
        %v1949 = vpack.c.b16 %v1897, %v1897
        %v1999 = vsel %vm725, %v1946, 0
        %v2002 = vsel %vm725, %v1947, 0
        %v2005 = vsel %vm725, %v1948, 0
        %v2008 = vsel %vm725, %v1949, 0
        %2010 = vmatprep.subr.bf16.mxu0 %v1899
        %2011 = vmatpush1.bf16.msra.mxu0 %v1898
        %2012 = vmatprep.subr.bf16.mxu0 %v1903
        %2013 = vmatpush1.bf16.msra.mxu0 %v1902
        %2014 = vmatprep.subr.bf16.mxu0 %v1907
        %2015 = vmatpush1.bf16.msra.mxu0 %v1906
        %2016 = vmatprep.subr.bf16.mxu0 %v1911
        %2017 = vmatpush1.bf16.msra.mxu0 %v1910
        %2018 = vmatprep.subr.bf16.mxu0 %v1915
        %2019 = vmatpush1.bf16.msra.mxu0 %v1914
        %2020 = vmatprep.subr.bf16.mxu0 %v1919
        %2021 = vmatpush1.bf16.msra.mxu0 %v1918
        %2022 = vmatprep.subr.bf16.mxu0 %v1923
        %2023 = vmatpush1.bf16.msra.mxu0 %v1922
        %2024 = vmatprep.subr.bf16.mxu0 %v1927
        %2025 = vmatpush1.bf16.msra.mxu0 %v1926
        %2026 = vmatprep.subr.bf16.mxu0 %v1931
        %2027 = vmatpush1.bf16.msra.mxu0 %v1930
        %2028 = vmatprep.subr.bf16.mxu0 %v1935
        %2029 = vmatpush1.bf16.msra.mxu0 %v1934
        %2030 = vmatprep.subr.bf16.mxu0 %v1939
        %2031 = vmatpush1.bf16.msra.mxu0 %v1938
        %2032 = vmatprep.subr.bf16.mxu0 %v1943
        %2033 = vmatpush1.bf16.msra.mxu0 %v1942
        %2034 = vmatprep.subr.bf16.mxu0 %v2002
        %2035 = vmatpush1.bf16.msra.mxu0 %v1999
        %2036 = vmatprep.subr.bf16.mxu0 0
        %2037 = vmatpush1.bf16.msra.mxu0 0
        %2038 = vmatprep.subr.bf16.mxu0 0
        %2039 = vmatpush1.bf16.msra.mxu0 0
        %2040 = vmatprep.subr.bf16.mxu0 0
        %2041 = vmatpush1.bf16.msra.mxu0 0
        %2042 = vmatprep.mubr.bf16.mxu0 %v717
        %2043 = vmatmul.mubr.bf16.gmra.mrb[0].mxu0 %v390
        %v2044 = vpop.f32.mrb[0].mxu0
        %v2045 = vadd.f32 0.0, %v2044
        %v2046 = vpop.f32.mrb[0].mxu0
        %v2047 = vadd.f32 0.0, %v2046
        %v2048 = vpop.f32.mrb[0].mxu0
        %v2049 = vadd.f32 0.0, %v2048
        %v2050 = vpop.f32.mrb[0].mxu0
        %v2051 = vadd.f32 0.0, %v2050
        %2052 = vmatprep.mubr.bf16.mxu0 %v719
        %2053 = vmatmul.mubr.bf16.gmra.mrb[0].mxu0 %v397
        %v2054 = vpop.f32.mrb[0].mxu0
        %v2055 = vadd.f32 0.0, %v2054
        %v2056 = vpop.f32.mrb[0].mxu0
        %v2057 = vadd.f32 0.0, %v2056
        %v2058 = vpop.f32.mrb[0].mxu0
        %v2059 = vadd.f32 0.0, %v2058
        %v2060 = vpop.f32.mrb[0].mxu0
        %v2061 = vadd.f32 0.0, %v2060
        %2062 = vmatprep.mubr.bf16.mxu0 %v721
        %2063 = vmatmul.mubr.bf16.gmra.mrb[0].mxu0 %v404
        %v2064 = vpop.f32.mrb[0].mxu0
        %v2065 = vadd.f32 0.0, %v2064
        %v2066 = vpop.f32.mrb[0].mxu0
        %v2067 = vadd.f32 0.0, %v2066
        %v2068 = vpop.f32.mrb[0].mxu0
        %v2069 = vadd.f32 0.0, %v2068
        %v2070 = vpop.f32.mrb[0].mxu0
        %v2071 = vadd.f32 0.0, %v2070
        %2072 = vmatprep.mubr.bf16.mxu0 %v723
        %2073 = vmatmul.mubr.bf16.gmra.mrb[0].mxu0 %v411
        %v2074 = vpop.f32.mrb[0].mxu0
        %v2075 = vadd.f32 0.0, %v2074
        %v2076 = vpop.f32.mrb[0].mxu0
        %v2077 = vadd.f32 0.0, %v2076
        %v2078 = vpop.f32.mrb[0].mxu0
        %v2079 = vadd.f32 0.0, %v2078
        %v2080 = vpop.f32.mrb[0].mxu0
        %v2081 = vadd.f32 0.0, %v2080
        %2082 = vdwg.mxu0
        %2083 = vmatprep.subr.bf16.mxu0 %v1901
        %2084 = vmatpush1.bf16.msra.mxu0 %v1900
        %2085 = vmatprep.subr.bf16.mxu0 %v1905
        %2086 = vmatpush1.bf16.msra.mxu0 %v1904
        %2087 = vmatprep.subr.bf16.mxu0 %v1909
        %2088 = vmatpush1.bf16.msra.mxu0 %v1908
        %2089 = vmatprep.subr.bf16.mxu0 %v1913
        %2090 = vmatpush1.bf16.msra.mxu0 %v1912
        %2091 = vmatprep.subr.bf16.mxu0 %v1917
        %2092 = vmatpush1.bf16.msra.mxu0 %v1916
        %2093 = vmatprep.subr.bf16.mxu0 %v1921
        %2094 = vmatpush1.bf16.msra.mxu0 %v1920
        %2095 = vmatprep.subr.bf16.mxu0 %v1925
        %2096 = vmatpush1.bf16.msra.mxu0 %v1924
        %2097 = vmatprep.subr.bf16.mxu0 %v1929
        %2098 = vmatpush1.bf16.msra.mxu0 %v1928
        %2099 = vmatprep.subr.bf16.mxu0 %v1933
        %2100 = vmatpush1.bf16.msra.mxu0 %v1932
        %2101 = vmatprep.subr.bf16.mxu0 %v1937
        %2102 = vmatpush1.bf16.msra.mxu0 %v1936
        %2103 = vmatprep.subr.bf16.mxu0 %v1941
        %2104 = vmatpush1.bf16.msra.mxu0 %v1940
        %2105 = vmatprep.subr.bf16.mxu0 %v1945
        %2106 = vmatpush1.bf16.msra.mxu0 %v1944
        %2107 = vmatprep.subr.bf16.mxu0 %v2008
        %2108 = vmatpush1.bf16.msra.mxu0 %v2005
        %2109 = vmatprep.subr.bf16.mxu0 0
        %2110 = vmatpush1.bf16.msra.mxu0 0
        %2111 = vmatprep.subr.bf16.mxu0 0
        %2112 = vmatpush1.bf16.msra.mxu0 0
        %2113 = vmatprep.subr.bf16.mxu0 0
        %2114 = vmatpush1.bf16.msra.mxu0 0
        %2115 = vmatprep.mubr.bf16.mxu0 %v717
        %2116 = vmatmul.mubr.bf16.gmra.mrb[0].mxu0 %v390
        %v2117 = vpop.f32.mrb[0].mxu0
        %v2118 = vadd.f32 0.0, %v2117
        %v2119 = vpop.f32.mrb[0].mxu0
        %v2120 = vadd.f32 0.0, %v2119
        %v2121 = vpop.f32.mrb[0].mxu0
        %v2122 = vadd.f32 0.0, %v2121
        %v2123 = vpop.f32.mrb[0].mxu0
        %v2124 = vadd.f32 0.0, %v2123
        %2125 = vmatprep.mubr.bf16.mxu0 %v719
        %2126 = vmatmul.mubr.bf16.gmra.mrb[0].mxu0 %v397
        %v2127 = vpop.f32.mrb[0].mxu0
        %v2128 = vadd.f32 0.0, %v2127
        %v2129 = vpop.f32.mrb[0].mxu0
        %v2130 = vadd.f32 0.0, %v2129
        %v2131 = vpop.f32.mrb[0].mxu0
        %v2132 = vadd.f32 0.0, %v2131
        %v2133 = vpop.f32.mrb[0].mxu0
        %v2134 = vadd.f32 0.0, %v2133
        %2135 = vmatprep.mubr.bf16.mxu0 %v721
        %2136 = vmatmul.mubr.bf16.gmra.mrb[0].mxu0 %v404
        %v2137 = vpop.f32.mrb[0].mxu0
        %v2138 = vadd.f32 0.0, %v2137
        %v2139 = vpop.f32.mrb[0].mxu0
        %v2140 = vadd.f32 0.0, %v2139
        %v2141 = vpop.f32.mrb[0].mxu0
        %v2142 = vadd.f32 0.0, %v2141
        %v2143 = vpop.f32.mrb[0].mxu0
        %v2144 = vadd.f32 0.0, %v2143
        %2145 = vmatprep.mubr.bf16.mxu0 %v723
        %2146 = vmatmul.mubr.bf16.gmra.mrb[0].mxu0 %v411
        %v2147 = vpop.f32.mrb[0].mxu0
        %v2148 = vadd.f32 0.0, %v2147
        %v2149 = vpop.f32.mrb[0].mxu0
        %v2150 = vadd.f32 0.0, %v2149
        %v2151 = vpop.f32.mrb[0].mxu0
        %v2152 = vadd.f32 0.0, %v2151
        %v2153 = vpop.f32.mrb[0].mxu0
        %v2154 = vadd.f32 0.0, %v2153
        %2155 = vdwg.mxu0
        %2172 = vrot.lane.b32.xlu0 %v2047, 96
        %v2173 = vpop.permute.xlu0 %2172
        %2174 = vrot.lane.b32.xlu0 %v2118, 96
        %v2175 = vpop.permute.xlu0 %2174
        %2176 = vrot.lane.b32.xlu0 %v2051, 96
        %v2177 = vpop.permute.xlu0 %2176
        %2178 = vrot.lane.b32.xlu0 %v2122, 96
        %v2179 = vpop.permute.xlu0 %2178
        %2180 = vrot.lane.b32.xlu0 %v2057, 96
        %v2181 = vpop.permute.xlu0 %2180
        %2182 = vrot.lane.b32.xlu0 %v2128, 96
        %v2183 = vpop.permute.xlu0 %2182
        %2184 = vrot.lane.b32.xlu0 %v2061, 96
        %v2185 = vpop.permute.xlu0 %2184
        %2186 = vrot.lane.b32.xlu0 %v2132, 96
        %v2187 = vpop.permute.xlu0 %2186
        %2188 = vrot.lane.b32.xlu0 %v2067, 96
        %v2189 = vpop.permute.xlu0 %2188
        %2190 = vrot.lane.b32.xlu0 %v2138, 96
        %v2191 = vpop.permute.xlu0 %2190
        %2192 = vrot.lane.b32.xlu0 %v2071, 96
        %v2193 = vpop.permute.xlu0 %2192
        %2194 = vrot.lane.b32.xlu0 %v2142, 96
        %v2195 = vpop.permute.xlu0 %2194
        %2196 = vrot.lane.b32.xlu0 %v2077, 96
        %v2197 = vpop.permute.xlu0 %2196
        %2198 = vrot.lane.b32.xlu0 %v2148, 96
        %v2199 = vpop.permute.xlu0 %2198
        %2200 = vrot.lane.b32.xlu0 %v2081, 96
        %v2201 = vpop.permute.xlu0 %2200
        %2202 = vrot.lane.b32.xlu0 %v2152, 96
        %v2203 = vpop.permute.xlu0 %2202
        %v2204 = vsel %vm932, %v2173, %v2175
        %v2205 = vsel %vm932, %v2177, %v2179
        %v2206 = vsel %vm932, %v2181, %v2183
        %v2207 = vsel %vm932, %v2185, %v2187
        %v2208 = vsel %vm932, %v2189, %v2191
        %v2209 = vsel %vm932, %v2193, %v2195
        %v2210 = vsel %vm932, %v2197, %v2199
        %v2211 = vsel %vm932, %v2201, %v2203
        %v2228 = vmax.f32 %v2045, %v2204
        %v2229 = vmax.f32 %v2047, %v2175
        %v2230 = vmax.f32 %v2049, %v2205
        %v2231 = vmax.f32 %v2051, %v2179
        %v2232 = vmax.f32 %v2055, %v2206
        %v2233 = vmax.f32 %v2057, %v2183
        %v2234 = vmax.f32 %v2059, %v2207
        %v2235 = vmax.f32 %v2061, %v2187
        %v2236 = vmax.f32 %v2065, %v2208
        %v2237 = vmax.f32 %v2067, %v2191
        %v2238 = vmax.f32 %v2069, %v2209
        %v2239 = vmax.f32 %v2071, %v2195
        %v2240 = vmax.f32 %v2075, %v2210
        %v2241 = vmax.f32 %v2077, %v2199
        %v2242 = vmax.f32 %v2079, %v2211
        %v2243 = vmax.f32 %v2081, %v2203
        %2252 = vrot.lane.b32.xlu0 %v2118, 64
        %v2253 = vpop.permute.xlu0 %2252
        %2254 = vrot.lane.b32.xlu0 %v2120, 64
        %v2255 = vpop.permute.xlu0 %2254
        %2256 = vrot.lane.b32.xlu0 %v2122, 64
        %v2257 = vpop.permute.xlu0 %2256
        %2258 = vrot.lane.b32.xlu0 %v2124, 64
        %v2259 = vpop.permute.xlu0 %2258
        %2260 = vrot.lane.b32.xlu0 %v2128, 64
        %v2261 = vpop.permute.xlu0 %2260
        %2262 = vrot.lane.b32.xlu0 %v2130, 64
        %v2263 = vpop.permute.xlu0 %2262
        %2264 = vrot.lane.b32.xlu0 %v2132, 64
        %v2265 = vpop.permute.xlu0 %2264
        %2266 = vrot.lane.b32.xlu0 %v2134, 64
        %v2267 = vpop.permute.xlu0 %2266
        %2268 = vrot.lane.b32.xlu0 %v2138, 64
        %v2269 = vpop.permute.xlu0 %2268
        %2270 = vrot.lane.b32.xlu0 %v2140, 64
        %v2271 = vpop.permute.xlu0 %2270
        %2272 = vrot.lane.b32.xlu0 %v2142, 64
        %v2273 = vpop.permute.xlu0 %2272
        %2274 = vrot.lane.b32.xlu0 %v2144, 64
        %v2275 = vpop.permute.xlu0 %2274
        %2276 = vrot.lane.b32.xlu0 %v2148, 64
        %v2277 = vpop.permute.xlu0 %2276
        %2278 = vrot.lane.b32.xlu0 %v2150, 64
        %v2279 = vpop.permute.xlu0 %2278
        %2280 = vrot.lane.b32.xlu0 %v2152, 64
        %v2281 = vpop.permute.xlu0 %2280
        %2282 = vrot.lane.b32.xlu0 %v2154, 64
        %v2283 = vpop.permute.xlu0 %2282
        %v2284 = vsel %vm1013, %v2253, %v2255
        %v2285 = vsel %vm1013, %v2257, %v2259
        %v2286 = vsel %vm1013, %v2261, %v2263
        %v2287 = vsel %vm1013, %v2265, %v2267
        %v2288 = vsel %vm1013, %v2269, %v2271
        %v2289 = vsel %vm1013, %v2273, %v2275
        %v2290 = vsel %vm1013, %v2277, %v2279
        %v2291 = vsel %vm1013, %v2281, %v2283
        %v2308 = vmax.f32 %v2228, %v2284
        %v2309 = vmax.f32 %v2229, %v2255
        %v2310 = vmax.f32 %v2230, %v2285
        %v2311 = vmax.f32 %v2231, %v2259
        %v2312 = vmax.f32 %v2232, %v2286
        %v2313 = vmax.f32 %v2233, %v2263
        %v2314 = vmax.f32 %v2234, %v2287
        %v2315 = vmax.f32 %v2235, %v2267
        %v2316 = vmax.f32 %v2236, %v2288
        %v2317 = vmax.f32 %v2237, %v2271
        %v2318 = vmax.f32 %v2238, %v2289
        %v2319 = vmax.f32 %v2239, %v2275
        %v2320 = vmax.f32 %v2240, %v2290
        %v2321 = vmax.f32 %v2241, %v2279
        %v2322 = vmax.f32 %v2242, %v2291
        %v2323 = vmax.f32 %v2243, %v2283
        %v2324 = vmax.f32 %v1681, %v2308
        %v2325 = vmax.f32 %v1682, %v2309
        %v2326 = vmax.f32 %v1683, %v2310
        %v2327 = vmax.f32 %v1684, %v2311
        %v2328 = vmax.f32 %v1685, %v2312
        %v2329 = vmax.f32 %v1686, %v2313
        %v2330 = vmax.f32 %v1687, %v2314
        %v2331 = vmax.f32 %v1688, %v2315
        %v2332 = vmax.f32 %v1689, %v2316
        %v2333 = vmax.f32 %v1690, %v2317
        %v2334 = vmax.f32 %v1691, %v2318
        %v2335 = vmax.f32 %v1692, %v2319
        %v2336 = vmax.f32 %v1693, %v2320
        %v2337 = vmax.f32 %v1694, %v2321
        %v2338 = vmax.f32 %v1695, %v2322
        %v2339 = vmax.f32 %v1696, %v2323
        %v2340 = vld [vmem:[%s2] sm:$0x3]
        %v2342 = vlaneseq
        %v2343 = vshrl.u32 %v2342, 7
        %v2344 = vsub.s32 0, %v2343
        %v2345 = vrot.slane %v2340, %v2344
        %v2346 = vlaneseq
        %v2347 = vshrl.u32 %v2346, 7
        %v2348 = vsub.s32 1, %v2347
        %v2349 = vrot.slane %v2340, %v2348
        %v2352 = vadd.f32 %v2324, %v2345
        %v2353 = vadd.f32 %v2325, %v2349
        %v2354 = vadd.f32 %v2326, %v2345
        %v2355 = vadd.f32 %v2327, %v2349
        %v2356 = vadd.f32 %v2328, %v2345
        %v2357 = vadd.f32 %v2329, %v2349
        %v2358 = vadd.f32 %v2330, %v2345
        %v2359 = vadd.f32 %v2331, %v2349
        %v2360 = vadd.f32 %v2332, %v2345
        %v2361 = vadd.f32 %v2333, %v2349
        %v2362 = vadd.f32 %v2334, %v2345
        %v2363 = vadd.f32 %v2335, %v2349
        %v2364 = vadd.f32 %v2336, %v2345
        %v2365 = vadd.f32 %v2337, %v2349
        %v2366 = vadd.f32 %v2338, %v2345
        %v2367 = vadd.f32 %v2339, %v2349
        %v2368 = vmax.f32 %v2352, 0.0
        %v2369 = vmax.f32 %v2353, 0.0
        %v2370 = vmax.f32 %v2354, 0.0
        %v2371 = vmax.f32 %v2355, 0.0
        %v2372 = vmax.f32 %v2356, 0.0
        %v2373 = vmax.f32 %v2357, 0.0
        %v2374 = vmax.f32 %v2358, 0.0
        %v2375 = vmax.f32 %v2359, 0.0
        %v2376 = vmax.f32 %v2360, 0.0
        %v2377 = vmax.f32 %v2361, 0.0
        %v2378 = vmax.f32 %v2362, 0.0
        %v2379 = vmax.f32 %v2363, 0.0
        %v2380 = vmax.f32 %v2364, 0.0
        %v2381 = vmax.f32 %v2365, 0.0
        %v2382 = vmax.f32 %v2366, 0.0
        %v2383 = vmax.f32 %v2367, 0.0
        %v2384 = vpack.c.bf16 %v2370, %v2368
        %v2385 = vpack.c.bf16 %v2371, %v2369
        %v2386 = vpack.c.bf16 %v2374, %v2372
        %v2387 = vpack.c.bf16 %v2375, %v2373
        %v2388 = vpack.c.bf16 %v2378, %v2376
        %v2389 = vpack.c.bf16 %v2379, %v2377
        %v2390 = vpack.c.bf16 %v2382, %v2380
        %v2391 = vpack.c.bf16 %v2383, %v2381
        %v2400 = vunpack.c.l.b16 %v2384
        %v2401 = vunpack.c.l.b16 %v2385
        %v2402 = vunpack.c.h.b16 %v2384
        %v2403 = vunpack.c.h.b16 %v2385
        %v2404 = vunpack.c.l.b16 %v2386
        %v2405 = vunpack.c.l.b16 %v2387
        %v2406 = vunpack.c.h.b16 %v2386
        %v2407 = vunpack.c.h.b16 %v2387
        %v2408 = vunpack.c.l.b16 %v2388
        %v2409 = vunpack.c.l.b16 %v2389
        %v2410 = vunpack.c.h.b16 %v2388
        %v2411 = vunpack.c.h.b16 %v2389
        %v2412 = vunpack.c.l.b16 %v2390
        %v2413 = vunpack.c.l.b16 %v2391
        %v2414 = vunpack.c.h.b16 %v2390
        %v2415 = vunpack.c.h.b16 %v2391
        %v2416 = vld [vmem:[#allocation4] sm:$0xf]
        %v2417 = vld [vmem:[#allocation4 + $0x4] sm:$0xf]
        %v2418 = vld [vmem:[#allocation4 + $0x8] sm:$0xf]
        %v2419 = vld [vmem:[#allocation4 + $0xc] sm:$0xf]
        %v2420 = vld [vmem:[#allocation4 + $0x10] sm:$0xf]
        %v2421 = vld [vmem:[#allocation4 + $0x14] sm:$0xf]
        %v2422 = vld [vmem:[#allocation4 + $0x18] sm:$0xf]
        %v2423 = vld [vmem:[#allocation4 + $0x1c] sm:$0xf]
        %v2424 = vld [vmem:[#allocation4 + $0x20] sm:$0xf]
        %v2425 = vld [vmem:[#allocation4 + $0x24] sm:$0xf]
        %v2426 = vld [vmem:[#allocation4 + $0x28] sm:$0xf]
        %v2427 = vld [vmem:[#allocation4 + $0x2c] sm:$0xf]
        %v2428 = vld [vmem:[#allocation4 + $0x30] sm:$0xf]
        %v2429 = vld [vmem:[#allocation4 + $0x34] sm:$0xf]
        %v2430 = vld [vmem:[#allocation4 + $0x38] sm:$0xf]
        %v2431 = vld [vmem:[#allocation4 + $0x3c] sm:$0xf]
        %v2432 = vld [vmem:[#allocation4 + $0x40] sm:$0xf]
        %v2433 = vld [vmem:[#allocation4 + $0x44] sm:$0xf]
        %v2434 = vld [vmem:[#allocation4 + $0x48] sm:$0xf]
        %v2435 = vld [vmem:[#allocation4 + $0x4c] sm:$0xf]
        %s2436 = scalar_lea.vmem [#allocation4], 80
        %v2437 = vld [vmem:[%s2436] sm:$0xf]
        %v2438 = vld [vmem:[%s2436 + $0x4] sm:$0xf]
        %v2439 = vld [vmem:[%s2436 + $0x8] sm:$0xf]
        %v2440 = vld [vmem:[%s2436 + $0xc] sm:$0xf]
        %v2441 = vld [vmem:[%s2436 + $0x10] sm:$0xf]
        %v2442 = vld [vmem:[%s2436 + $0x14] sm:$0xf]
        %v2443 = vld [vmem:[%s2436 + $0x18] sm:$0xf]
        %v2444 = vld [vmem:[%s2436 + $0x1c] sm:$0xf]
        %v2445 = vld [vmem:[%s2436 + $0x20] sm:$0xf]
        %v2446 = vld [vmem:[%s2436 + $0x24] sm:$0xf]
        %v2447 = vld [vmem:[%s2436 + $0x28] sm:$0xf]
        %v2448 = vld [vmem:[%s2436 + $0x2c] sm:$0xf]
        %v2449 = vld [vmem:[%s2436 + $0x30] sm:$0xf]
        %v2450 = vld [vmem:[%s2436 + $0x34] sm:$0xf]
        %v2451 = vld [vmem:[%s2436 + $0x38] sm:$0xf]
        %v2452 = vld [vmem:[%s2436 + $0x3c] sm:$0xf]
        %v2453 = vld [vmem:[%s2436 + $0x40] sm:$0xf]
        %v2454 = vld [vmem:[%s2436 + $0x44] sm:$0xf]
        %v2455 = vld [vmem:[%s2436 + $0x48] sm:$0xf]
        %v2456 = vld [vmem:[%s2436 + $0x4c] sm:$0xf]
        %v2457 = vpack.c.b16 %v2402, %v2402
        %v2458 = vpack.c.b16 %v2403, %v2403
        %v2480 = vunpack.c.l.b16 %v2437
        %v2481 = vunpack.c.l.b16 %v2438
        %v2482 = vunpack.c.l.b16 %v2439
        %v2483 = vunpack.c.l.b16 %v2440
        %v2484 = vunpack.c.l.b16 %v2441
        %v2485 = vunpack.c.l.b16 %v2442
        %v2486 = vunpack.c.l.b16 %v2443
        %v2487 = vunpack.c.l.b16 %v2444
        %v2488 = vunpack.c.l.b16 %v2445
        %v2489 = vunpack.c.l.b16 %v2446
        %v2490 = vunpack.c.l.b16 %v2447
        %v2491 = vunpack.c.l.b16 %v2448
        %v2492 = vunpack.c.l.b16 %v2449
        %v2493 = vunpack.c.l.b16 %v2450
        %v2494 = vunpack.c.l.b16 %v2451
        %v2495 = vunpack.c.l.b16 %v2452
        %v2496 = vunpack.c.l.b16 %v2453
        %v2497 = vunpack.c.l.b16 %v2454
        %v2498 = vunpack.c.l.b16 %v2455
        %v2499 = vunpack.c.l.b16 %v2456
        %v2500 = vpack.c.b16 %v2481, %v2480
        %v2501 = vpack.c.b16 %v2483, %v2482
        %v2502 = vpack.c.b16 %v2485, %v2484
        %v2503 = vpack.c.b16 %v2487, %v2486
        %v2504 = vpack.c.b16 %v2489, %v2488
        %v2505 = vpack.c.b16 %v2491, %v2490
        %v2506 = vpack.c.b16 %v2493, %v2492
        %v2507 = vpack.c.b16 %v2495, %v2494
        %v2508 = vpack.c.b16 %v2497, %v2496
        %v2509 = vpack.c.b16 %v2499, %v2498
        %vm2520 = vcmask 261120
        %v2522 = vsel %vm2520, %v2458, 0
        %2524 = vmatprep.subr.bf16.mxu0 0
        %2525 = vmatpush1.bf16.msra.mxu0 %v2500
        %2526 = vmatprep.subr.bf16.mxu0 0
        %2527 = vmatpush1.bf16.msra.mxu0 %v2501
        %2528 = vmatprep.subr.bf16.mxu0 0
        %2529 = vmatpush1.bf16.msra.mxu0 %v2502
        %2530 = vmatprep.subr.bf16.mxu0 0
        %2531 = vmatpush1.bf16.msra.mxu0 %v2503
        %2532 = vmatprep.subr.bf16.mxu0 0
        %2533 = vmatpush1.bf16.msra.mxu0 %v2504
        %2534 = vmatprep.subr.bf16.mxu0 0
        %2535 = vmatpush1.bf16.msra.mxu0 %v2505
        %2536 = vmatprep.subr.bf16.mxu0 0
        %2537 = vmatpush1.bf16.msra.mxu0 %v2506
        %2538 = vmatprep.subr.bf16.mxu0 0
        %2539 = vmatpush1.bf16.msra.mxu0 %v2507
        %2540 = vmatprep.subr.bf16.mxu0 0
        %2541 = vmatpush1.bf16.msra.mxu0 %v2508
        %2542 = vmatprep.subr.bf16.mxu0 0
        %2543 = vmatpush1.bf16.msra.mxu0 %v2509
        %2544 = vmatprep.subr.bf16.mxu0 0
        %2545 = vmatpush1.bf16.msra.mxu0 0
        %2546 = vmatprep.subr.bf16.mxu0 0
        %2547 = vmatpush1.bf16.msra.mxu0 0
        %2548 = vmatprep.subr.bf16.mxu0 0
        %2549 = vmatpush1.bf16.msra.mxu0 0
        %2550 = vmatprep.subr.bf16.mxu0 0
        %2551 = vmatpush1.bf16.msra.mxu0 0
        %2552 = vmatprep.subr.bf16.mxu0 0
        %2553 = vmatpush1.bf16.msra.mxu0 0
        %2554 = vmatprep.subr.bf16.mxu0 0
        %2555 = vmatpush1.bf16.msra.mxu0 0
        %2556 = vmatprep.mubr.bf16.mxu0 %v2522
        %2557 = vmatmul.mubr.bf16.gmra.mrb[0].mxu0 %v2457
        %v2558 = vpop.f32.mrb[0].mxu0
        %v2559 = vadd.f32 0.0, %v2558
        %v2560 = vpop.f32.mrb[0].mxu0
        %v2561 = vpop.f32.mrb[0].mxu0
        %v2562 = vpop.f32.mrb[0].mxu0
        %2563 = vdwg.mxu0
        %v2564 = vpack.c.b16 %v2400, %v2400
        %v2565 = vpack.c.b16 %v2401, %v2401
        %v2587 = vunpack.c.l.b16 %v2416
        %v2588 = vunpack.c.l.b16 %v2417
        %v2589 = vunpack.c.l.b16 %v2418
        %v2590 = vunpack.c.l.b16 %v2419
        %v2591 = vunpack.c.l.b16 %v2420
        %v2592 = vunpack.c.l.b16 %v2421
        %v2593 = vunpack.c.l.b16 %v2422
        %v2594 = vunpack.c.l.b16 %v2423
        %v2595 = vunpack.c.l.b16 %v2424
        %v2596 = vunpack.c.l.b16 %v2425
        %v2597 = vunpack.c.l.b16 %v2426
        %v2598 = vunpack.c.l.b16 %v2427
        %v2599 = vunpack.c.l.b16 %v2428
        %v2600 = vunpack.c.l.b16 %v2429
        %v2601 = vunpack.c.l.b16 %v2430
        %v2602 = vunpack.c.l.b16 %v2431
        %v2603 = vunpack.c.l.b16 %v2432
        %v2604 = vunpack.c.l.b16 %v2433
        %v2605 = vunpack.c.l.b16 %v2434
        %v2606 = vunpack.c.l.b16 %v2435
        %v2607 = vpack.c.b16 %v2588, %v2587
        %v2608 = vpack.c.b16 %v2590, %v2589
        %v2609 = vpack.c.b16 %v2592, %v2591
        %v2610 = vpack.c.b16 %v2594, %v2593
        %v2611 = vpack.c.b16 %v2596, %v2595
        %v2612 = vpack.c.b16 %v2598, %v2597
        %v2613 = vpack.c.b16 %v2600, %v2599
        %v2614 = vpack.c.b16 %v2602, %v2601
        %v2615 = vpack.c.b16 %v2604, %v2603
        %v2616 = vpack.c.b16 %v2606, %v2605
        %v2628 = vsel %vm2520, %v2565, 0
        %2630 = vmatprep.subr.bf16.mxu0 0
        %2631 = vmatpush1.bf16.msra.mxu0 %v2607
        %2632 = vmatprep.subr.bf16.mxu0 0
        %2633 = vmatpush1.bf16.msra.mxu0 %v2608
        %2634 = vmatprep.subr.bf16.mxu0 0
        %2635 = vmatpush1.bf16.msra.mxu0 %v2609
        %2636 = vmatprep.subr.bf16.mxu0 0
        %2637 = vmatpush1.bf16.msra.mxu0 %v2610
        %2638 = vmatprep.subr.bf16.mxu0 0
        %2639 = vmatpush1.bf16.msra.mxu0 %v2611
        %2640 = vmatprep.subr.bf16.mxu0 0
        %2641 = vmatpush1.bf16.msra.mxu0 %v2612
        %2642 = vmatprep.subr.bf16.mxu0 0
        %2643 = vmatpush1.bf16.msra.mxu0 %v2613
        %2644 = vmatprep.subr.bf16.mxu0 0
        %2645 = vmatpush1.bf16.msra.mxu0 %v2614
        %2646 = vmatprep.subr.bf16.mxu0 0
        %2647 = vmatpush1.bf16.msra.mxu0 %v2615
        %2648 = vmatprep.subr.bf16.mxu0 0
        %2649 = vmatpush1.bf16.msra.mxu0 %v2616
        %2650 = vmatprep.subr.bf16.mxu0 0
        %2651 = vmatpush1.bf16.msra.mxu0 0
        %2652 = vmatprep.subr.bf16.mxu0 0
        %2653 = vmatpush1.bf16.msra.mxu0 0
        %2654 = vmatprep.subr.bf16.mxu0 0
        %2655 = vmatpush1.bf16.msra.mxu0 0
        %2656 = vmatprep.subr.bf16.mxu0 0
        %2657 = vmatpush1.bf16.msra.mxu0 0
        %2658 = vmatprep.subr.bf16.mxu0 0
        %2659 = vmatpush1.bf16.msra.mxu0 0
        %2660 = vmatprep.subr.bf16.mxu0 0
        %2661 = vmatpush1.bf16.msra.mxu0 0
        %2662 = vmatprep.mubr.bf16.mxu0 %v2628
        %2663 = vmatmul.mubr.bf16.gmra.mrb[0].mxu0 %v2564
        %v2664 = vpop.f32.mrb[0].mxu0
        %v2665 = vadd.f32 %v2559, %v2664
        %v2666 = vpop.f32.mrb[0].mxu0
        %v2667 = vpop.f32.mrb[0].mxu0
        %v2668 = vpop.f32.mrb[0].mxu0
        %2669 = vdwg.mxu0
        %s2670 = scalar_lea.vmem [#allocation4], 160
        %v2671 = vld [vmem:[%s2670] sm:$0xf]
        %v2672 = vld [vmem:[%s2670 + $0x4] sm:$0xf]
        %v2673 = vld [vmem:[%s2670 + $0x8] sm:$0xf]
        %v2674 = vld [vmem:[%s2670 + $0xc] sm:$0xf]
        %v2675 = vld [vmem:[%s2670 + $0x10] sm:$0xf]
        %v2676 = vld [vmem:[%s2670 + $0x14] sm:$0xf]
        %v2677 = vld [vmem:[%s2670 + $0x18] sm:$0xf]
        %v2678 = vld [vmem:[%s2670 + $0x1c] sm:$0xf]
        %v2679 = vld [vmem:[%s2670 + $0x20] sm:$0xf]
        %v2680 = vld [vmem:[%s2670 + $0x24] sm:$0xf]
        %v2681 = vld [vmem:[%s2670 + $0x28] sm:$0xf]
        %v2682 = vld [vmem:[%s2670 + $0x2c] sm:$0xf]
        %v2683 = vld [vmem:[%s2670 + $0x30] sm:$0xf]
        %v2684 = vld [vmem:[%s2670 + $0x34] sm:$0xf]
        %v2685 = vld [vmem:[%s2670 + $0x38] sm:$0xf]
        %v2686 = vld [vmem:[%s2670 + $0x3c] sm:$0xf]
        %v2687 = vld [vmem:[%s2670 + $0x40] sm:$0xf]
        %v2688 = vld [vmem:[%s2670 + $0x44] sm:$0xf]
        %v2689 = vld [vmem:[%s2670 + $0x48] sm:$0xf]
        %v2690 = vld [vmem:[%s2670 + $0x4c] sm:$0xf]
        %v2691 = vpack.c.b16 %v2404, %v2404
        %v2692 = vpack.c.b16 %v2405, %v2405
        %v2714 = vunpack.c.l.b16 %v2671
        %v2715 = vunpack.c.l.b16 %v2672
        %v2716 = vunpack.c.l.b16 %v2673
        %v2717 = vunpack.c.l.b16 %v2674
        %v2718 = vunpack.c.l.b16 %v2675
        %v2719 = vunpack.c.l.b16 %v2676
        %v2720 = vunpack.c.l.b16 %v2677
        %v2721 = vunpack.c.l.b16 %v2678
        %v2722 = vunpack.c.l.b16 %v2679
        %v2723 = vunpack.c.l.b16 %v2680
        %v2724 = vunpack.c.l.b16 %v2681
        %v2725 = vunpack.c.l.b16 %v2682
        %v2726 = vunpack.c.l.b16 %v2683
        %v2727 = vunpack.c.l.b16 %v2684
        %v2728 = vunpack.c.l.b16 %v2685
        %v2729 = vunpack.c.l.b16 %v2686
        %v2730 = vunpack.c.l.b16 %v2687
        %v2731 = vunpack.c.l.b16 %v2688
        %v2732 = vunpack.c.l.b16 %v2689
        %v2733 = vunpack.c.l.b16 %v2690
        %v2734 = vpack.c.b16 %v2715, %v2714
        %v2735 = vpack.c.b16 %v2717, %v2716
        %v2736 = vpack.c.b16 %v2719, %v2718
        %v2737 = vpack.c.b16 %v2721, %v2720
        %v2738 = vpack.c.b16 %v2723, %v2722
        %v2739 = vpack.c.b16 %v2725, %v2724
        %v2740 = vpack.c.b16 %v2727, %v2726
        %v2741 = vpack.c.b16 %v2729, %v2728
        %v2742 = vpack.c.b16 %v2731, %v2730
        %v2743 = vpack.c.b16 %v2733, %v2732
        %v2755 = vsel %vm2520, %v2692, 0
        %2757 = vmatprep.subr.bf16.mxu0 0
        %2758 = vmatpush1.bf16.msra.mxu0 %v2734
        %2759 = vmatprep.subr.bf16.mxu0 0
        %2760 = vmatpush1.bf16.msra.mxu0 %v2735
        %2761 = vmatprep.subr.bf16.mxu0 0
        %2762 = vmatpush1.bf16.msra.mxu0 %v2736
        %2763 = vmatprep.subr.bf16.mxu0 0
        %2764 = vmatpush1.bf16.msra.mxu0 %v2737
        %2765 = vmatprep.subr.bf16.mxu0 0
        %2766 = vmatpush1.bf16.msra.mxu0 %v2738
        %2767 = vmatprep.subr.bf16.mxu0 0
        %2768 = vmatpush1.bf16.msra.mxu0 %v2739
        %2769 = vmatprep.subr.bf16.mxu0 0
        %2770 = vmatpush1.bf16.msra.mxu0 %v2740
        %2771 = vmatprep.subr.bf16.mxu0 0
        %2772 = vmatpush1.bf16.msra.mxu0 %v2741
        %2773 = vmatprep.subr.bf16.mxu0 0
        %2774 = vmatpush1.bf16.msra.mxu0 %v2742
        %2775 = vmatprep.subr.bf16.mxu0 0
        %2776 = vmatpush1.bf16.msra.mxu0 %v2743
        %2777 = vmatprep.subr.bf16.mxu0 0
        %2778 = vmatpush1.bf16.msra.mxu0 0
        %2779 = vmatprep.subr.bf16.mxu0 0
        %2780 = vmatpush1.bf16.msra.mxu0 0
        %2781 = vmatprep.subr.bf16.mxu0 0
        %2782 = vmatpush1.bf16.msra.mxu0 0
        %2783 = vmatprep.subr.bf16.mxu0 0
        %2784 = vmatpush1.bf16.msra.mxu0 0
        %2785 = vmatprep.subr.bf16.mxu0 0
        %2786 = vmatpush1.bf16.msra.mxu0 0
        %2787 = vmatprep.subr.bf16.mxu0 0
        %2788 = vmatpush1.bf16.msra.mxu0 0
        %2789 = vmatprep.mubr.bf16.mxu0 %v2755
        %2790 = vmatmul.mubr.bf16.gmra.mrb[0].mxu0 %v2691
        %v2791 = vpop.f32.mrb[0].mxu0
        %v2792 = vadd.f32 0.0, %v2791
        %v2793 = vpop.f32.mrb[0].mxu0
        %v2794 = vpop.f32.mrb[0].mxu0
        %v2795 = vpop.f32.mrb[0].mxu0
        %2796 = vdwg.mxu0
        %v2797 = vadd.f32 %v2665, %v2792
        %s2798 = scalar_lea.vmem [#allocation4], 240
        %v2799 = vld [vmem:[%s2798] sm:$0xf]
        %v2800 = vld [vmem:[%s2798 + $0x4] sm:$0xf]
        %v2801 = vld [vmem:[%s2798 + $0x8] sm:$0xf]
        %v2802 = vld [vmem:[%s2798 + $0xc] sm:$0xf]
        %v2803 = vld [vmem:[%s2798 + $0x10] sm:$0xf]
        %v2804 = vld [vmem:[%s2798 + $0x14] sm:$0xf]
        %v2805 = vld [vmem:[%s2798 + $0x18] sm:$0xf]
        %v2806 = vld [vmem:[%s2798 + $0x1c] sm:$0xf]
        %v2807 = vld [vmem:[%s2798 + $0x20] sm:$0xf]
        %v2808 = vld [vmem:[%s2798 + $0x24] sm:$0xf]
        %v2809 = vld [vmem:[%s2798 + $0x28] sm:$0xf]
        %v2810 = vld [vmem:[%s2798 + $0x2c] sm:$0xf]
        %v2811 = vld [vmem:[%s2798 + $0x30] sm:$0xf]
        %v2812 = vld [vmem:[%s2798 + $0x34] sm:$0xf]
        %v2813 = vld [vmem:[%s2798 + $0x38] sm:$0xf]
        %v2814 = vld [vmem:[%s2798 + $0x3c] sm:$0xf]
        %v2815 = vld [vmem:[%s2798 + $0x40] sm:$0xf]
        %v2816 = vld [vmem:[%s2798 + $0x44] sm:$0xf]
        %v2817 = vld [vmem:[%s2798 + $0x48] sm:$0xf]
        %v2818 = vld [vmem:[%s2798 + $0x4c] sm:$0xf]
        %v2819 = vpack.c.b16 %v2406, %v2406
        %v2820 = vpack.c.b16 %v2407, %v2407
        %v2842 = vunpack.c.l.b16 %v2799
        %v2843 = vunpack.c.l.b16 %v2800
        %v2844 = vunpack.c.l.b16 %v2801
        %v2845 = vunpack.c.l.b16 %v2802
        %v2846 = vunpack.c.l.b16 %v2803
        %v2847 = vunpack.c.l.b16 %v2804
        %v2848 = vunpack.c.l.b16 %v2805
        %v2849 = vunpack.c.l.b16 %v2806
        %v2850 = vunpack.c.l.b16 %v2807
        %v2851 = vunpack.c.l.b16 %v2808
        %v2852 = vunpack.c.l.b16 %v2809
        %v2853 = vunpack.c.l.b16 %v2810
        %v2854 = vunpack.c.l.b16 %v2811
        %v2855 = vunpack.c.l.b16 %v2812
        %v2856 = vunpack.c.l.b16 %v2813
        %v2857 = vunpack.c.l.b16 %v2814
        %v2858 = vunpack.c.l.b16 %v2815
        %v2859 = vunpack.c.l.b16 %v2816
        %v2860 = vunpack.c.l.b16 %v2817
        %v2861 = vunpack.c.l.b16 %v2818
        %v2862 = vpack.c.b16 %v2843, %v2842
        %v2863 = vpack.c.b16 %v2845, %v2844
        %v2864 = vpack.c.b16 %v2847, %v2846
        %v2865 = vpack.c.b16 %v2849, %v2848
        %v2866 = vpack.c.b16 %v2851, %v2850
        %v2867 = vpack.c.b16 %v2853, %v2852
        %v2868 = vpack.c.b16 %v2855, %v2854
        %v2869 = vpack.c.b16 %v2857, %v2856
        %v2870 = vpack.c.b16 %v2859, %v2858
        %v2871 = vpack.c.b16 %v2861, %v2860
        %v2883 = vsel %vm2520, %v2820, 0
        %2885 = vmatprep.subr.bf16.mxu0 0
        %2886 = vmatpush1.bf16.msra.mxu0 %v2862
        %2887 = vmatprep.subr.bf16.mxu0 0
        %2888 = vmatpush1.bf16.msra.mxu0 %v2863
        %2889 = vmatprep.subr.bf16.mxu0 0
        %2890 = vmatpush1.bf16.msra.mxu0 %v2864
        %2891 = vmatprep.subr.bf16.mxu0 0
        %2892 = vmatpush1.bf16.msra.mxu0 %v2865
        %2893 = vmatprep.subr.bf16.mxu0 0
        %2894 = vmatpush1.bf16.msra.mxu0 %v2866
        %2895 = vmatprep.subr.bf16.mxu0 0
        %2896 = vmatpush1.bf16.msra.mxu0 %v2867
        %2897 = vmatprep.subr.bf16.mxu0 0
        %2898 = vmatpush1.bf16.msra.mxu0 %v2868
        %2899 = vmatprep.subr.bf16.mxu0 0
        %2900 = vmatpush1.bf16.msra.mxu0 %v2869
        %2901 = vmatprep.subr.bf16.mxu0 0
        %2902 = vmatpush1.bf16.msra.mxu0 %v2870
        %2903 = vmatprep.subr.bf16.mxu0 0
        %2904 = vmatpush1.bf16.msra.mxu0 %v2871
        %2905 = vmatprep.subr.bf16.mxu0 0
        %2906 = vmatpush1.bf16.msra.mxu0 0
        %2907 = vmatprep.subr.bf16.mxu0 0
        %2908 = vmatpush1.bf16.msra.mxu0 0
        %2909 = vmatprep.subr.bf16.mxu0 0
        %2910 = vmatpush1.bf16.msra.mxu0 0
        %2911 = vmatprep.subr.bf16.mxu0 0
        %2912 = vmatpush1.bf16.msra.mxu0 0
        %2913 = vmatprep.subr.bf16.mxu0 0
        %2914 = vmatpush1.bf16.msra.mxu0 0
        %2915 = vmatprep.subr.bf16.mxu0 0
        %2916 = vmatpush1.bf16.msra.mxu0 0
        %2917 = vmatprep.mubr.bf16.mxu0 %v2883
        %2918 = vmatmul.mubr.bf16.gmra.mrb[0].mxu0 %v2819
        %v2919 = vpop.f32.mrb[0].mxu0
        %v2920 = vadd.f32 0.0, %v2919
        %v2921 = vpop.f32.mrb[0].mxu0
        %v2922 = vpop.f32.mrb[0].mxu0
        %v2923 = vpop.f32.mrb[0].mxu0
        %2924 = vdwg.mxu0
        %v2925 = vadd.f32 %v2797, %v2920
        %s2926 = scalar_lea.vmem [#allocation4], 320
        %v2927 = vld [vmem:[%s2926] sm:$0xf]
        %v2928 = vld [vmem:[%s2926 + $0x4] sm:$0xf]
        %v2929 = vld [vmem:[%s2926 + $0x8] sm:$0xf]
        %v2930 = vld [vmem:[%s2926 + $0xc] sm:$0xf]
        %v2931 = vld [vmem:[%s2926 + $0x10] sm:$0xf]
        %v2932 = vld [vmem:[%s2926 + $0x14] sm:$0xf]
        %v2933 = vld [vmem:[%s2926 + $0x18] sm:$0xf]
        %v2934 = vld [vmem:[%s2926 + $0x1c] sm:$0xf]
        %v2935 = vld [vmem:[%s2926 + $0x20] sm:$0xf]
        %v2936 = vld [vmem:[%s2926 + $0x24] sm:$0xf]
        %v2937 = vld [vmem:[%s2926 + $0x28] sm:$0xf]
        %v2938 = vld [vmem:[%s2926 + $0x2c] sm:$0xf]
        %v2939 = vld [vmem:[%s2926 + $0x30] sm:$0xf]
        %v2940 = vld [vmem:[%s2926 + $0x34] sm:$0xf]
        %v2941 = vld [vmem:[%s2926 + $0x38] sm:$0xf]
        %v2942 = vld [vmem:[%s2926 + $0x3c] sm:$0xf]
        %v2943 = vld [vmem:[%s2926 + $0x40] sm:$0xf]
        %v2944 = vld [vmem:[%s2926 + $0x44] sm:$0xf]
        %v2945 = vld [vmem:[%s2926 + $0x48] sm:$0xf]
        %v2946 = vld [vmem:[%s2926 + $0x4c] sm:$0xf]
        %v2947 = vpack.c.b16 %v2408, %v2408
        %v2948 = vpack.c.b16 %v2409, %v2409
        %v2970 = vunpack.c.l.b16 %v2927
        %v2971 = vunpack.c.l.b16 %v2928
        %v2972 = vunpack.c.l.b16 %v2929
        %v2973 = vunpack.c.l.b16 %v2930
        %v2974 = vunpack.c.l.b16 %v2931
        %v2975 = vunpack.c.l.b16 %v2932
        %v2976 = vunpack.c.l.b16 %v2933
        %v2977 = vunpack.c.l.b16 %v2934
        %v2978 = vunpack.c.l.b16 %v2935
        %v2979 = vunpack.c.l.b16 %v2936
        %v2980 = vunpack.c.l.b16 %v2937
        %v2981 = vunpack.c.l.b16 %v2938
        %v2982 = vunpack.c.l.b16 %v2939
        %v2983 = vunpack.c.l.b16 %v2940
        %v2984 = vunpack.c.l.b16 %v2941
        %v2985 = vunpack.c.l.b16 %v2942
        %v2986 = vunpack.c.l.b16 %v2943
        %v2987 = vunpack.c.l.b16 %v2944
        %v2988 = vunpack.c.l.b16 %v2945
        %v2989 = vunpack.c.l.b16 %v2946
        %v2990 = vpack.c.b16 %v2971, %v2970
        %v2991 = vpack.c.b16 %v2973, %v2972
        %v2992 = vpack.c.b16 %v2975, %v2974
        %v2993 = vpack.c.b16 %v2977, %v2976
        %v2994 = vpack.c.b16 %v2979, %v2978
        %v2995 = vpack.c.b16 %v2981, %v2980
        %v2996 = vpack.c.b16 %v2983, %v2982
        %v2997 = vpack.c.b16 %v2985, %v2984
        %v2998 = vpack.c.b16 %v2987, %v2986
        %v2999 = vpack.c.b16 %v2989, %v2988
        %v3011 = vsel %vm2520, %v2948, 0
        %3013 = vmatprep.subr.bf16.mxu0 0
        %3014 = vmatpush1.bf16.msra.mxu0 %v2990
        %3015 = vmatprep.subr.bf16.mxu0 0
        %3016 = vmatpush1.bf16.msra.mxu0 %v2991
        %3017 = vmatprep.subr.bf16.mxu0 0
        %3018 = vmatpush1.bf16.msra.mxu0 %v2992
        %3019 = vmatprep.subr.bf16.mxu0 0
        %3020 = vmatpush1.bf16.msra.mxu0 %v2993
        %3021 = vmatprep.subr.bf16.mxu0 0
        %3022 = vmatpush1.bf16.msra.mxu0 %v2994
        %3023 = vmatprep.subr.bf16.mxu0 0
        %3024 = vmatpush1.bf16.msra.mxu0 %v2995
        %3025 = vmatprep.subr.bf16.mxu0 0
        %3026 = vmatpush1.bf16.msra.mxu0 %v2996
        %3027 = vmatprep.subr.bf16.mxu0 0
        %3028 = vmatpush1.bf16.msra.mxu0 %v2997
        %3029 = vmatprep.subr.bf16.mxu0 0
        %3030 = vmatpush1.bf16.msra.mxu0 %v2998
        %3031 = vmatprep.subr.bf16.mxu0 0
        %3032 = vmatpush1.bf16.msra.mxu0 %v2999
        %3033 = vmatprep.subr.bf16.mxu0 0
        %3034 = vmatpush1.bf16.msra.mxu0 0
        %3035 = vmatprep.subr.bf16.mxu0 0
        %3036 = vmatpush1.bf16.msra.mxu0 0
        %3037 = vmatprep.subr.bf16.mxu0 0
        %3038 = vmatpush1.bf16.msra.mxu0 0
        %3039 = vmatprep.subr.bf16.mxu0 0
        %3040 = vmatpush1.bf16.msra.mxu0 0
        %3041 = vmatprep.subr.bf16.mxu0 0
        %3042 = vmatpush1.bf16.msra.mxu0 0
        %3043 = vmatprep.subr.bf16.mxu0 0
        %3044 = vmatpush1.bf16.msra.mxu0 0
        %3045 = vmatprep.mubr.bf16.mxu0 %v3011
        %3046 = vmatmul.mubr.bf16.gmra.mrb[0].mxu0 %v2947
        %v3047 = vpop.f32.mrb[0].mxu0
        %v3048 = vadd.f32 0.0, %v3047
        %v3049 = vpop.f32.mrb[0].mxu0
        %v3050 = vpop.f32.mrb[0].mxu0
        %v3051 = vpop.f32.mrb[0].mxu0
        %3052 = vdwg.mxu0
        %v3053 = vadd.f32 %v2925, %v3048
        %s3054 = scalar_lea.vmem [#allocation4], 400
        %v3055 = vld [vmem:[%s3054] sm:$0xf]
        %v3056 = vld [vmem:[%s3054 + $0x4] sm:$0xf]
        %v3057 = vld [vmem:[%s3054 + $0x8] sm:$0xf]
        %v3058 = vld [vmem:[%s3054 + $0xc] sm:$0xf]
        %v3059 = vld [vmem:[%s3054 + $0x10] sm:$0xf]
        %v3060 = vld [vmem:[%s3054 + $0x14] sm:$0xf]
        %v3061 = vld [vmem:[%s3054 + $0x18] sm:$0xf]
        %v3062 = vld [vmem:[%s3054 + $0x1c] sm:$0xf]
        %v3063 = vld [vmem:[%s3054 + $0x20] sm:$0xf]
        %v3064 = vld [vmem:[%s3054 + $0x24] sm:$0xf]
        %v3065 = vld [vmem:[%s3054 + $0x28] sm:$0xf]
        %v3066 = vld [vmem:[%s3054 + $0x2c] sm:$0xf]
        %v3067 = vld [vmem:[%s3054 + $0x30] sm:$0xf]
        %v3068 = vld [vmem:[%s3054 + $0x34] sm:$0xf]
        %v3069 = vld [vmem:[%s3054 + $0x38] sm:$0xf]
        %v3070 = vld [vmem:[%s3054 + $0x3c] sm:$0xf]
        %v3071 = vld [vmem:[%s3054 + $0x40] sm:$0xf]
        %v3072 = vld [vmem:[%s3054 + $0x44] sm:$0xf]
        %v3073 = vld [vmem:[%s3054 + $0x48] sm:$0xf]
        %v3074 = vld [vmem:[%s3054 + $0x4c] sm:$0xf]
        %v3075 = vpack.c.b16 %v2410, %v2410
        %v3076 = vpack.c.b16 %v2411, %v2411
        %v3098 = vunpack.c.l.b16 %v3055
        %v3099 = vunpack.c.l.b16 %v3056
        %v3100 = vunpack.c.l.b16 %v3057
        %v3101 = vunpack.c.l.b16 %v3058
        %v3102 = vunpack.c.l.b16 %v3059
        %v3103 = vunpack.c.l.b16 %v3060
        %v3104 = vunpack.c.l.b16 %v3061
        %v3105 = vunpack.c.l.b16 %v3062
        %v3106 = vunpack.c.l.b16 %v3063
        %v3107 = vunpack.c.l.b16 %v3064
        %v3108 = vunpack.c.l.b16 %v3065
        %v3109 = vunpack.c.l.b16 %v3066
        %v3110 = vunpack.c.l.b16 %v3067
        %v3111 = vunpack.c.l.b16 %v3068
        %v3112 = vunpack.c.l.b16 %v3069
        %v3113 = vunpack.c.l.b16 %v3070
        %v3114 = vunpack.c.l.b16 %v3071
        %v3115 = vunpack.c.l.b16 %v3072
        %v3116 = vunpack.c.l.b16 %v3073
        %v3117 = vunpack.c.l.b16 %v3074
        %v3118 = vpack.c.b16 %v3099, %v3098
        %v3119 = vpack.c.b16 %v3101, %v3100
        %v3120 = vpack.c.b16 %v3103, %v3102
        %v3121 = vpack.c.b16 %v3105, %v3104
        %v3122 = vpack.c.b16 %v3107, %v3106
        %v3123 = vpack.c.b16 %v3109, %v3108
        %v3124 = vpack.c.b16 %v3111, %v3110
        %v3125 = vpack.c.b16 %v3113, %v3112
        %v3126 = vpack.c.b16 %v3115, %v3114
        %v3127 = vpack.c.b16 %v3117, %v3116
        %v3139 = vsel %vm2520, %v3076, 0
        %3141 = vmatprep.subr.bf16.mxu0 0
        %3142 = vmatpush1.bf16.msra.mxu0 %v3118
        %3143 = vmatprep.subr.bf16.mxu0 0
        %3144 = vmatpush1.bf16.msra.mxu0 %v3119
        %3145 = vmatprep.subr.bf16.mxu0 0
        %3146 = vmatpush1.bf16.msra.mxu0 %v3120
        %3147 = vmatprep.subr.bf16.mxu0 0
        %3148 = vmatpush1.bf16.msra.mxu0 %v3121
        %3149 = vmatprep.subr.bf16.mxu0 0
        %3150 = vmatpush1.bf16.msra.mxu0 %v3122
        %3151 = vmatprep.subr.bf16.mxu0 0
        %3152 = vmatpush1.bf16.msra.mxu0 %v3123
        %3153 = vmatprep.subr.bf16.mxu0 0
        %3154 = vmatpush1.bf16.msra.mxu0 %v3124
        %3155 = vmatprep.subr.bf16.mxu0 0
        %3156 = vmatpush1.bf16.msra.mxu0 %v3125
        %3157 = vmatprep.subr.bf16.mxu0 0
        %3158 = vmatpush1.bf16.msra.mxu0 %v3126
        %3159 = vmatprep.subr.bf16.mxu0 0
        %3160 = vmatpush1.bf16.msra.mxu0 %v3127
        %3161 = vmatprep.subr.bf16.mxu0 0
        %3162 = vmatpush1.bf16.msra.mxu0 0
        %3163 = vmatprep.subr.bf16.mxu0 0
        %3164 = vmatpush1.bf16.msra.mxu0 0
        %3165 = vmatprep.subr.bf16.mxu0 0
        %3166 = vmatpush1.bf16.msra.mxu0 0
        %3167 = vmatprep.subr.bf16.mxu0 0
        %3168 = vmatpush1.bf16.msra.mxu0 0
        %3169 = vmatprep.subr.bf16.mxu0 0
        %3170 = vmatpush1.bf16.msra.mxu0 0
        %3171 = vmatprep.subr.bf16.mxu0 0
        %3172 = vmatpush1.bf16.msra.mxu0 0
        %3173 = vmatprep.mubr.bf16.mxu0 %v3139
        %3174 = vmatmul.mubr.bf16.gmra.mrb[0].mxu0 %v3075
        %v3175 = vpop.f32.mrb[0].mxu0
        %v3176 = vadd.f32 0.0, %v3175
        %v3177 = vpop.f32.mrb[0].mxu0
        %v3178 = vpop.f32.mrb[0].mxu0
        %v3179 = vpop.f32.mrb[0].mxu0
        %3180 = vdwg.mxu0
        %v3181 = vadd.f32 %v3053, %v3176
        %s3182 = scalar_lea.vmem [#allocation4], 480
        %v3183 = vld [vmem:[%s3182] sm:$0xf]
        %v3184 = vld [vmem:[%s3182 + $0x4] sm:$0xf]
        %v3185 = vld [vmem:[%s3182 + $0x8] sm:$0xf]
        %v3186 = vld [vmem:[%s3182 + $0xc] sm:$0xf]
        %v3187 = vld [vmem:[%s3182 + $0x10] sm:$0xf]
        %v3188 = vld [vmem:[%s3182 + $0x14] sm:$0xf]
        %v3189 = vld [vmem:[%s3182 + $0x18] sm:$0xf]
        %v3190 = vld [vmem:[%s3182 + $0x1c] sm:$0xf]
        %v3191 = vld [vmem:[%s3182 + $0x20] sm:$0xf]
        %v3192 = vld [vmem:[%s3182 + $0x24] sm:$0xf]
        %v3193 = vld [vmem:[%s3182 + $0x28] sm:$0xf]
        %v3194 = vld [vmem:[%s3182 + $0x2c] sm:$0xf]
        %v3195 = vld [vmem:[%s3182 + $0x30] sm:$0xf]
        %v3196 = vld [vmem:[%s3182 + $0x34] sm:$0xf]
        %v3197 = vld [vmem:[%s3182 + $0x38] sm:$0xf]
        %v3198 = vld [vmem:[%s3182 + $0x3c] sm:$0xf]
        %v3199 = vld [vmem:[%s3182 + $0x40] sm:$0xf]
        %v3200 = vld [vmem:[%s3182 + $0x44] sm:$0xf]
        %v3201 = vld [vmem:[%s3182 + $0x48] sm:$0xf]
        %v3202 = vld [vmem:[%s3182 + $0x4c] sm:$0xf]
        %v3203 = vpack.c.b16 %v2412, %v2412
        %v3204 = vpack.c.b16 %v2413, %v2413
        %v3226 = vunpack.c.l.b16 %v3183
        %v3227 = vunpack.c.l.b16 %v3184
        %v3228 = vunpack.c.l.b16 %v3185
        %v3229 = vunpack.c.l.b16 %v3186
        %v3230 = vunpack.c.l.b16 %v3187
        %v3231 = vunpack.c.l.b16 %v3188
        %v3232 = vunpack.c.l.b16 %v3189
        %v3233 = vunpack.c.l.b16 %v3190
        %v3234 = vunpack.c.l.b16 %v3191
        %v3235 = vunpack.c.l.b16 %v3192
        %v3236 = vunpack.c.l.b16 %v3193
        %v3237 = vunpack.c.l.b16 %v3194
        %v3238 = vunpack.c.l.b16 %v3195
        %v3239 = vunpack.c.l.b16 %v3196
        %v3240 = vunpack.c.l.b16 %v3197
        %v3241 = vunpack.c.l.b16 %v3198
        %v3242 = vunpack.c.l.b16 %v3199
        %v3243 = vunpack.c.l.b16 %v3200
        %v3244 = vunpack.c.l.b16 %v3201
        %v3245 = vunpack.c.l.b16 %v3202
        %v3246 = vpack.c.b16 %v3227, %v3226
        %v3247 = vpack.c.b16 %v3229, %v3228
        %v3248 = vpack.c.b16 %v3231, %v3230
        %v3249 = vpack.c.b16 %v3233, %v3232
        %v3250 = vpack.c.b16 %v3235, %v3234
        %v3251 = vpack.c.b16 %v3237, %v3236
        %v3252 = vpack.c.b16 %v3239, %v3238
        %v3253 = vpack.c.b16 %v3241, %v3240
        %v3254 = vpack.c.b16 %v3243, %v3242
        %v3255 = vpack.c.b16 %v3245, %v3244
        %v3267 = vsel %vm2520, %v3204, 0
        %3269 = vmatprep.subr.bf16.mxu0 0
        %3270 = vmatpush1.bf16.msra.mxu0 %v3246
        %3271 = vmatprep.subr.bf16.mxu0 0
        %3272 = vmatpush1.bf16.msra.mxu0 %v3247
        %3273 = vmatprep.subr.bf16.mxu0 0
        %3274 = vmatpush1.bf16.msra.mxu0 %v3248
        %3275 = vmatprep.subr.bf16.mxu0 0
        %3276 = vmatpush1.bf16.msra.mxu0 %v3249
        %3277 = vmatprep.subr.bf16.mxu0 0
        %3278 = vmatpush1.bf16.msra.mxu0 %v3250
        %3279 = vmatprep.subr.bf16.mxu0 0
        %3280 = vmatpush1.bf16.msra.mxu0 %v3251
        %3281 = vmatprep.subr.bf16.mxu0 0
        %3282 = vmatpush1.bf16.msra.mxu0 %v3252
        %3283 = vmatprep.subr.bf16.mxu0 0
        %3284 = vmatpush1.bf16.msra.mxu0 %v3253
        %3285 = vmatprep.subr.bf16.mxu0 0
        %3286 = vmatpush1.bf16.msra.mxu0 %v3254
        %3287 = vmatprep.subr.bf16.mxu0 0
        %3288 = vmatpush1.bf16.msra.mxu0 %v3255
        %3289 = vmatprep.subr.bf16.mxu0 0
        %3290 = vmatpush1.bf16.msra.mxu0 0
        %3291 = vmatprep.subr.bf16.mxu0 0
        %3292 = vmatpush1.bf16.msra.mxu0 0
        %3293 = vmatprep.subr.bf16.mxu0 0
        %3294 = vmatpush1.bf16.msra.mxu0 0
        %3295 = vmatprep.subr.bf16.mxu0 0
        %3296 = vmatpush1.bf16.msra.mxu0 0
        %3297 = vmatprep.subr.bf16.mxu0 0
        %3298 = vmatpush1.bf16.msra.mxu0 0
        %3299 = vmatprep.subr.bf16.mxu0 0
        %3300 = vmatpush1.bf16.msra.mxu0 0
        %3301 = vmatprep.mubr.bf16.mxu0 %v3267
        %3302 = vmatmul.mubr.bf16.gmra.mrb[0].mxu0 %v3203
        %v3303 = vpop.f32.mrb[0].mxu0
        %v3304 = vadd.f32 0.0, %v3303
        %v3305 = vpop.f32.mrb[0].mxu0
        %v3306 = vpop.f32.mrb[0].mxu0
        %v3307 = vpop.f32.mrb[0].mxu0
        %3308 = vdwg.mxu0
        %v3309 = vadd.f32 %v3181, %v3304
        %s3310 = scalar_lea.vmem [#allocation4], 560
        %v3311 = vld [vmem:[%s3310] sm:$0xf]
        %v3312 = vld [vmem:[%s3310 + $0x4] sm:$0xf]
        %v3313 = vld [vmem:[%s3310 + $0x8] sm:$0xf]
        %v3314 = vld [vmem:[%s3310 + $0xc] sm:$0xf]
        %v3315 = vld [vmem:[%s3310 + $0x10] sm:$0xf]
        %v3316 = vld [vmem:[%s3310 + $0x14] sm:$0xf]
        %v3317 = vld [vmem:[%s3310 + $0x18] sm:$0xf]
        %v3318 = vld [vmem:[%s3310 + $0x1c] sm:$0xf]
        %v3319 = vld [vmem:[%s3310 + $0x20] sm:$0xf]
        %v3320 = vld [vmem:[%s3310 + $0x24] sm:$0xf]
        %v3321 = vld [vmem:[%s3310 + $0x28] sm:$0xf]
        %v3322 = vld [vmem:[%s3310 + $0x2c] sm:$0xf]
        %v3323 = vld [vmem:[%s3310 + $0x30] sm:$0xf]
        %v3324 = vld [vmem:[%s3310 + $0x34] sm:$0xf]
        %v3325 = vld [vmem:[%s3310 + $0x38] sm:$0xf]
        %v3326 = vld [vmem:[%s3310 + $0x3c] sm:$0xf]
        %v3327 = vld [vmem:[%s3310 + $0x40] sm:$0xf]
        %v3328 = vld [vmem:[%s3310 + $0x44] sm:$0xf]
        %v3329 = vld [vmem:[%s3310 + $0x48] sm:$0xf]
        %v3330 = vld [vmem:[%s3310 + $0x4c] sm:$0xf]
        %v3331 = vpack.c.b16 %v2414, %v2414
        %v3332 = vpack.c.b16 %v2415, %v2415
        %v3354 = vunpack.c.l.b16 %v3311
        %v3355 = vunpack.c.l.b16 %v3312
        %v3356 = vunpack.c.l.b16 %v3313
        %v3357 = vunpack.c.l.b16 %v3314
        %v3358 = vunpack.c.l.b16 %v3315
        %v3359 = vunpack.c.l.b16 %v3316
        %v3360 = vunpack.c.l.b16 %v3317
        %v3361 = vunpack.c.l.b16 %v3318
        %v3362 = vunpack.c.l.b16 %v3319
        %v3363 = vunpack.c.l.b16 %v3320
        %v3364 = vunpack.c.l.b16 %v3321
        %v3365 = vunpack.c.l.b16 %v3322
        %v3366 = vunpack.c.l.b16 %v3323
        %v3367 = vunpack.c.l.b16 %v3324
        %v3368 = vunpack.c.l.b16 %v3325
        %v3369 = vunpack.c.l.b16 %v3326
        %v3370 = vunpack.c.l.b16 %v3327
        %v3371 = vunpack.c.l.b16 %v3328
        %v3372 = vunpack.c.l.b16 %v3329
        %v3373 = vunpack.c.l.b16 %v3330
        %v3374 = vpack.c.b16 %v3355, %v3354
        %v3375 = vpack.c.b16 %v3357, %v3356
        %v3376 = vpack.c.b16 %v3359, %v3358
        %v3377 = vpack.c.b16 %v3361, %v3360
        %v3378 = vpack.c.b16 %v3363, %v3362
        %v3379 = vpack.c.b16 %v3365, %v3364
        %v3380 = vpack.c.b16 %v3367, %v3366
        %v3381 = vpack.c.b16 %v3369, %v3368
        %v3382 = vpack.c.b16 %v3371, %v3370
        %v3383 = vpack.c.b16 %v3373, %v3372
        %v3395 = vsel %vm2520, %v3332, 0
        %3397 = vmatprep.subr.bf16.mxu0 0
        %3398 = vmatpush1.bf16.msra.mxu0 %v3374
        %3399 = vmatprep.subr.bf16.mxu0 0
        %3400 = vmatpush1.bf16.msra.mxu0 %v3375
        %3401 = vmatprep.subr.bf16.mxu0 0
        %3402 = vmatpush1.bf16.msra.mxu0 %v3376
        %3403 = vmatprep.subr.bf16.mxu0 0
        %3404 = vmatpush1.bf16.msra.mxu0 %v3377
        %3405 = vmatprep.subr.bf16.mxu0 0
        %3406 = vmatpush1.bf16.msra.mxu0 %v3378
        %3407 = vmatprep.subr.bf16.mxu0 0
        %3408 = vmatpush1.bf16.msra.mxu0 %v3379
        %3409 = vmatprep.subr.bf16.mxu0 0
        %3410 = vmatpush1.bf16.msra.mxu0 %v3380
        %3411 = vmatprep.subr.bf16.mxu0 0
        %3412 = vmatpush1.bf16.msra.mxu0 %v3381
        %3413 = vmatprep.subr.bf16.mxu0 0
        %3414 = vmatpush1.bf16.msra.mxu0 %v3382
        %3415 = vmatprep.subr.bf16.mxu0 0
        %3416 = vmatpush1.bf16.msra.mxu0 %v3383
        %3417 = vmatprep.subr.bf16.mxu0 0
        %3418 = vmatpush1.bf16.msra.mxu0 0
        %3419 = vmatprep.subr.bf16.mxu0 0
        %3420 = vmatpush1.bf16.msra.mxu0 0
        %3421 = vmatprep.subr.bf16.mxu0 0
        %3422 = vmatpush1.bf16.msra.mxu0 0
        %3423 = vmatprep.subr.bf16.mxu0 0
        %3424 = vmatpush1.bf16.msra.mxu0 0
        %3425 = vmatprep.subr.bf16.mxu0 0
        %3426 = vmatpush1.bf16.msra.mxu0 0
        %3427 = vmatprep.subr.bf16.mxu0 0
        %3428 = vmatpush1.bf16.msra.mxu0 0
        %3429 = vmatprep.mubr.bf16.mxu0 %v3395
        %3430 = vmatmul.mubr.bf16.gmra.mrb[0].mxu0 %v3331
        %v3431 = vpop.f32.mrb[0].mxu0
        %v3432 = vadd.f32 0.0, %v3431
        %v3433 = vpop.f32.mrb[0].mxu0
        %v3434 = vpop.f32.mrb[0].mxu0
        %v3435 = vpop.f32.mrb[0].mxu0
        %3436 = vdwg.mxu0
        %v3437 = vadd.f32 %v3309, %v3432
        %v3438 = vld [vmem:[%s4] sm:$0x1]
        %v3440 = vlaneseq
        %v3441 = vshrl.u32 %v3440, 7
        %v3442 = vsub.s32 0, %v3441
        %v3443 = vrot.slane %v3438, %v3442
        %v3445 = vadd.f32 %v3437, %v3443
        %v3446 = vmax.f32 %v3445, 0.0
        %v3447 = vpack.c.bf16 %v3446, %v3446
        %v3448 = vld [vmem:[%s5] sm:$0xf]
        %v3449 = vld [vmem:[%s5 + $0x4] sm:$0xf]
        %v3450 = vld [vmem:[%s5 + $0x8] sm:$0xf]
        %v3451 = vld [vmem:[%s5 + $0xc] sm:$0xf]
        %v3452 = vld [vmem:[%s5 + $0x10] sm:$0xf]
        %v3453 = vld [vmem:[%s5 + $0x14] sm:$0xf]
        %v3454 = vld [vmem:[%s5 + $0x18] sm:$0xf]
        %v3455 = vld [vmem:[%s5 + $0x1c] sm:$0xf]
        %v3456 = vld [vmem:[%s5 + $0x20] sm:$0xf]
        %v3457 = vld [vmem:[%s5 + $0x24] sm:$0xf]
        %v3458 = vld [vmem:[%s5 + $0x28] sm:$0xf]
        %v3459 = vld [vmem:[%s5 + $0x2c] sm:$0xf]
        %v3460 = vld [vmem:[%s5 + $0x30] sm:$0xf]
        %v3461 = vld [vmem:[%s5 + $0x34] sm:$0xf]
        %v3462 = vld [vmem:[%s5 + $0x38] sm:$0xf]
        %v3463 = vld [vmem:[%s5 + $0x3c] sm:$0xf]
        %v3464 = vld [vmem:[%s6] sm:$0x1]
        %v3466 = vlaneseq
        %v3467 = vshrl.u32 %v3466, 7
        %v3468 = vsub.s32 0, %v3467
        %v3469 = vrot.slane %v3464, %v3468
        %v3487 = vunpack.c.l.b16 %v3448
        %v3488 = vunpack.c.l.b16 %v3449
        %v3489 = vunpack.c.l.b16 %v3450
        %v3490 = vunpack.c.l.b16 %v3451
        %v3491 = vunpack.c.l.b16 %v3452
        %v3492 = vunpack.c.l.b16 %v3453
        %v3493 = vunpack.c.l.b16 %v3454
        %v3494 = vunpack.c.l.b16 %v3455
        %v3495 = vunpack.c.l.b16 %v3456
        %v3496 = vunpack.c.l.b16 %v3457
        %v3497 = vunpack.c.l.b16 %v3458
        %v3498 = vunpack.c.l.b16 %v3459
        %v3499 = vunpack.c.l.b16 %v3460
        %v3500 = vunpack.c.l.b16 %v3461
        %v3501 = vunpack.c.l.b16 %v3462
        %v3502 = vunpack.c.l.b16 %v3463
        %v3503 = vpack.c.b16 %v3488, %v3487
        %v3504 = vpack.c.b16 %v3490, %v3489
        %v3505 = vpack.c.b16 %v3492, %v3491
        %v3506 = vpack.c.b16 %v3494, %v3493
        %v3507 = vpack.c.b16 %v3496, %v3495
        %v3508 = vpack.c.b16 %v3498, %v3497
        %v3509 = vpack.c.b16 %v3500, %v3499
        %v3510 = vpack.c.b16 %v3502, %v3501
        %3519 = vmatprep.subr.bf16.mxu0 0
        %3520 = vmatpush1.bf16.msra.mxu0 %v3503
        %3521 = vmatprep.subr.bf16.mxu0 0
        %3522 = vmatpush1.bf16.msra.mxu0 %v3504
        %3523 = vmatprep.subr.bf16.mxu0 0
        %3524 = vmatpush1.bf16.msra.mxu0 %v3505
        %3525 = vmatprep.subr.bf16.mxu0 0
        %3526 = vmatpush1.bf16.msra.mxu0 %v3506
        %3527 = vmatprep.subr.bf16.mxu0 0
        %3528 = vmatpush1.bf16.msra.mxu0 %v3507
        %3529 = vmatprep.subr.bf16.mxu0 0
        %3530 = vmatpush1.bf16.msra.mxu0 %v3508
        %3531 = vmatprep.subr.bf16.mxu0 0
        %3532 = vmatpush1.bf16.msra.mxu0 %v3509
        %3533 = vmatprep.subr.bf16.mxu0 0
        %3534 = vmatpush1.bf16.msra.mxu0 %v3510
        %3535 = vmatprep.subr.bf16.mxu0 0
        %3536 = vmatpush1.bf16.msra.mxu0 0
        %3537 = vmatprep.subr.bf16.mxu0 0
        %3538 = vmatpush1.bf16.msra.mxu0 0
        %3539 = vmatprep.subr.bf16.mxu0 0
        %3540 = vmatpush1.bf16.msra.mxu0 0
        %3541 = vmatprep.subr.bf16.mxu0 0
        %3542 = vmatpush1.bf16.msra.mxu0 0
        %3543 = vmatprep.subr.bf16.mxu0 0
        %3544 = vmatpush1.bf16.msra.mxu0 0
        %3545 = vmatprep.subr.bf16.mxu0 0
        %3546 = vmatpush1.bf16.msra.mxu0 0
        %3547 = vmatprep.subr.bf16.mxu0 0
        %3548 = vmatpush1.bf16.msra.mxu0 0
        %3549 = vmatprep.subr.bf16.mxu0 0
        %3550 = vmatpush1.bf16.msra.mxu0 0
        %3551 = vmatprep.mubr.bf16.mxu0 0
        %3552 = vmatmul.mubr.bf16.gmra.mrb[0].mxu0 %v3447
        %v3553 = vpop.f32.mrb[0].mxu0
        %v3554 = vadd.f32 %v3469, %v3553
        %v3555 = vpop.f32.mrb[0].mxu0
        %v3556 = vpop.f32.mrb[0].mxu0
        %v3557 = vpop.f32.mrb[0].mxu0
        %3558 = vdwg.mxu0
        %3559 = vmax.xlane.f32.xlu0 %v3554
        %v3560 = vpop.xlane.xlu0 %3559
        %v3561 = vsub.f32 %v3554, %v3560
        %v3562 = vmul.f32 %v3561, 1.442695
        %v3563 = vpow.pop %v3562
        %3564 = vadd.xlane.f32.xlu0 %v3563
        %v3565 = vpop.xlane.xlu0 %3564
        %v3566 = vlog2.pop %v3565
        %v3567 = vmul.f32 %v3566, 0.6931472
        %v3568 = vadd.f32 %v3560, %v3567
        %v3569 = vsub.f32 %v3554, %v3568
        %3570 = vst [vmem:[%s306] sm:$0xff] %v3569
        %p3571 = scmp.lt.s32.totalorder %s20, 1
        %s3572 = scalar_select %p3571, %s20, 1
        %s3573 = smul.addr %s3572, 8
        %s3574 = scalar_lea.vmem %s7, %s3573
        // Predicated region
        $region57: #{cnn_forward.1} parent=47 // pred_check
          %p3575 = pneg %p190
        $region58: #{cnn_forward.1} parent=47 // pred_check_branch
          %3577 = sbr.rel (%p3575) target = $region60
        $region59: #{cnn_forward.1} parent=47 // pred_region
          _
        $region60: #{cnn_forward.1} parent=47 // pred_fallthru
          _
      $region48: #{cnn_forward.1} parent=5 // pred_fallthru
        _
      %p3578 = scmp.le.s32.totalorder 2, %s15
      // Predicated region
      $region61: #{cnn_forward.1} parent=5 // pred_check
        %p3579 = pneg %p3578
      $region62: #{cnn_forward.1} parent=5 // pred_check_branch
        %3581 = sbr.rel (%p3579) target = $region64
      $region63: #{cnn_forward.1} parent=5 // pred_region
        %s3582 = ssub.s32 %s15, 2
        // Predicated region
        $region65: #{cnn_forward.1} parent=63 // pred_check
          %p3583 = pneg %p196
        $region66: #{cnn_forward.1} parent=63 // pred_check_branch
          %3585 = sbr.rel (%p3583) target = $region68
        $region67: #{cnn_forward.1} parent=63 // pred_region
          %p3586 = scmp.lt.s32.totalorder %s21, 1
          %s3587 = scalar_select %p3586, %s21, 1
          %s3588 = smul.addr %s3587, 8
          %s3589 = scalar_lea.vmem %s7, %s3588
        $region68: #{cnn_forward.1} parent=63 // pred_fallthru
          _
      $region64: #{cnn_forward.1} parent=5 // pred_fallthru
        _
    $region6: #{cnn_forward.1} parent=1 // loop_footer
      %s19 = sadd.s32 1, %s15
    $region7: #{cnn_forward.1} parent=1 // loop_footer_branch
      %14 = sbr.rel target = $region3
    $region8: #{cnn_forward.1} parent=1 // loop_exit
      _
    %3590 = vsyncpa [#allocation3], 1
    %s3591 = scalar_lea.sflag [#allocation3], 1
    %3592 = vsyncpa %s3591, 1
    %3593 = vsyncpa [#allocation5], 1

</llo_original>
